<compile_context>
chip_gen: v6e
topology: v6e:2x2x1
jax: 0.10.0
libtpu: 0.0.40
codegen_flags: <defaults>
</compile_context>

<pallas_src>
import functools

import jax
import jax.numpy as jnp
from jax.experimental import pallas as pl
from jax.experimental.pallas import tpu as pltpu


# ----------------------------- Pallas kernel --------------------------------

def gru_chunk_kernel(gi_ref, wh_ref, bhn_ref, states_ref, h_scratch,
                     *, tc, hp, unroll):
    """One grid step == `tc` GRU time steps.  Hidden state lives in VMEM scratch.

    gi_ref:     (tc, B, 3*Hp) f32  -- precomputed x@W_ih + b_ih (+ b_hr/b_hz folded)
    wh_ref:     (Hp, 3*Hp)    bf16 -- [W_hr | W_hz | W_hn] fused, single-buffered
    bhn_ref:    (1, Hp)       f32  -- b_hn (must stay inside the r*(.) term)
    states_ref: (tc, B, Hp)   bf16 -- per-timestep hidden states (output)
    h_scratch:  (B, Hp)       f32  -- carried hidden state
    """
    step = pl.program_id(0)

    @pl.when(step == 0)
    def _():
        h_scratch[...] = jnp.zeros_like(h_scratch)

    # Constant-index, single-buffered weight block (bf16) + hoisted bias bcast.
    w_h = wh_ref[...]                                             # (Hp, 3Hp)
    b_n = jnp.broadcast_to(bhn_ref[...], h_scratch.shape)         # (B, Hp), hoisted

    def body(i, h):
        # Single fused recurrent matmul: (B, Hp) x (Hp, 3Hp) -> (B, 3Hp), f32 acc.
        gh = jnp.dot(h.astype(w_h.dtype), w_h,
                     preferred_element_type=jnp.float32)
        gi = gi_ref[i]                                            # (B, 3Hp)
        # Lane-aligned gate slices (Hp is a multiple of 128).
        r = jax.nn.sigmoid(gi[:, 0:hp] + gh[:, 0:hp])
        z = jax.nn.sigmoid(gi[:, hp:2 * hp] + gh[:, hp:2 * hp])
        n = jnp.tanh(gi[:, 2 * hp:3 * hp] + r * (gh[:, 2 * hp:3 * hp] + b_n))
        h_new = n + z * (h - n)             # == (1-z)*n + z*h, one fewer VPU mul
        states_ref[i] = h_new.astype(states_ref.dtype)
        return h_new

    # Outer non-unrolled loop with a bounded inner unroll: LLO visibility
    # without blowing the vreg budget when tc is large.
    n_outer = tc // unroll

    def outer(o, h):
        def inner(j, hh):
            return body(o * unroll + j, hh)
        return jax.lax.fori_loop(0, unroll, inner, h, unroll=True)

    h_last = jax.lax.fori_loop(0, n_outer, outer, h_scratch[...])
    h_scratch[...] = h_last


# --------------------------- Recurrence wrapper ------------------------------

def gru_recurrence(gi, w_h_cat, b_hn, *, time_chunk=16, unroll=8,
                   single_buffer_weights=True, states_dtype=jnp.bfloat16,
                   vmem_limit_bytes=None):
    """gi: (T, B, 3*Hp) f32 (per-gate slabs each padded to Hp, biases folded).
    w_h_cat: (Hp, 3*Hp) bf16.  b_hn: (1, Hp) f32.
    Returns states (T, B, Hp) in `states_dtype`."""
    T, B, threeHp = gi.shape
    Hp = threeHp // 3

    # Pick the chunk, then pad T up to a multiple of it (a few wasted steps are
    # far cheaper than degrading to tc=1 for awkward sequence lengths).
    tc = max(1, min(time_chunk, T))
    Tp = ((T + tc - 1) // tc) * tc
    if Tp != T:
        gi = jnp.pad(gi, ((0, Tp - T), (0, 0), (0, 0)))
    grid = (Tp // tc,)

    # Largest divisor of tc that is <= requested unroll.
    u = max(1, min(unroll, tc))
    while tc % u != 0:
        u -= 1

    def const_spec(shape):
        # Constant-index weight/bias blocks: revisited every step, request a
        # single buffer (halves weight VMEM residency at production size).
        if single_buffer_weights:
            return pl.BlockSpec(shape, lambda s: (0,) * len(shape),
                                pipeline_mode=pl.Buffered(1))
        return pl.BlockSpec(shape, lambda s: (0,) * len(shape))

    cp_kwargs = dict(dimension_semantics=("arbitrary",))   # time axis is serial
    if vmem_limit_bytes is not None:
        cp_kwargs["vmem_limit_bytes"] = vmem_limit_bytes

    states = pl.pallas_call(
        functools.partial(gru_chunk_kernel, tc=tc, hp=Hp, unroll=u),
        out_shape=jax.ShapeDtypeStruct((Tp, B, Hp), states_dtype),
        grid_spec=pltpu.PrefetchScalarGridSpec(
            num_scalar_prefetch=0,
            grid=grid,
            in_specs=[
                pl.BlockSpec((tc, B, threeHp), lambda s: (s, 0, 0)),  # gi chunk
                const_spec((Hp, threeHp)),                            # fused W_h (bf16)
                const_spec((1, Hp)),                                  # b_hn (f32)
            ],
            out_specs=pl.BlockSpec((tc, B, Hp), lambda s: (s, 0, 0)),
            scratch_shapes=[pltpu.VMEM((B, Hp), jnp.float32)],
        ),
        compiler_params=pltpu.CompilerParams(**cp_kwargs),
    )(gi, w_h_cat, b_hn)
    return states[:T]


# ------------------------------- Model glue ---------------------------------

def tatlstm_forward(params, movie_to_onehot, inputs, movie, topics, *,
                    time_chunk=16, unroll=8, single_buffer_weights=True,
                    states_dtype=jnp.bfloat16, vmem_limit_bytes=None):
    """Mirrors TATLSTM.forward (hidden=None path)."""
    weight = params["embedding"]                      # (vocab, E), frozen
    onehot_dim = movie_to_onehot.shape[1]
    H = params["w_hh"].shape[0]

    embeddings = jnp.take(weight, inputs, axis=0)     # (B, T, E)
    topics_embed = jnp.take(weight, topics, axis=0)   # (B, 1, E)

    movie_oh = jnp.take(movie_to_onehot, movie, axis=0).astype(jnp.float32)
    movie_oh = movie_oh.reshape(-1, 1, onehot_dim)    # (B, 1, onehot_dim)

    topics_embed = jnp.concatenate([movie_oh, topics_embed], axis=2)
    topics_embed = jnp.broadcast_to(
        topics_embed,
        (embeddings.shape[0], embeddings.shape[1], topics_embed.shape[2]))
    embeddings = jnp.concatenate([embeddings, topics_embed], axis=2)   # (B,T,3E)

    x = jnp.transpose(embeddings, (1, 0, 2)).astype(jnp.float32)       # (T,B,3E)
    T, B, IN = x.shape

    # ---- hoisted input projection: one large MXU-friendly matmul (f32) -----
    gi = x.reshape(T * B, IN) @ params["w_ih"] + params["b_ih"]        # (T*B,3H)
    gi = gi.reshape(T, B, 3, H)
    # Fold recurrent r/z biases into gi; b_hn must stay inside the r*(.) term.
    b_hh3 = params["b_hh"].reshape(3, H)
    fold = jnp.concatenate([b_hh3[0:2], jnp.zeros((1, H), jnp.float32)], axis=0)
    gi = gi + fold                                                     # (T,B,3,H)

    # ---- pad H to a multiple of 128 so every gate slab is lane-aligned -----
    Hp = ((H + 127) // 128) * 128
    if Hp != H:
        gi = jnp.pad(gi, ((0, 0), (0, 0), (0, 0), (0, Hp - H)))
    gi = gi.reshape(T, B, 3 * Hp)

    # ---- pad batch to a multiple of 8 sublanes ------------------------------
    Bp = ((B + 7) // 8) * 8
    if Bp != B:
        gi = jnp.pad(gi, ((0, 0), (0, Bp - B), (0, 0)))

    # ---- fused + padded recurrent weights (bf16, f32 MXU accumulation) -----
    w_hh = params["w_hh"].reshape(H, 3, H)
    if Hp != H:
        w_hh = jnp.pad(w_hh, ((0, Hp - H), (0, 0), (0, Hp - H)))
    w_h_cat = w_hh.reshape(Hp, 3 * Hp).astype(jnp.bfloat16)           # (Hp,3Hp)

    b_hn = params["b_hh"][:, 2 * H:3 * H]                              # (1,H)
    if Hp != H:
        b_hn = jnp.pad(b_hn, ((0, 0), (0, Hp - H)))

    # ---- serial recurrence in the Pallas kernel -----------------------------
    states_p = gru_recurrence(
        gi, w_h_cat, b_hn,
        time_chunk=time_chunk, unroll=unroll,
        single_buffer_weights=single_buffer_weights,
        states_dtype=states_dtype, vmem_limit_bytes=vmem_limit_bytes)  # (T,Bp,Hp)

    states = states_p[:, :B, :H]                                       # (T,B,H)
    # Final hidden from the last *valid* timestep (T padding cannot leak in).
    hidden = states[T - 1][None].astype(jnp.float32)                   # (1,B,H)

    # ---- hoisted decoder: one large bf16 matmul over all T*B states --------
    outputs = jnp.dot(states.reshape(T * B, H).astype(jnp.bfloat16),
                      params["w_dec"].astype(jnp.bfloat16),
                      preferred_element_type=jnp.float32) + params["b_dec"]
    return outputs, hidden                                  # (T*B,1000), (1,B,H)


# --------------------------------- Driver -----------------------------------

if __name__ == "__main__":
    # Small shapes consistent with the module (onehot_dimension == embed_dim so
    # the concat gives 3*embed_dim, matching the GRU input_size).
    B, T = 2, 8            # batch, sequence length
    E = 32                 # embed_dim == onehot_dimension (stand-in for 300)
    H = 32                 # hidden_dim (stand-in for 800)
    VOCAB = 64
    NUM_MOVIES = 16
    NOUT = 1000            # decoder output size hardcoded to 1000 in the module

    key = jax.random.PRNGKey(0)
    ks = jax.random.split(key, 10)

    params = {
        "embedding": jax.random.normal(ks[0], (VOCAB, E), jnp.float32) * 0.1,
        "w_ih": jax.random.normal(ks[1], (3 * E, 3 * H), jnp.float32) * 0.05,
        "w_hh": jax.random.normal(ks[2], (H, 3 * H), jnp.float32) * 0.05,
        "b_ih": jax.random.normal(ks[3], (1, 3 * H), jnp.float32) * 0.01,
        "b_hh": jax.random.normal(ks[4], (1, 3 * H), jnp.float32) * 0.01,
        "w_dec": jax.random.normal(ks[5], (H, NOUT), jnp.float32) * 0.05,
        "b_dec": jax.random.normal(ks[6], (1, NOUT), jnp.float32) * 0.01,
    }
    movie_to_onehot = jax.random.normal(ks[7], (NUM_MOVIES, E), jnp.float32)

    inputs = jax.random.randint(ks[8], (B, T), 0, VOCAB, dtype=jnp.int32)  # token ids
    topics = jax.random.randint(ks[9], (B, 1), 0, VOCAB, dtype=jnp.int32)  # topic ids
    movie = jnp.array([1, 3], dtype=jnp.int32)                             # movie ids

    def make_fwd(single_buffer_weights, states_dtype):
        return jax.jit(functools.partial(
            tatlstm_forward, params, movie_to_onehot,
            time_chunk=16, unroll=8,
            single_buffer_weights=single_buffer_weights,
            states_dtype=states_dtype))

    try:
        outputs, hidden = jax.block_until_ready(
            make_fwd(True, jnp.bfloat16)(inputs, movie, topics))
    except Exception:
        # Conservative fallback (double-buffered weights, f32 states) in case a
        # given jax build rejects Buffered(1) or the bf16 states store; the
        # math is identical.
        outputs, hidden = jax.block_until_ready(
            make_fwd(False, jnp.float32)(inputs, movie, topics))

    assert outputs.shape == (T * B, NOUT), outputs.shape
    assert hidden.shape == (1, B, H), hidden.shape

    # Numerical sanity check against a pure-JAX f32 GRU reference (kernel uses
    # bf16 recurrent weights / bf16 states with f32 accumulation -> small drift).
    def ref(inputs, movie, topics):
        weight = params["embedding"]
        emb = jnp.take(weight, inputs, axis=0)
        te = jnp.take(weight, topics, axis=0)
        mo = jnp.take(movie_to_onehot, movie, axis=0).reshape(-1, 1, E)
        te = jnp.concatenate([mo, te], axis=2)
        te = jnp.broadcast_to(te, (emb.shape[0], emb.shape[1], te.shape[2]))
        x = jnp.transpose(jnp.concatenate([emb, te], axis=2), (1, 0, 2))

        def step(h, xt):
            gi = xt @ params["w_ih"] + params["b_ih"]
            gh = h @ params["w_hh"] + params["b_hh"]
            r = jax.nn.sigmoid(gi[:, :H] + gh[:, :H])
            z = jax.nn.sigmoid(gi[:, H:2 * H] + gh[:, H:2 * H])
            n = jnp.tanh(gi[:, 2 * H:] + r * gh[:, 2 * H:])
            hn = (1 - z) * n + z * h
            return hn, hn

        hT, states = jax.lax.scan(step, jnp.zeros((B, H), jnp.float32), x)
        out = states.reshape(-1, H) @ params["w_dec"] + params["b_dec"]
        return out, hT[None]

    ro, rh = ref(inputs, movie, topics)
    assert jnp.allclose(outputs, ro, atol=5e-2, rtol=5e-2)
    assert jnp.allclose(hidden, rh, atol=5e-2, rtol=5e-2)

    print("KERNEL_OK")
</pallas_src>

<mosaic_0001>
module attributes {stable_mosaic.version = 11 : i64} {
  func.func @gru_chunk_kernel(%arg0: i32, %arg1: memref<8x8x384xf32, #tpu.memory_space<vmem>>, %arg2: memref<128x384xbf16, #tpu.memory_space<vmem>>, %arg3: memref<1x128xf32, #tpu.memory_space<vmem>>, %arg4: memref<8x8x128xbf16, #tpu.memory_space<vmem>>, %arg5: memref<8x128xf32, #tpu.memory_space<vmem>>) attributes {dimension_semantics = [#tpu.dimension_semantics<arbitrary>], iteration_bounds = array<i64: 1>, scalar_prefetch = 0 : i64, scratch_operands = 1 : i64, tpu.core_type = #tpu.core_type<tc>, window_params = [{transform_indices = @transform_0, window_bounds = array<i64: 8, 8, 384>}, {pipeline_mode = #tpu.pipeline_mode<synchronous>, transform_indices = @transform_1, window_bounds = array<i64: 128, 384>}, {pipeline_mode = #tpu.pipeline_mode<synchronous>, transform_indices = @transform_2, window_bounds = array<i64: 1, 128>}, {transform_indices = @transform_3, window_bounds = array<i64: 8, 8, 128>}]} {
    %c0_i32 = arith.constant 0 : i32
    %0 = arith.cmpi eq, %arg0, %c0_i32 : i32
    %1 = arith.extui %0 : i1 to i32
    %c0_i32_0 = arith.constant 0 : i32
    %2 = arith.cmpi ne, %1, %c0_i32_0 : i32
    scf.if %2 {
      %cst_74 = arith.constant 0.000000e+00 : f32
      %305 = vector.broadcast %cst_74 : f32 to vector<8x128xf32>
      %c0_75 = arith.constant 0 : index
      %c0_76 = arith.constant 0 : index
      %306 = vector.load %arg5[%c0_75, %c0_76] : memref<8x128xf32, #tpu.memory_space<vmem>>, vector<8x128xf32>
      tpu.vector_store %arg5[%c0_75, %c0_76], %305 {strides = array<i32>} : memref<8x128xf32, #tpu.memory_space<vmem>>, vector<8x128xf32>,
    } else {
    }
    %c0 = arith.constant 0 : index
    %c0_1 = arith.constant 0 : index
    %3 = vector.load %arg2[%c0, %c0_1] : memref<128x384xbf16, #tpu.memory_space<vmem>>, vector<128x384xbf16>
    %c0_2 = arith.constant 0 : index
    %c0_3 = arith.constant 0 : index
    %4 = vector.load %arg3[%c0_2, %c0_3] : memref<1x128xf32, #tpu.memory_space<vmem>>, vector<1x128xf32>
    %5 = vector.shape_cast %4 : vector<1x128xf32> to vector<1x128xf32>
    %6 = vector.broadcast %5 : vector<1x128xf32> to vector<8x128xf32>
    %c0_4 = arith.constant 0 : index
    %c0_5 = arith.constant 0 : index
    %7 = vector.load %arg5[%c0_4, %c0_5] : memref<8x128xf32, #tpu.memory_space<vmem>>, vector<8x128xf32>
    %c0_i32_6 = arith.constant 0 : i32
    %c0_i32_7 = arith.constant 0 : i32
    %c8_i32 = arith.constant 8 : i32
    %8 = arith.muli %c0_i32_6, %c8_i32 : i32
    %9 = arith.addi %8, %c0_i32_7 : i32
    %10 = arith.truncf %7 : vector<8x128xf32> to vector<8x128xbf16>
    %cst = arith.constant dense<0.000000e+00> : vector<8x384xf32>
    %11 = tpu.matmul %10, %3, %cst {dimension_numbers = #tpu.dot_dimension_numbers<[1], [0], [0], [1], [0, 0, 1, 1], [], []>} : vector<8x128xbf16>, vector<128x384xbf16>, vector<8x384xf32> -> vector<8x384xf32>
    %12 = arith.index_cast %9 : i32 to index
    %c0_8 = arith.constant 0 : index
    %c0_9 = arith.constant 0 : index
    %13 = vector.load %arg1[%12, %c0_8, %c0_9] : memref<8x8x384xf32, #tpu.memory_space<vmem>>, vector<1x8x384xf32>
    %14 = vector.shape_cast %13 : vector<1x8x384xf32> to vector<8x384xf32>
    %15 = vector.extract_strided_slice %14 {offsets = [0, 0], sizes = [8, 128], strides = [1, 1]} : vector<8x384xf32> to vector<8x128xf32>
    %16 = vector.extract_strided_slice %11 {offsets = [0, 0], sizes = [8, 128], strides = [1, 1]} : vector<8x384xf32> to vector<8x128xf32>
    %17 = arith.addf %15, %16 : vector<8x128xf32>
    %18 = arith.negf %17 : vector<8x128xf32>
    %19 = math.exp %18 : vector<8x128xf32>
    %cst_10 = arith.constant 1.000000e+00 : f32
    %20 = vector.broadcast %cst_10 : f32 to vector<8x128xf32>
    %21 = arith.addf %20, %19 : vector<8x128xf32>
    %22 = arith.divf %20, %21 : vector<8x128xf32>
    %23 = vector.extract_strided_slice %14 {offsets = [0, 128], sizes = [8, 128], strides = [1, 1]} : vector<8x384xf32> to vector<8x128xf32>
    %24 = vector.extract_strided_slice %11 {offsets = [0, 128], sizes = [8, 128], strides = [1, 1]} : vector<8x384xf32> to vector<8x128xf32>
    %25 = arith.addf %23, %24 : vector<8x128xf32>
    %26 = arith.negf %25 : vector<8x128xf32>
    %27 = math.exp %26 : vector<8x128xf32>
    %cst_11 = arith.constant 1.000000e+00 : f32
    %28 = vector.broadcast %cst_11 : f32 to vector<8x128xf32>
    %29 = arith.addf %28, %27 : vector<8x128xf32>
    %30 = arith.divf %28, %29 : vector<8x128xf32>
    %31 = vector.extract_strided_slice %14 {offsets = [0, 256], sizes = [8, 128], strides = [1, 1]} : vector<8x384xf32> to vector<8x128xf32>
    %32 = vector.extract_strided_slice %11 {offsets = [0, 256], sizes = [8, 128], strides = [1, 1]} : vector<8x384xf32> to vector<8x128xf32>
    %33 = arith.addf %32, %6 : vector<8x128xf32>
    %34 = arith.mulf %22, %33 : vector<8x128xf32>
    %35 = arith.addf %31, %34 : vector<8x128xf32>
    %36 = math.tanh %35 : vector<8x128xf32>
    %37 = arith.subf %7, %36 : vector<8x128xf32>
    %38 = arith.mulf %30, %37 : vector<8x128xf32>
    %39 = arith.addf %36, %38 : vector<8x128xf32>
    %40 = arith.truncf %39 : vector<8x128xf32> to vector<8x128xbf16>
    %41 = arith.index_cast %9 : i32 to index
    %c0_12 = arith.constant 0 : index
    %c0_13 = arith.constant 0 : index
    %42 = vector.load %arg4[%41, %c0_12, %c0_13] : memref<8x8x128xbf16, #tpu.memory_space<vmem>>, vector<1x8x128xbf16>
    %43 = vector.shape_cast %42 : vector<1x8x128xbf16> to vector<8x128xbf16>
    %44 = vector.shape_cast %40 : vector<8x128xbf16> to vector<1x8x128xbf16>
    tpu.vector_store %arg4[%41, %c0_12, %c0_13], %44 {strides = array<i32>} : memref<8x8x128xbf16, #tpu.memory_space<vmem>>, vector<1x8x128xbf16>,
    %c1_i32 = arith.constant 1 : i32
    %c8_i32_14 = arith.constant 8 : i32
    %45 = arith.muli %c0_i32_6, %c8_i32_14 : i32
    %46 = arith.addi %45, %c1_i32 : i32
    %47 = arith.truncf %39 : vector<8x128xf32> to vector<8x128xbf16>
    %cst_15 = arith.constant dense<0.000000e+00> : vector<8x384xf32>
    %48 = tpu.matmul %47, %3, %cst_15 {dimension_numbers = #tpu.dot_dimension_numbers<[1], [0], [0], [1], [0, 0, 1, 1], [], []>} : vector<8x128xbf16>, vector<128x384xbf16>, vector<8x384xf32> -> vector<8x384xf32>
    %49 = arith.index_cast %46 : i32 to index
    %c0_16 = arith.constant 0 : index
    %c0_17 = arith.constant 0 : index
    %50 = vector.load %arg1[%49, %c0_16, %c0_17] : memref<8x8x384xf32, #tpu.memory_space<vmem>>, vector<1x8x384xf32>
    %51 = vector.shape_cast %50 : vector<1x8x384xf32> to vector<8x384xf32>
    %52 = vector.extract_strided_slice %51 {offsets = [0, 0], sizes = [8, 128], strides = [1, 1]} : vector<8x384xf32> to vector<8x128xf32>
    %53 = vector.extract_strided_slice %48 {offsets = [0, 0], sizes = [8, 128], strides = [1, 1]} : vector<8x384xf32> to vector<8x128xf32>
    %54 = arith.addf %52, %53 : vector<8x128xf32>
    %55 = arith.negf %54 : vector<8x128xf32>
    %56 = math.exp %55 : vector<8x128xf32>
    %cst_18 = arith.constant 1.000000e+00 : f32
    %57 = vector.broadcast %cst_18 : f32 to vector<8x128xf32>
    %58 = arith.addf %57, %56 : vector<8x128xf32>
    %59 = arith.divf %57, %58 : vector<8x128xf32>
    %60 = vector.extract_strided_slice %51 {offsets = [0, 128], sizes = [8, 128], strides = [1, 1]} : vector<8x384xf32> to vector<8x128xf32>
    %61 = vector.extract_strided_slice %48 {offsets = [0, 128], sizes = [8, 128], strides = [1, 1]} : vector<8x384xf32> to vector<8x128xf32>
    %62 = arith.addf %60, %61 : vector<8x128xf32>
    %63 = arith.negf %62 : vector<8x128xf32>
    %64 = math.exp %63 : vector<8x128xf32>
    %cst_19 = arith.constant 1.000000e+00 : f32
    %65 = vector.broadcast %cst_19 : f32 to vector<8x128xf32>
    %66 = arith.addf %65, %64 : vector<8x128xf32>
    %67 = arith.divf %65, %66 : vector<8x128xf32>
    %68 = vector.extract_strided_slice %51 {offsets = [0, 256], sizes = [8, 128], strides = [1, 1]} : vector<8x384xf32> to vector<8x128xf32>
    %69 = vector.extract_strided_slice %48 {offsets = [0, 256], sizes = [8, 128], strides = [1, 1]} : vector<8x384xf32> to vector<8x128xf32>
    %70 = arith.addf %69, %6 : vector<8x128xf32>
    %71 = arith.mulf %59, %70 : vector<8x128xf32>
    %72 = arith.addf %68, %71 : vector<8x128xf32>
    %73 = math.tanh %72 : vector<8x128xf32>
    %74 = arith.subf %39, %73 : vector<8x128xf32>
    %75 = arith.mulf %67, %74 : vector<8x128xf32>
    %76 = arith.addf %73, %75 : vector<8x128xf32>
    %77 = arith.truncf %76 : vector<8x128xf32> to vector<8x128xbf16>
    %78 = arith.index_cast %46 : i32 to index
    %c0_20 = arith.constant 0 : index
    %c0_21 = arith.constant 0 : index
    %79 = vector.load %arg4[%78, %c0_20, %c0_21] : memref<8x8x128xbf16, #tpu.memory_space<vmem>>, vector<1x8x128xbf16>
    %80 = vector.shape_cast %79 : vector<1x8x128xbf16> to vector<8x128xbf16>
    %81 = vector.shape_cast %77 : vector<8x128xbf16> to vector<1x8x128xbf16>
    tpu.vector_store %arg4[%78, %c0_20, %c0_21], %81 {strides = array<i32>} : memref<8x8x128xbf16, #tpu.memory_space<vmem>>, vector<1x8x128xbf16>,
    %c2_i32 = arith.constant 2 : i32
    %c8_i32_22 = arith.constant 8 : i32
    %82 = arith.muli %c0_i32_6, %c8_i32_22 : i32
    %83 = arith.addi %82, %c2_i32 : i32
    %84 = arith.truncf %76 : vector<8x128xf32> to vector<8x128xbf16>
    %cst_23 = arith.constant dense<0.000000e+00> : vector<8x384xf32>
    %85 = tpu.matmul %84, %3, %cst_23 {dimension_numbers = #tpu.dot_dimension_numbers<[1], [0], [0], [1], [0, 0, 1, 1], [], []>} : vector<8x128xbf16>, vector<128x384xbf16>, vector<8x384xf32> -> vector<8x384xf32>
    %86 = arith.index_cast %83 : i32 to index
    %c0_24 = arith.constant 0 : index
    %c0_25 = arith.constant 0 : index
    %87 = vector.load %arg1[%86, %c0_24, %c0_25] : memref<8x8x384xf32, #tpu.memory_space<vmem>>, vector<1x8x384xf32>
    %88 = vector.shape_cast %87 : vector<1x8x384xf32> to vector<8x384xf32>
    %89 = vector.extract_strided_slice %88 {offsets = [0, 0], sizes = [8, 128], strides = [1, 1]} : vector<8x384xf32> to vector<8x128xf32>
    %90 = vector.extract_strided_slice %85 {offsets = [0, 0], sizes = [8, 128], strides = [1, 1]} : vector<8x384xf32> to vector<8x128xf32>
    %91 = arith.addf %89, %90 : vector<8x128xf32>
    %92 = arith.negf %91 : vector<8x128xf32>
    %93 = math.exp %92 : vector<8x128xf32>
    %cst_26 = arith.constant 1.000000e+00 : f32
    %94 = vector.broadcast %cst_26 : f32 to vector<8x128xf32>
    %95 = arith.addf %94, %93 : vector<8x128xf32>
    %96 = arith.divf %94, %95 : vector<8x128xf32>
    %97 = vector.extract_strided_slice %88 {offsets = [0, 128], sizes = [8, 128], strides = [1, 1]} : vector<8x384xf32> to vector<8x128xf32>
    %98 = vector.extract_strided_slice %85 {offsets = [0, 128], sizes = [8, 128], strides = [1, 1]} : vector<8x384xf32> to vector<8x128xf32>
    %99 = arith.addf %97, %98 : vector<8x128xf32>
    %100 = arith.negf %99 : vector<8x128xf32>
    %101 = math.exp %100 : vector<8x128xf32>
    %cst_27 = arith.constant 1.000000e+00 : f32
    %102 = vector.broadcast %cst_27 : f32 to vector<8x128xf32>
    %103 = arith.addf %102, %101 : vector<8x128xf32>
    %104 = arith.divf %102, %103 : vector<8x128xf32>
    %105 = vector.extract_strided_slice %88 {offsets = [0, 256], sizes = [8, 128], strides = [1, 1]} : vector<8x384xf32> to vector<8x128xf32>
    %106 = vector.extract_strided_slice %85 {offsets = [0, 256], sizes = [8, 128], strides = [1, 1]} : vector<8x384xf32> to vector<8x128xf32>
    %107 = arith.addf %106, %6 : vector<8x128xf32>
    %108 = arith.mulf %96, %107 : vector<8x128xf32>
    %109 = arith.addf %105, %108 : vector<8x128xf32>
    %110 = math.tanh %109 : vector<8x128xf32>
    %111 = arith.subf %76, %110 : vector<8x128xf32>
    %112 = arith.mulf %104, %111 : vector<8x128xf32>
    %113 = arith.addf %110, %112 : vector<8x128xf32>
    %114 = arith.truncf %113 : vector<8x128xf32> to vector<8x128xbf16>
    %115 = arith.index_cast %83 : i32 to index
    %c0_28 = arith.constant 0 : index
    %c0_29 = arith.constant 0 : index
    %116 = vector.load %arg4[%115, %c0_28, %c0_29] : memref<8x8x128xbf16, #tpu.memory_space<vmem>>, vector<1x8x128xbf16>
    %117 = vector.shape_cast %116 : vector<1x8x128xbf16> to vector<8x128xbf16>
    %118 = vector.shape_cast %114 : vector<8x128xbf16> to vector<1x8x128xbf16>
    tpu.vector_store %arg4[%115, %c0_28, %c0_29], %118 {strides = array<i32>} : memref<8x8x128xbf16, #tpu.memory_space<vmem>>, vector<1x8x128xbf16>,
    %c3_i32 = arith.constant 3 : i32
    %c8_i32_30 = arith.constant 8 : i32
    %119 = arith.muli %c0_i32_6, %c8_i32_30 : i32
    %120 = arith.addi %119, %c3_i32 : i32
    %121 = arith.truncf %113 : vector<8x128xf32> to vector<8x128xbf16>
    %cst_31 = arith.constant dense<0.000000e+00> : vector<8x384xf32>
    %122 = tpu.matmul %121, %3, %cst_31 {dimension_numbers = #tpu.dot_dimension_numbers<[1], [0], [0], [1], [0, 0, 1, 1], [], []>} : vector<8x128xbf16>, vector<128x384xbf16>, vector<8x384xf32> -> vector<8x384xf32>
    %123 = arith.index_cast %120 : i32 to index
    %c0_32 = arith.constant 0 : index
    %c0_33 = arith.constant 0 : index
    %124 = vector.load %arg1[%123, %c0_32, %c0_33] : memref<8x8x384xf32, #tpu.memory_space<vmem>>, vector<1x8x384xf32>
    %125 = vector.shape_cast %124 : vector<1x8x384xf32> to vector<8x384xf32>
    %126 = vector.extract_strided_slice %125 {offsets = [0, 0], sizes = [8, 128], strides = [1, 1]} : vector<8x384xf32> to vector<8x128xf32>
    %127 = vector.extract_strided_slice %122 {offsets = [0, 0], sizes = [8, 128], strides = [1, 1]} : vector<8x384xf32> to vector<8x128xf32>
    %128 = arith.addf %126, %127 : vector<8x128xf32>
    %129 = arith.negf %128 : vector<8x128xf32>
    %130 = math.exp %129 : vector<8x128xf32>
    %cst_34 = arith.constant 1.000000e+00 : f32
    %131 = vector.broadcast %cst_34 : f32 to vector<8x128xf32>
    %132 = arith.addf %131, %130 : vector<8x128xf32>
    %133 = arith.divf %131, %132 : vector<8x128xf32>
    %134 = vector.extract_strided_slice %125 {offsets = [0, 128], sizes = [8, 128], strides = [1, 1]} : vector<8x384xf32> to vector<8x128xf32>
    %135 = vector.extract_strided_slice %122 {offsets = [0, 128], sizes = [8, 128], strides = [1, 1]} : vector<8x384xf32> to vector<8x128xf32>
    %136 = arith.addf %134, %135 : vector<8x128xf32>
    %137 = arith.negf %136 : vector<8x128xf32>
    %138 = math.exp %137 : vector<8x128xf32>
    %cst_35 = arith.constant 1.000000e+00 : f32
    %139 = vector.broadcast %cst_35 : f32 to vector<8x128xf32>
    %140 = arith.addf %139, %138 : vector<8x128xf32>
    %141 = arith.divf %139, %140 : vector<8x128xf32>
    %142 = vector.extract_strided_slice %125 {offsets = [0, 256], sizes = [8, 128], strides = [1, 1]} : vector<8x384xf32> to vector<8x128xf32>
    %143 = vector.extract_strided_slice %122 {offsets = [0, 256], sizes = [8, 128], strides = [1, 1]} : vector<8x384xf32> to vector<8x128xf32>
    %144 = arith.addf %143, %6 : vector<8x128xf32>
    %145 = arith.mulf %133, %144 : vector<8x128xf32>
    %146 = arith.addf %142, %145 : vector<8x128xf32>
    %147 = math.tanh %146 : vector<8x128xf32>
    %148 = arith.subf %113, %147 : vector<8x128xf32>
    %149 = arith.mulf %141, %148 : vector<8x128xf32>
    %150 = arith.addf %147, %149 : vector<8x128xf32>
    %151 = arith.truncf %150 : vector<8x128xf32> to vector<8x128xbf16>
    %152 = arith.index_cast %120 : i32 to index
    %c0_36 = arith.constant 0 : index
    %c0_37 = arith.constant 0 : index
    %153 = vector.load %arg4[%152, %c0_36, %c0_37] : memref<8x8x128xbf16, #tpu.memory_space<vmem>>, vector<1x8x128xbf16>
    %154 = vector.shape_cast %153 : vector<1x8x128xbf16> to vector<8x128xbf16>
    %155 = vector.shape_cast %151 : vector<8x128xbf16> to vector<1x8x128xbf16>
    tpu.vector_store %arg4[%152, %c0_36, %c0_37], %155 {strides = array<i32>} : memref<8x8x128xbf16, #tpu.memory_space<vmem>>, vector<1x8x128xbf16>,
    %c4_i32 = arith.constant 4 : i32
    %c8_i32_38 = arith.constant 8 : i32
    %156 = arith.muli %c0_i32_6, %c8_i32_38 : i32
    %157 = arith.addi %156, %c4_i32 : i32
    %158 = arith.truncf %150 : vector<8x128xf32> to vector<8x128xbf16>
    %cst_39 = arith.constant dense<0.000000e+00> : vector<8x384xf32>
    %159 = tpu.matmul %158, %3, %cst_39 {dimension_numbers = #tpu.dot_dimension_numbers<[1], [0], [0], [1], [0, 0, 1, 1], [], []>} : vector<8x128xbf16>, vector<128x384xbf16>, vector<8x384xf32> -> vector<8x384xf32>
    %160 = arith.index_cast %157 : i32 to index
    %c0_40 = arith.constant 0 : index
    %c0_41 = arith.constant 0 : index
    %161 = vector.load %arg1[%160, %c0_40, %c0_41] : memref<8x8x384xf32, #tpu.memory_space<vmem>>, vector<1x8x384xf32>
    %162 = vector.shape_cast %161 : vector<1x8x384xf32> to vector<8x384xf32>
    %163 = vector.extract_strided_slice %162 {offsets = [0, 0], sizes = [8, 128], strides = [1, 1]} : vector<8x384xf32> to vector<8x128xf32>
    %164 = vector.extract_strided_slice %159 {offsets = [0, 0], sizes = [8, 128], strides = [1, 1]} : vector<8x384xf32> to vector<8x128xf32>
    %165 = arith.addf %163, %164 : vector<8x128xf32>
    %166 = arith.negf %165 : vector<8x128xf32>
    %167 = math.exp %166 : vector<8x128xf32>
    %cst_42 = arith.constant 1.000000e+00 : f32
    %168 = vector.broadcast %cst_42 : f32 to vector<8x128xf32>
    %169 = arith.addf %168, %167 : vector<8x128xf32>
    %170 = arith.divf %168, %169 : vector<8x128xf32>
    %171 = vector.extract_strided_slice %162 {offsets = [0, 128], sizes = [8, 128], strides = [1, 1]} : vector<8x384xf32> to vector<8x128xf32>
    %172 = vector.extract_strided_slice %159 {offsets = [0, 128], sizes = [8, 128], strides = [1, 1]} : vector<8x384xf32> to vector<8x128xf32>
    %173 = arith.addf %171, %172 : vector<8x128xf32>
    %174 = arith.negf %173 : vector<8x128xf32>
    %175 = math.exp %174 : vector<8x128xf32>
    %cst_43 = arith.constant 1.000000e+00 : f32
    %176 = vector.broadcast %cst_43 : f32 to vector<8x128xf32>
    %177 = arith.addf %176, %175 : vector<8x128xf32>
    %178 = arith.divf %176, %177 : vector<8x128xf32>
    %179 = vector.extract_strided_slice %162 {offsets = [0, 256], sizes = [8, 128], strides = [1, 1]} : vector<8x384xf32> to vector<8x128xf32>
    %180 = vector.extract_strided_slice %159 {offsets = [0, 256], sizes = [8, 128], strides = [1, 1]} : vector<8x384xf32> to vector<8x128xf32>
    %181 = arith.addf %180, %6 : vector<8x128xf32>
    %182 = arith.mulf %170, %181 : vector<8x128xf32>
    %183 = arith.addf %179, %182 : vector<8x128xf32>
    %184 = math.tanh %183 : vector<8x128xf32>
    %185 = arith.subf %150, %184 : vector<8x128xf32>
    %186 = arith.mulf %178, %185 : vector<8x128xf32>
    %187 = arith.addf %184, %186 : vector<8x128xf32>
    %188 = arith.truncf %187 : vector<8x128xf32> to vector<8x128xbf16>
    %189 = arith.index_cast %157 : i32 to index
    %c0_44 = arith.constant 0 : index
    %c0_45 = arith.constant 0 : index
    %190 = vector.load %arg4[%189, %c0_44, %c0_45] : memref<8x8x128xbf16, #tpu.memory_space<vmem>>, vector<1x8x128xbf16>
    %191 = vector.shape_cast %190 : vector<1x8x128xbf16> to vector<8x128xbf16>
    %192 = vector.shape_cast %188 : vector<8x128xbf16> to vector<1x8x128xbf16>
    tpu.vector_store %arg4[%189, %c0_44, %c0_45], %192 {strides = array<i32>} : memref<8x8x128xbf16, #tpu.memory_space<vmem>>, vector<1x8x128xbf16>,
    %c5_i32 = arith.constant 5 : i32
    %c8_i32_46 = arith.constant 8 : i32
    %193 = arith.muli %c0_i32_6, %c8_i32_46 : i32
    %194 = arith.addi %193, %c5_i32 : i32
    %195 = arith.truncf %187 : vector<8x128xf32> to vector<8x128xbf16>
    %cst_47 = arith.constant dense<0.000000e+00> : vector<8x384xf32>
    %196 = tpu.matmul %195, %3, %cst_47 {dimension_numbers = #tpu.dot_dimension_numbers<[1], [0], [0], [1], [0, 0, 1, 1], [], []>} : vector<8x128xbf16>, vector<128x384xbf16>, vector<8x384xf32> -> vector<8x384xf32>
    %197 = arith.index_cast %194 : i32 to index
    %c0_48 = arith.constant 0 : index
    %c0_49 = arith.constant 0 : index
    %198 = vector.load %arg1[%197, %c0_48, %c0_49] : memref<8x8x384xf32, #tpu.memory_space<vmem>>, vector<1x8x384xf32>
    %199 = vector.shape_cast %198 : vector<1x8x384xf32> to vector<8x384xf32>
    %200 = vector.extract_strided_slice %199 {offsets = [0, 0], sizes = [8, 128], strides = [1, 1]} : vector<8x384xf32> to vector<8x128xf32>
    %201 = vector.extract_strided_slice %196 {offsets = [0, 0], sizes = [8, 128], strides = [1, 1]} : vector<8x384xf32> to vector<8x128xf32>
    %202 = arith.addf %200, %201 : vector<8x128xf32>
    %203 = arith.negf %202 : vector<8x128xf32>
    %204 = math.exp %203 : vector<8x128xf32>
    %cst_50 = arith.constant 1.000000e+00 : f32
    %205 = vector.broadcast %cst_50 : f32 to vector<8x128xf32>
    %206 = arith.addf %205, %204 : vector<8x128xf32>
    %207 = arith.divf %205, %206 : vector<8x128xf32>
    %208 = vector.extract_strided_slice %199 {offsets = [0, 128], sizes = [8, 128], strides = [1, 1]} : vector<8x384xf32> to vector<8x128xf32>
    %209 = vector.extract_strided_slice %196 {offsets = [0, 128], sizes = [8, 128], strides = [1, 1]} : vector<8x384xf32> to vector<8x128xf32>
    %210 = arith.addf %208, %209 : vector<8x128xf32>
    %211 = arith.negf %210 : vector<8x128xf32>
    %212 = math.exp %211 : vector<8x128xf32>
    %cst_51 = arith.constant 1.000000e+00 : f32
    %213 = vector.broadcast %cst_51 : f32 to vector<8x128xf32>
    %214 = arith.addf %213, %212 : vector<8x128xf32>
    %215 = arith.divf %213, %214 : vector<8x128xf32>
    %216 = vector.extract_strided_slice %199 {offsets = [0, 256], sizes = [8, 128], strides = [1, 1]} : vector<8x384xf32> to vector<8x128xf32>
    %217 = vector.extract_strided_slice %196 {offsets = [0, 256], sizes = [8, 128], strides = [1, 1]} : vector<8x384xf32> to vector<8x128xf32>
    %218 = arith.addf %217, %6 : vector<8x128xf32>
    %219 = arith.mulf %207, %218 : vector<8x128xf32>
    %220 = arith.addf %216, %219 : vector<8x128xf32>
    %221 = math.tanh %220 : vector<8x128xf32>
    %222 = arith.subf %187, %221 : vector<8x128xf32>
    %223 = arith.mulf %215, %222 : vector<8x128xf32>
    %224 = arith.addf %221, %223 : vector<8x128xf32>
    %225 = arith.truncf %224 : vector<8x128xf32> to vector<8x128xbf16>
    %226 = arith.index_cast %194 : i32 to index
    %c0_52 = arith.constant 0 : index
    %c0_53 = arith.constant 0 : index
    %227 = vector.load %arg4[%226, %c0_52, %c0_53] : memref<8x8x128xbf16, #tpu.memory_space<vmem>>, vector<1x8x128xbf16>
    %228 = vector.shape_cast %227 : vector<1x8x128xbf16> to vector<8x128xbf16>
    %229 = vector.shape_cast %225 : vector<8x128xbf16> to vector<1x8x128xbf16>
    tpu.vector_store %arg4[%226, %c0_52, %c0_53], %229 {strides = array<i32>} : memref<8x8x128xbf16, #tpu.memory_space<vmem>>, vector<1x8x128xbf16>,
    %c6_i32 = arith.constant 6 : i32
    %c8_i32_54 = arith.constant 8 : i32
    %230 = arith.muli %c0_i32_6, %c8_i32_54 : i32
    %231 = arith.addi %230, %c6_i32 : i32
    %232 = arith.truncf %224 : vector<8x128xf32> to vector<8x128xbf16>
    %cst_55 = arith.constant dense<0.000000e+00> : vector<8x384xf32>
    %233 = tpu.matmul %232, %3, %cst_55 {dimension_numbers = #tpu.dot_dimension_numbers<[1], [0], [0], [1], [0, 0, 1, 1], [], []>} : vector<8x128xbf16>, vector<128x384xbf16>, vector<8x384xf32> -> vector<8x384xf32>
    %234 = arith.index_cast %231 : i32 to index
    %c0_56 = arith.constant 0 : index
    %c0_57 = arith.constant 0 : index
    %235 = vector.load %arg1[%234, %c0_56, %c0_57] : memref<8x8x384xf32, #tpu.memory_space<vmem>>, vector<1x8x384xf32>
    %236 = vector.shape_cast %235 : vector<1x8x384xf32> to vector<8x384xf32>
    %237 = vector.extract_strided_slice %236 {offsets = [0, 0], sizes = [8, 128], strides = [1, 1]} : vector<8x384xf32> to vector<8x128xf32>
    %238 = vector.extract_strided_slice %233 {offsets = [0, 0], sizes = [8, 128], strides = [1, 1]} : vector<8x384xf32> to vector<8x128xf32>
    %239 = arith.addf %237, %238 : vector<8x128xf32>
    %240 = arith.negf %239 : vector<8x128xf32>
    %241 = math.exp %240 : vector<8x128xf32>
    %cst_58 = arith.constant 1.000000e+00 : f32
    %242 = vector.broadcast %cst_58 : f32 to vector<8x128xf32>
    %243 = arith.addf %242, %241 : vector<8x128xf32>
    %244 = arith.divf %242, %243 : vector<8x128xf32>
    %245 = vector.extract_strided_slice %236 {offsets = [0, 128], sizes = [8, 128], strides = [1, 1]} : vector<8x384xf32> to vector<8x128xf32>
    %246 = vector.extract_strided_slice %233 {offsets = [0, 128], sizes = [8, 128], strides = [1, 1]} : vector<8x384xf32> to vector<8x128xf32>
    %247 = arith.addf %245, %246 : vector<8x128xf32>
    %248 = arith.negf %247 : vector<8x128xf32>
    %249 = math.exp %248 : vector<8x128xf32>
    %cst_59 = arith.constant 1.000000e+00 : f32
    %250 = vector.broadcast %cst_59 : f32 to vector<8x128xf32>
    %251 = arith.addf %250, %249 : vector<8x128xf32>
    %252 = arith.divf %250, %251 : vector<8x128xf32>
    %253 = vector.extract_strided_slice %236 {offsets = [0, 256], sizes = [8, 128], strides = [1, 1]} : vector<8x384xf32> to vector<8x128xf32>
    %254 = vector.extract_strided_slice %233 {offsets = [0, 256], sizes = [8, 128], strides = [1, 1]} : vector<8x384xf32> to vector<8x128xf32>
    %255 = arith.addf %254, %6 : vector<8x128xf32>
    %256 = arith.mulf %244, %255 : vector<8x128xf32>
    %257 = arith.addf %253, %256 : vector<8x128xf32>
    %258 = math.tanh %257 : vector<8x128xf32>
    %259 = arith.subf %224, %258 : vector<8x128xf32>
    %260 = arith.mulf %252, %259 : vector<8x128xf32>
    %261 = arith.addf %258, %260 : vector<8x128xf32>
    %262 = arith.truncf %261 : vector<8x128xf32> to vector<8x128xbf16>
    %263 = arith.index_cast %231 : i32 to index
    %c0_60 = arith.constant 0 : index
    %c0_61 = arith.constant 0 : index
    %264 = vector.load %arg4[%263, %c0_60, %c0_61] : memref<8x8x128xbf16, #tpu.memory_space<vmem>>, vector<1x8x128xbf16>
    %265 = vector.shape_cast %264 : vector<1x8x128xbf16> to vector<8x128xbf16>
    %266 = vector.shape_cast %262 : vector<8x128xbf16> to vector<1x8x128xbf16>
    tpu.vector_store %arg4[%263, %c0_60, %c0_61], %266 {strides = array<i32>} : memref<8x8x128xbf16, #tpu.memory_space<vmem>>, vector<1x8x128xbf16>,
    %c7_i32 = arith.constant 7 : i32
    %c8_i32_62 = arith.constant 8 : i32
    %267 = arith.muli %c0_i32_6, %c8_i32_62 : i32
    %268 = arith.addi %267, %c7_i32 : i32
    %269 = arith.truncf %261 : vector<8x128xf32> to vector<8x128xbf16>
    %cst_63 = arith.constant dense<0.000000e+00> : vector<8x384xf32>
    %270 = tpu.matmul %269, %3, %cst_63 {dimension_numbers = #tpu.dot_dimension_numbers<[1], [0], [0], [1], [0, 0, 1, 1], [], []>} : vector<8x128xbf16>, vector<128x384xbf16>, vector<8x384xf32> -> vector<8x384xf32>
    %271 = arith.index_cast %268 : i32 to index
    %c0_64 = arith.constant 0 : index
    %c0_65 = arith.constant 0 : index
    %272 = vector.load %arg1[%271, %c0_64, %c0_65] : memref<8x8x384xf32, #tpu.memory_space<vmem>>, vector<1x8x384xf32>
    %273 = vector.shape_cast %272 : vector<1x8x384xf32> to vector<8x384xf32>
    %274 = vector.extract_strided_slice %273 {offsets = [0, 0], sizes = [8, 128], strides = [1, 1]} : vector<8x384xf32> to vector<8x128xf32>
    %275 = vector.extract_strided_slice %270 {offsets = [0, 0], sizes = [8, 128], strides = [1, 1]} : vector<8x384xf32> to vector<8x128xf32>
    %276 = arith.addf %274, %275 : vector<8x128xf32>
    %277 = arith.negf %276 : vector<8x128xf32>
    %278 = math.exp %277 : vector<8x128xf32>
    %cst_66 = arith.constant 1.000000e+00 : f32
    %279 = vector.broadcast %cst_66 : f32 to vector<8x128xf32>
    %280 = arith.addf %279, %278 : vector<8x128xf32>
    %281 = arith.divf %279, %280 : vector<8x128xf32>
    %282 = vector.extract_strided_slice %273 {offsets = [0, 128], sizes = [8, 128], strides = [1, 1]} : vector<8x384xf32> to vector<8x128xf32>
    %283 = vector.extract_strided_slice %270 {offsets = [0, 128], sizes = [8, 128], strides = [1, 1]} : vector<8x384xf32> to vector<8x128xf32>
    %284 = arith.addf %282, %283 : vector<8x128xf32>
    %285 = arith.negf %284 : vector<8x128xf32>
    %286 = math.exp %285 : vector<8x128xf32>
    %cst_67 = arith.constant 1.000000e+00 : f32
    %287 = vector.broadcast %cst_67 : f32 to vector<8x128xf32>
    %288 = arith.addf %287, %286 : vector<8x128xf32>
    %289 = arith.divf %287, %288 : vector<8x128xf32>
    %290 = vector.extract_strided_slice %273 {offsets = [0, 256], sizes = [8, 128], strides = [1, 1]} : vector<8x384xf32> to vector<8x128xf32>
    %291 = vector.extract_strided_slice %270 {offsets = [0, 256], sizes = [8, 128], strides = [1, 1]} : vector<8x384xf32> to vector<8x128xf32>
    %292 = arith.addf %291, %6 : vector<8x128xf32>
    %293 = arith.mulf %281, %292 : vector<8x128xf32>
    %294 = arith.addf %290, %293 : vector<8x128xf32>
    %295 = math.tanh %294 : vector<8x128xf32>
    %296 = arith.subf %261, %295 : vector<8x128xf32>
    %297 = arith.mulf %289, %296 : vector<8x128xf32>
    %298 = arith.addf %295, %297 : vector<8x128xf32>
    %299 = arith.truncf %298 : vector<8x128xf32> to vector<8x128xbf16>
    %300 = arith.index_cast %268 : i32 to index
    %c0_68 = arith.constant 0 : index
    %c0_69 = arith.constant 0 : index
    %301 = vector.load %arg4[%300, %c0_68, %c0_69] : memref<8x8x128xbf16, #tpu.memory_space<vmem>>, vector<1x8x128xbf16>
    %302 = vector.shape_cast %301 : vector<1x8x128xbf16> to vector<8x128xbf16>
    %303 = vector.shape_cast %299 : vector<8x128xbf16> to vector<1x8x128xbf16>
    tpu.vector_store %arg4[%300, %c0_68, %c0_69], %303 {strides = array<i32>} : memref<8x8x128xbf16, #tpu.memory_space<vmem>>, vector<1x8x128xbf16>,
    %c8_i32_70 = arith.constant 8 : i32
    %c1_i32_71 = arith.constant 1 : i32
    %c0_72 = arith.constant 0 : index
    %c0_73 = arith.constant 0 : index
    %304 = vector.load %arg5[%c0_72, %c0_73] : memref<8x128xf32, #tpu.memory_space<vmem>>, vector<8x128xf32>
    tpu.vector_store %arg5[%c0_72, %c0_73], %298 {strides = array<i32>} : memref<8x128xf32, #tpu.memory_space<vmem>>, vector<8x128xf32>,
    return
  }
  func.func @transform_0(%arg0: i32) -> (i32, i32, i32) {
    %c0_i32 = arith.constant 0 : i32
    %c0_i32_0 = arith.constant 0 : i32
    %c0_i32_1 = arith.constant 0 : i32
    return %arg0, %c0_i32, %c0_i32_0 : i32, i32, i32
  }
  func.func @transform_1(%arg0: i32) -> (i32, i32) {
    %c0_i32 = arith.constant 0 : i32
    %c0_i32_0 = arith.constant 0 : i32
    %c0_i32_1 = arith.constant 0 : i32
    return %c0_i32, %c0_i32_0 : i32, i32
  }
  func.func @transform_2(%arg0: i32) -> (i32, i32) {
    %c0_i32 = arith.constant 0 : i32
    %c0_i32_0 = arith.constant 0 : i32
    %c0_i32_1 = arith.constant 0 : i32
    return %c0_i32, %c0_i32_0 : i32, i32
  }
  func.func @transform_3(%arg0: i32) -> (i32, i32, i32) {
    %c0_i32 = arith.constant 0 : i32
    %c0_i32_0 = arith.constant 0 : i32
    %c0_i32_1 = arith.constant 0 : i32
    return %arg0, %c0_i32, %c0_i32_0 : i32, i32, i32
  }
}

module attributes {stable_mosaic.version = 11 : i64} {
  func.func @gru_chunk_kernel(%arg0: i32, %arg1: memref<8x8x384xf32, #tpu.memory_space<vmem>>, %arg2: memref<128x384xbf16, #tpu.memory_space<vmem>>, %arg3: memref<1x128xf32, #tpu.memory_space<vmem>>, %arg4: memref<8x8x128xf32, #tpu.memory_space<vmem>>, %arg5: memref<8x128xf32, #tpu.memory_space<vmem>>) attributes {dimension_semantics = [#tpu.dimension_semantics<arbitrary>], iteration_bounds = array<i64: 1>, scalar_prefetch = 0 : i64, scratch_operands = 1 : i64, tpu.core_type = #tpu.core_type<tc>, window_params = [{transform_indices = @transform_0, window_bounds = array<i64: 8, 8, 384>}, {pipeline_mode = #tpu.pipeline_mode<synchronous>, transform_indices = @transform_1, window_bounds = array<i64: 128, 384>}, {pipeline_mode = #tpu.pipeline_mode<synchronous>, transform_indices = @transform_2, window_bounds = array<i64: 1, 128>}, {transform_indices = @transform_3, window_bounds = array<i64: 8, 8, 128>}]} {
    %c0_i32 = arith.constant 0 : i32
    %0 = arith.cmpi eq, %arg0, %c0_i32 : i32
    %1 = arith.extui %0 : i1 to i32
    %c0_i32_0 = arith.constant 0 : i32
    %2 = arith.cmpi ne, %1, %c0_i32_0 : i32
    scf.if %2 {
      %cst_74 = arith.constant 0.000000e+00 : f32
      %297 = vector.broadcast %cst_74 : f32 to vector<8x128xf32>
      %c0_75 = arith.constant 0 : index
      %c0_76 = arith.constant 0 : index
      %298 = vector.load %arg5[%c0_75, %c0_76] : memref<8x128xf32, #tpu.memory_space<vmem>>, vector<8x128xf32>
      tpu.vector_store %arg5[%c0_75, %c0_76], %297 {strides = array<i32>} : memref<8x128xf32, #tpu.memory_space<vmem>>, vector<8x128xf32>,
    } else {
    }
    %c0 = arith.constant 0 : index
    %c0_1 = arith.constant 0 : index
    %3 = vector.load %arg2[%c0, %c0_1] : memref<128x384xbf16, #tpu.memory_space<vmem>>, vector<128x384xbf16>
    %c0_2 = arith.constant 0 : index
    %c0_3 = arith.constant 0 : index
    %4 = vector.load %arg3[%c0_2, %c0_3] : memref<1x128xf32, #tpu.memory_space<vmem>>, vector<1x128xf32>
    %5 = vector.shape_cast %4 : vector<1x128xf32> to vector<1x128xf32>
    %6 = vector.broadcast %5 : vector<1x128xf32> to vector<8x128xf32>
    %c0_4 = arith.constant 0 : index
    %c0_5 = arith.constant 0 : index
    %7 = vector.load %arg5[%c0_4, %c0_5] : memref<8x128xf32, #tpu.memory_space<vmem>>, vector<8x128xf32>
    %c0_i32_6 = arith.constant 0 : i32
    %c0_i32_7 = arith.constant 0 : i32
    %c8_i32 = arith.constant 8 : i32
    %8 = arith.muli %c0_i32_6, %c8_i32 : i32
    %9 = arith.addi %8, %c0_i32_7 : i32
    %10 = arith.truncf %7 : vector<8x128xf32> to vector<8x128xbf16>
    %cst = arith.constant dense<0.000000e+00> : vector<8x384xf32>
    %11 = tpu.matmul %10, %3, %cst {dimension_numbers = #tpu.dot_dimension_numbers<[1], [0], [0], [1], [0, 0, 1, 1], [], []>} : vector<8x128xbf16>, vector<128x384xbf16>, vector<8x384xf32> -> vector<8x384xf32>
    %12 = arith.index_cast %9 : i32 to index
    %c0_8 = arith.constant 0 : index
    %c0_9 = arith.constant 0 : index
    %13 = vector.load %arg1[%12, %c0_8, %c0_9] : memref<8x8x384xf32, #tpu.memory_space<vmem>>, vector<1x8x384xf32>
    %14 = vector.shape_cast %13 : vector<1x8x384xf32> to vector<8x384xf32>
    %15 = vector.extract_strided_slice %14 {offsets = [0, 0], sizes = [8, 128], strides = [1, 1]} : vector<8x384xf32> to vector<8x128xf32>
    %16 = vector.extract_strided_slice %11 {offsets = [0, 0], sizes = [8, 128], strides = [1, 1]} : vector<8x384xf32> to vector<8x128xf32>
    %17 = arith.addf %15, %16 : vector<8x128xf32>
    %18 = arith.negf %17 : vector<8x128xf32>
    %19 = math.exp %18 : vector<8x128xf32>
    %cst_10 = arith.constant 1.000000e+00 : f32
    %20 = vector.broadcast %cst_10 : f32 to vector<8x128xf32>
    %21 = arith.addf %20, %19 : vector<8x128xf32>
    %22 = arith.divf %20, %21 : vector<8x128xf32>
    %23 = vector.extract_strided_slice %14 {offsets = [0, 128], sizes = [8, 128], strides = [1, 1]} : vector<8x384xf32> to vector<8x128xf32>
    %24 = vector.extract_strided_slice %11 {offsets = [0, 128], sizes = [8, 128], strides = [1, 1]} : vector<8x384xf32> to vector<8x128xf32>
    %25 = arith.addf %23, %24 : vector<8x128xf32>
    %26 = arith.negf %25 : vector<8x128xf32>
    %27 = math.exp %26 : vector<8x128xf32>
    %cst_11 = arith.constant 1.000000e+00 : f32
    %28 = vector.broadcast %cst_11 : f32 to vector<8x128xf32>
    %29 = arith.addf %28, %27 : vector<8x128xf32>
    %30 = arith.divf %28, %29 : vector<8x128xf32>
    %31 = vector.extract_strided_slice %14 {offsets = [0, 256], sizes = [8, 128], strides = [1, 1]} : vector<8x384xf32> to vector<8x128xf32>
    %32 = vector.extract_strided_slice %11 {offsets = [0, 256], sizes = [8, 128], strides = [1, 1]} : vector<8x384xf32> to vector<8x128xf32>
    %33 = arith.addf %32, %6 : vector<8x128xf32>
    %34 = arith.mulf %22, %33 : vector<8x128xf32>
    %35 = arith.addf %31, %34 : vector<8x128xf32>
    %36 = math.tanh %35 : vector<8x128xf32>
    %37 = arith.subf %7, %36 : vector<8x128xf32>
    %38 = arith.mulf %30, %37 : vector<8x128xf32>
    %39 = arith.addf %36, %38 : vector<8x128xf32>
    %40 = arith.index_cast %9 : i32 to index
    %c0_12 = arith.constant 0 : index
    %c0_13 = arith.constant 0 : index
    %41 = vector.load %arg4[%40, %c0_12, %c0_13] : memref<8x8x128xf32, #tpu.memory_space<vmem>>, vector<1x8x128xf32>
    %42 = vector.shape_cast %41 : vector<1x8x128xf32> to vector<8x128xf32>
    %43 = vector.shape_cast %39 : vector<8x128xf32> to vector<1x8x128xf32>
    tpu.vector_store %arg4[%40, %c0_12, %c0_13], %43 {strides = array<i32>} : memref<8x8x128xf32, #tpu.memory_space<vmem>>, vector<1x8x128xf32>,
    %c1_i32 = arith.constant 1 : i32
    %c8_i32_14 = arith.constant 8 : i32
    %44 = arith.muli %c0_i32_6, %c8_i32_14 : i32
    %45 = arith.addi %44, %c1_i32 : i32
    %46 = arith.truncf %39 : vector<8x128xf32> to vector<8x128xbf16>
    %cst_15 = arith.constant dense<0.000000e+00> : vector<8x384xf32>
    %47 = tpu.matmul %46, %3, %cst_15 {dimension_numbers = #tpu.dot_dimension_numbers<[1], [0], [0], [1], [0, 0, 1, 1], [], []>} : vector<8x128xbf16>, vector<128x384xbf16>, vector<8x384xf32> -> vector<8x384xf32>
    %48 = arith.index_cast %45 : i32 to index
    %c0_16 = arith.constant 0 : index
    %c0_17 = arith.constant 0 : index
    %49 = vector.load %arg1[%48, %c0_16, %c0_17] : memref<8x8x384xf32, #tpu.memory_space<vmem>>, vector<1x8x384xf32>
    %50 = vector.shape_cast %49 : vector<1x8x384xf32> to vector<8x384xf32>
    %51 = vector.extract_strided_slice %50 {offsets = [0, 0], sizes = [8, 128], strides = [1, 1]} : vector<8x384xf32> to vector<8x128xf32>
    %52 = vector.extract_strided_slice %47 {offsets = [0, 0], sizes = [8, 128], strides = [1, 1]} : vector<8x384xf32> to vector<8x128xf32>
    %53 = arith.addf %51, %52 : vector<8x128xf32>
    %54 = arith.negf %53 : vector<8x128xf32>
    %55 = math.exp %54 : vector<8x128xf32>
    %cst_18 = arith.constant 1.000000e+00 : f32
    %56 = vector.broadcast %cst_18 : f32 to vector<8x128xf32>
    %57 = arith.addf %56, %55 : vector<8x128xf32>
    %58 = arith.divf %56, %57 : vector<8x128xf32>
    %59 = vector.extract_strided_slice %50 {offsets = [0, 128], sizes = [8, 128], strides = [1, 1]} : vector<8x384xf32> to vector<8x128xf32>
    %60 = vector.extract_strided_slice %47 {offsets = [0, 128], sizes = [8, 128], strides = [1, 1]} : vector<8x384xf32> to vector<8x128xf32>
    %61 = arith.addf %59, %60 : vector<8x128xf32>
    %62 = arith.negf %61 : vector<8x128xf32>
    %63 = math.exp %62 : vector<8x128xf32>
    %cst_19 = arith.constant 1.000000e+00 : f32
    %64 = vector.broadcast %cst_19 : f32 to vector<8x128xf32>
    %65 = arith.addf %64, %63 : vector<8x128xf32>
    %66 = arith.divf %64, %65 : vector<8x128xf32>
    %67 = vector.extract_strided_slice %50 {offsets = [0, 256], sizes = [8, 128], strides = [1, 1]} : vector<8x384xf32> to vector<8x128xf32>
    %68 = vector.extract_strided_slice %47 {offsets = [0, 256], sizes = [8, 128], strides = [1, 1]} : vector<8x384xf32> to vector<8x128xf32>
    %69 = arith.addf %68, %6 : vector<8x128xf32>
    %70 = arith.mulf %58, %69 : vector<8x128xf32>
    %71 = arith.addf %67, %70 : vector<8x128xf32>
    %72 = math.tanh %71 : vector<8x128xf32>
    %73 = arith.subf %39, %72 : vector<8x128xf32>
    %74 = arith.mulf %66, %73 : vector<8x128xf32>
    %75 = arith.addf %72, %74 : vector<8x128xf32>
    %76 = arith.index_cast %45 : i32 to index
    %c0_20 = arith.constant 0 : index
    %c0_21 = arith.constant 0 : index
    %77 = vector.load %arg4[%76, %c0_20, %c0_21] : memref<8x8x128xf32, #tpu.memory_space<vmem>>, vector<1x8x128xf32>
    %78 = vector.shape_cast %77 : vector<1x8x128xf32> to vector<8x128xf32>
    %79 = vector.shape_cast %75 : vector<8x128xf32> to vector<1x8x128xf32>
    tpu.vector_store %arg4[%76, %c0_20, %c0_21], %79 {strides = array<i32>} : memref<8x8x128xf32, #tpu.memory_space<vmem>>, vector<1x8x128xf32>,
    %c2_i32 = arith.constant 2 : i32
    %c8_i32_22 = arith.constant 8 : i32
    %80 = arith.muli %c0_i32_6, %c8_i32_22 : i32
    %81 = arith.addi %80, %c2_i32 : i32
    %82 = arith.truncf %75 : vector<8x128xf32> to vector<8x128xbf16>
    %cst_23 = arith.constant dense<0.000000e+00> : vector<8x384xf32>
    %83 = tpu.matmul %82, %3, %cst_23 {dimension_numbers = #tpu.dot_dimension_numbers<[1], [0], [0], [1], [0, 0, 1, 1], [], []>} : vector<8x128xbf16>, vector<128x384xbf16>, vector<8x384xf32> -> vector<8x384xf32>
    %84 = arith.index_cast %81 : i32 to index
    %c0_24 = arith.constant 0 : index
    %c0_25 = arith.constant 0 : index
    %85 = vector.load %arg1[%84, %c0_24, %c0_25] : memref<8x8x384xf32, #tpu.memory_space<vmem>>, vector<1x8x384xf32>
    %86 = vector.shape_cast %85 : vector<1x8x384xf32> to vector<8x384xf32>
    %87 = vector.extract_strided_slice %86 {offsets = [0, 0], sizes = [8, 128], strides = [1, 1]} : vector<8x384xf32> to vector<8x128xf32>
    %88 = vector.extract_strided_slice %83 {offsets = [0, 0], sizes = [8, 128], strides = [1, 1]} : vector<8x384xf32> to vector<8x128xf32>
    %89 = arith.addf %87, %88 : vector<8x128xf32>
    %90 = arith.negf %89 : vector<8x128xf32>
    %91 = math.exp %90 : vector<8x128xf32>
    %cst_26 = arith.constant 1.000000e+00 : f32
    %92 = vector.broadcast %cst_26 : f32 to vector<8x128xf32>
    %93 = arith.addf %92, %91 : vector<8x128xf32>
    %94 = arith.divf %92, %93 : vector<8x128xf32>
    %95 = vector.extract_strided_slice %86 {offsets = [0, 128], sizes = [8, 128], strides = [1, 1]} : vector<8x384xf32> to vector<8x128xf32>
    %96 = vector.extract_strided_slice %83 {offsets = [0, 128], sizes = [8, 128], strides = [1, 1]} : vector<8x384xf32> to vector<8x128xf32>
    %97 = arith.addf %95, %96 : vector<8x128xf32>
    %98 = arith.negf %97 : vector<8x128xf32>
    %99 = math.exp %98 : vector<8x128xf32>
    %cst_27 = arith.constant 1.000000e+00 : f32
    %100 = vector.broadcast %cst_27 : f32 to vector<8x128xf32>
    %101 = arith.addf %100, %99 : vector<8x128xf32>
    %102 = arith.divf %100, %101 : vector<8x128xf32>
    %103 = vector.extract_strided_slice %86 {offsets = [0, 256], sizes = [8, 128], strides = [1, 1]} : vector<8x384xf32> to vector<8x128xf32>
    %104 = vector.extract_strided_slice %83 {offsets = [0, 256], sizes = [8, 128], strides = [1, 1]} : vector<8x384xf32> to vector<8x128xf32>
    %105 = arith.addf %104, %6 : vector<8x128xf32>
    %106 = arith.mulf %94, %105 : vector<8x128xf32>
    %107 = arith.addf %103, %106 : vector<8x128xf32>
    %108 = math.tanh %107 : vector<8x128xf32>
    %109 = arith.subf %75, %108 : vector<8x128xf32>
    %110 = arith.mulf %102, %109 : vector<8x128xf32>
    %111 = arith.addf %108, %110 : vector<8x128xf32>
    %112 = arith.index_cast %81 : i32 to index
    %c0_28 = arith.constant 0 : index
    %c0_29 = arith.constant 0 : index
    %113 = vector.load %arg4[%112, %c0_28, %c0_29] : memref<8x8x128xf32, #tpu.memory_space<vmem>>, vector<1x8x128xf32>
    %114 = vector.shape_cast %113 : vector<1x8x128xf32> to vector<8x128xf32>
    %115 = vector.shape_cast %111 : vector<8x128xf32> to vector<1x8x128xf32>
    tpu.vector_store %arg4[%112, %c0_28, %c0_29], %115 {strides = array<i32>} : memref<8x8x128xf32, #tpu.memory_space<vmem>>, vector<1x8x128xf32>,
    %c3_i32 = arith.constant 3 : i32
    %c8_i32_30 = arith.constant 8 : i32
    %116 = arith.muli %c0_i32_6, %c8_i32_30 : i32
    %117 = arith.addi %116, %c3_i32 : i32
    %118 = arith.truncf %111 : vector<8x128xf32> to vector<8x128xbf16>
    %cst_31 = arith.constant dense<0.000000e+00> : vector<8x384xf32>
    %119 = tpu.matmul %118, %3, %cst_31 {dimension_numbers = #tpu.dot_dimension_numbers<[1], [0], [0], [1], [0, 0, 1, 1], [], []>} : vector<8x128xbf16>, vector<128x384xbf16>, vector<8x384xf32> -> vector<8x384xf32>
    %120 = arith.index_cast %117 : i32 to index
    %c0_32 = arith.constant 0 : index
    %c0_33 = arith.constant 0 : index
    %121 = vector.load %arg1[%120, %c0_32, %c0_33] : memref<8x8x384xf32, #tpu.memory_space<vmem>>, vector<1x8x384xf32>
    %122 = vector.shape_cast %121 : vector<1x8x384xf32> to vector<8x384xf32>
    %123 = vector.extract_strided_slice %122 {offsets = [0, 0], sizes = [8, 128], strides = [1, 1]} : vector<8x384xf32> to vector<8x128xf32>
    %124 = vector.extract_strided_slice %119 {offsets = [0, 0], sizes = [8, 128], strides = [1, 1]} : vector<8x384xf32> to vector<8x128xf32>
    %125 = arith.addf %123, %124 : vector<8x128xf32>
    %126 = arith.negf %125 : vector<8x128xf32>
    %127 = math.exp %126 : vector<8x128xf32>
    %cst_34 = arith.constant 1.000000e+00 : f32
    %128 = vector.broadcast %cst_34 : f32 to vector<8x128xf32>
    %129 = arith.addf %128, %127 : vector<8x128xf32>
    %130 = arith.divf %128, %129 : vector<8x128xf32>
    %131 = vector.extract_strided_slice %122 {offsets = [0, 128], sizes = [8, 128], strides = [1, 1]} : vector<8x384xf32> to vector<8x128xf32>
    %132 = vector.extract_strided_slice %119 {offsets = [0, 128], sizes = [8, 128], strides = [1, 1]} : vector<8x384xf32> to vector<8x128xf32>
    %133 = arith.addf %131, %132 : vector<8x128xf32>
    %134 = arith.negf %133 : vector<8x128xf32>
    %135 = math.exp %134 : vector<8x128xf32>
    %cst_35 = arith.constant 1.000000e+00 : f32
    %136 = vector.broadcast %cst_35 : f32 to vector<8x128xf32>
    %137 = arith.addf %136, %135 : vector<8x128xf32>
    %138 = arith.divf %136, %137 : vector<8x128xf32>
    %139 = vector.extract_strided_slice %122 {offsets = [0, 256], sizes = [8, 128], strides = [1, 1]} : vector<8x384xf32> to vector<8x128xf32>
    %140 = vector.extract_strided_slice %119 {offsets = [0, 256], sizes = [8, 128], strides = [1, 1]} : vector<8x384xf32> to vector<8x128xf32>
    %141 = arith.addf %140, %6 : vector<8x128xf32>
    %142 = arith.mulf %130, %141 : vector<8x128xf32>
    %143 = arith.addf %139, %142 : vector<8x128xf32>
    %144 = math.tanh %143 : vector<8x128xf32>
    %145 = arith.subf %111, %144 : vector<8x128xf32>
    %146 = arith.mulf %138, %145 : vector<8x128xf32>
    %147 = arith.addf %144, %146 : vector<8x128xf32>
    %148 = arith.index_cast %117 : i32 to index
    %c0_36 = arith.constant 0 : index
    %c0_37 = arith.constant 0 : index
    %149 = vector.load %arg4[%148, %c0_36, %c0_37] : memref<8x8x128xf32, #tpu.memory_space<vmem>>, vector<1x8x128xf32>
    %150 = vector.shape_cast %149 : vector<1x8x128xf32> to vector<8x128xf32>
    %151 = vector.shape_cast %147 : vector<8x128xf32> to vector<1x8x128xf32>
    tpu.vector_store %arg4[%148, %c0_36, %c0_37], %151 {strides = array<i32>} : memref<8x8x128xf32, #tpu.memory_space<vmem>>, vector<1x8x128xf32>,
    %c4_i32 = arith.constant 4 : i32
    %c8_i32_38 = arith.constant 8 : i32
    %152 = arith.muli %c0_i32_6, %c8_i32_38 : i32
    %153 = arith.addi %152, %c4_i32 : i32
    %154 = arith.truncf %147 : vector<8x128xf32> to vector<8x128xbf16>
    %cst_39 = arith.constant dense<0.000000e+00> : vector<8x384xf32>
    %155 = tpu.matmul %154, %3, %cst_39 {dimension_numbers = #tpu.dot_dimension_numbers<[1], [0], [0], [1], [0, 0, 1, 1], [], []>} : vector<8x128xbf16>, vector<128x384xbf16>, vector<8x384xf32> -> vector<8x384xf32>
    %156 = arith.index_cast %153 : i32 to index
    %c0_40 = arith.constant 0 : index
    %c0_41 = arith.constant 0 : index
    %157 = vector.load %arg1[%156, %c0_40, %c0_41] : memref<8x8x384xf32, #tpu.memory_space<vmem>>, vector<1x8x384xf32>
    %158 = vector.shape_cast %157 : vector<1x8x384xf32> to vector<8x384xf32>
    %159 = vector.extract_strided_slice %158 {offsets = [0, 0], sizes = [8, 128], strides = [1, 1]} : vector<8x384xf32> to vector<8x128xf32>
    %160 = vector.extract_strided_slice %155 {offsets = [0, 0], sizes = [8, 128], strides = [1, 1]} : vector<8x384xf32> to vector<8x128xf32>
    %161 = arith.addf %159, %160 : vector<8x128xf32>
    %162 = arith.negf %161 : vector<8x128xf32>
    %163 = math.exp %162 : vector<8x128xf32>
    %cst_42 = arith.constant 1.000000e+00 : f32
    %164 = vector.broadcast %cst_42 : f32 to vector<8x128xf32>
    %165 = arith.addf %164, %163 : vector<8x128xf32>
    %166 = arith.divf %164, %165 : vector<8x128xf32>
    %167 = vector.extract_strided_slice %158 {offsets = [0, 128], sizes = [8, 128], strides = [1, 1]} : vector<8x384xf32> to vector<8x128xf32>
    %168 = vector.extract_strided_slice %155 {offsets = [0, 128], sizes = [8, 128], strides = [1, 1]} : vector<8x384xf32> to vector<8x128xf32>
    %169 = arith.addf %167, %168 : vector<8x128xf32>
    %170 = arith.negf %169 : vector<8x128xf32>
    %171 = math.exp %170 : vector<8x128xf32>
    %cst_43 = arith.constant 1.000000e+00 : f32
    %172 = vector.broadcast %cst_43 : f32 to vector<8x128xf32>
    %173 = arith.addf %172, %171 : vector<8x128xf32>
    %174 = arith.divf %172, %173 : vector<8x128xf32>
    %175 = vector.extract_strided_slice %158 {offsets = [0, 256], sizes = [8, 128], strides = [1, 1]} : vector<8x384xf32> to vector<8x128xf32>
    %176 = vector.extract_strided_slice %155 {offsets = [0, 256], sizes = [8, 128], strides = [1, 1]} : vector<8x384xf32> to vector<8x128xf32>
    %177 = arith.addf %176, %6 : vector<8x128xf32>
    %178 = arith.mulf %166, %177 : vector<8x128xf32>
    %179 = arith.addf %175, %178 : vector<8x128xf32>
    %180 = math.tanh %179 : vector<8x128xf32>
    %181 = arith.subf %147, %180 : vector<8x128xf32>
    %182 = arith.mulf %174, %181 : vector<8x128xf32>
    %183 = arith.addf %180, %182 : vector<8x128xf32>
    %184 = arith.index_cast %153 : i32 to index
    %c0_44 = arith.constant 0 : index
    %c0_45 = arith.constant 0 : index
    %185 = vector.load %arg4[%184, %c0_44, %c0_45] : memref<8x8x128xf32, #tpu.memory_space<vmem>>, vector<1x8x128xf32>
    %186 = vector.shape_cast %185 : vector<1x8x128xf32> to vector<8x128xf32>
    %187 = vector.shape_cast %183 : vector<8x128xf32> to vector<1x8x128xf32>
    tpu.vector_store %arg4[%184, %c0_44, %c0_45], %187 {strides = array<i32>} : memref<8x8x128xf32, #tpu.memory_space<vmem>>, vector<1x8x128xf32>,
    %c5_i32 = arith.constant 5 : i32
    %c8_i32_46 = arith.constant 8 : i32
    %188 = arith.muli %c0_i32_6, %c8_i32_46 : i32
    %189 = arith.addi %188, %c5_i32 : i32
    %190 = arith.truncf %183 : vector<8x128xf32> to vector<8x128xbf16>
    %cst_47 = arith.constant dense<0.000000e+00> : vector<8x384xf32>
    %191 = tpu.matmul %190, %3, %cst_47 {dimension_numbers = #tpu.dot_dimension_numbers<[1], [0], [0], [1], [0, 0, 1, 1], [], []>} : vector<8x128xbf16>, vector<128x384xbf16>, vector<8x384xf32> -> vector<8x384xf32>
    %192 = arith.index_cast %189 : i32 to index
    %c0_48 = arith.constant 0 : index
    %c0_49 = arith.constant 0 : index
    %193 = vector.load %arg1[%192, %c0_48, %c0_49] : memref<8x8x384xf32, #tpu.memory_space<vmem>>, vector<1x8x384xf32>
    %194 = vector.shape_cast %193 : vector<1x8x384xf32> to vector<8x384xf32>
    %195 = vector.extract_strided_slice %194 {offsets = [0, 0], sizes = [8, 128], strides = [1, 1]} : vector<8x384xf32> to vector<8x128xf32>
    %196 = vector.extract_strided_slice %191 {offsets = [0, 0], sizes = [8, 128], strides = [1, 1]} : vector<8x384xf32> to vector<8x128xf32>
    %197 = arith.addf %195, %196 : vector<8x128xf32>
    %198 = arith.negf %197 : vector<8x128xf32>
    %199 = math.exp %198 : vector<8x128xf32>
    %cst_50 = arith.constant 1.000000e+00 : f32
    %200 = vector.broadcast %cst_50 : f32 to vector<8x128xf32>
    %201 = arith.addf %200, %199 : vector<8x128xf32>
    %202 = arith.divf %200, %201 : vector<8x128xf32>
    %203 = vector.extract_strided_slice %194 {offsets = [0, 128], sizes = [8, 128], strides = [1, 1]} : vector<8x384xf32> to vector<8x128xf32>
    %204 = vector.extract_strided_slice %191 {offsets = [0, 128], sizes = [8, 128], strides = [1, 1]} : vector<8x384xf32> to vector<8x128xf32>
    %205 = arith.addf %203, %204 : vector<8x128xf32>
    %206 = arith.negf %205 : vector<8x128xf32>
    %207 = math.exp %206 : vector<8x128xf32>
    %cst_51 = arith.constant 1.000000e+00 : f32
    %208 = vector.broadcast %cst_51 : f32 to vector<8x128xf32>
    %209 = arith.addf %208, %207 : vector<8x128xf32>
    %210 = arith.divf %208, %209 : vector<8x128xf32>
    %211 = vector.extract_strided_slice %194 {offsets = [0, 256], sizes = [8, 128], strides = [1, 1]} : vector<8x384xf32> to vector<8x128xf32>
    %212 = vector.extract_strided_slice %191 {offsets = [0, 256], sizes = [8, 128], strides = [1, 1]} : vector<8x384xf32> to vector<8x128xf32>
    %213 = arith.addf %212, %6 : vector<8x128xf32>
    %214 = arith.mulf %202, %213 : vector<8x128xf32>
    %215 = arith.addf %211, %214 : vector<8x128xf32>
    %216 = math.tanh %215 : vector<8x128xf32>
    %217 = arith.subf %183, %216 : vector<8x128xf32>
    %218 = arith.mulf %210, %217 : vector<8x128xf32>
    %219 = arith.addf %216, %218 : vector<8x128xf32>
    %220 = arith.index_cast %189 : i32 to index
    %c0_52 = arith.constant 0 : index
    %c0_53 = arith.constant 0 : index
    %221 = vector.load %arg4[%220, %c0_52, %c0_53] : memref<8x8x128xf32, #tpu.memory_space<vmem>>, vector<1x8x128xf32>
    %222 = vector.shape_cast %221 : vector<1x8x128xf32> to vector<8x128xf32>
    %223 = vector.shape_cast %219 : vector<8x128xf32> to vector<1x8x128xf32>
    tpu.vector_store %arg4[%220, %c0_52, %c0_53], %223 {strides = array<i32>} : memref<8x8x128xf32, #tpu.memory_space<vmem>>, vector<1x8x128xf32>,
    %c6_i32 = arith.constant 6 : i32
    %c8_i32_54 = arith.constant 8 : i32
    %224 = arith.muli %c0_i32_6, %c8_i32_54 : i32
    %225 = arith.addi %224, %c6_i32 : i32
    %226 = arith.truncf %219 : vector<8x128xf32> to vector<8x128xbf16>
    %cst_55 = arith.constant dense<0.000000e+00> : vector<8x384xf32>
    %227 = tpu.matmul %226, %3, %cst_55 {dimension_numbers = #tpu.dot_dimension_numbers<[1], [0], [0], [1], [0, 0, 1, 1], [], []>} : vector<8x128xbf16>, vector<128x384xbf16>, vector<8x384xf32> -> vector<8x384xf32>
    %228 = arith.index_cast %225 : i32 to index
    %c0_56 = arith.constant 0 : index
    %c0_57 = arith.constant 0 : index
    %229 = vector.load %arg1[%228, %c0_56, %c0_57] : memref<8x8x384xf32, #tpu.memory_space<vmem>>, vector<1x8x384xf32>
    %230 = vector.shape_cast %229 : vector<1x8x384xf32> to vector<8x384xf32>
    %231 = vector.extract_strided_slice %230 {offsets = [0, 0], sizes = [8, 128], strides = [1, 1]} : vector<8x384xf32> to vector<8x128xf32>
    %232 = vector.extract_strided_slice %227 {offsets = [0, 0], sizes = [8, 128], strides = [1, 1]} : vector<8x384xf32> to vector<8x128xf32>
    %233 = arith.addf %231, %232 : vector<8x128xf32>
    %234 = arith.negf %233 : vector<8x128xf32>
    %235 = math.exp %234 : vector<8x128xf32>
    %cst_58 = arith.constant 1.000000e+00 : f32
    %236 = vector.broadcast %cst_58 : f32 to vector<8x128xf32>
    %237 = arith.addf %236, %235 : vector<8x128xf32>
    %238 = arith.divf %236, %237 : vector<8x128xf32>
    %239 = vector.extract_strided_slice %230 {offsets = [0, 128], sizes = [8, 128], strides = [1, 1]} : vector<8x384xf32> to vector<8x128xf32>
    %240 = vector.extract_strided_slice %227 {offsets = [0, 128], sizes = [8, 128], strides = [1, 1]} : vector<8x384xf32> to vector<8x128xf32>
    %241 = arith.addf %239, %240 : vector<8x128xf32>
    %242 = arith.negf %241 : vector<8x128xf32>
    %243 = math.exp %242 : vector<8x128xf32>
    %cst_59 = arith.constant 1.000000e+00 : f32
    %244 = vector.broadcast %cst_59 : f32 to vector<8x128xf32>
    %245 = arith.addf %244, %243 : vector<8x128xf32>
    %246 = arith.divf %244, %245 : vector<8x128xf32>
    %247 = vector.extract_strided_slice %230 {offsets = [0, 256], sizes = [8, 128], strides = [1, 1]} : vector<8x384xf32> to vector<8x128xf32>
    %248 = vector.extract_strided_slice %227 {offsets = [0, 256], sizes = [8, 128], strides = [1, 1]} : vector<8x384xf32> to vector<8x128xf32>
    %249 = arith.addf %248, %6 : vector<8x128xf32>
    %250 = arith.mulf %238, %249 : vector<8x128xf32>
    %251 = arith.addf %247, %250 : vector<8x128xf32>
    %252 = math.tanh %251 : vector<8x128xf32>
    %253 = arith.subf %219, %252 : vector<8x128xf32>
    %254 = arith.mulf %246, %253 : vector<8x128xf32>
    %255 = arith.addf %252, %254 : vector<8x128xf32>
    %256 = arith.index_cast %225 : i32 to index
    %c0_60 = arith.constant 0 : index
    %c0_61 = arith.constant 0 : index
    %257 = vector.load %arg4[%256, %c0_60, %c0_61] : memref<8x8x128xf32, #tpu.memory_space<vmem>>, vector<1x8x128xf32>
    %258 = vector.shape_cast %257 : vector<1x8x128xf32> to vector<8x128xf32>
    %259 = vector.shape_cast %255 : vector<8x128xf32> to vector<1x8x128xf32>
    tpu.vector_store %arg4[%256, %c0_60, %c0_61], %259 {strides = array<i32>} : memref<8x8x128xf32, #tpu.memory_space<vmem>>, vector<1x8x128xf32>,
    %c7_i32 = arith.constant 7 : i32
    %c8_i32_62 = arith.constant 8 : i32
    %260 = arith.muli %c0_i32_6, %c8_i32_62 : i32
    %261 = arith.addi %260, %c7_i32 : i32
    %262 = arith.truncf %255 : vector<8x128xf32> to vector<8x128xbf16>
    %cst_63 = arith.constant dense<0.000000e+00> : vector<8x384xf32>
    %263 = tpu.matmul %262, %3, %cst_63 {dimension_numbers = #tpu.dot_dimension_numbers<[1], [0], [0], [1], [0, 0, 1, 1], [], []>} : vector<8x128xbf16>, vector<128x384xbf16>, vector<8x384xf32> -> vector<8x384xf32>
    %264 = arith.index_cast %261 : i32 to index
    %c0_64 = arith.constant 0 : index
    %c0_65 = arith.constant 0 : index
    %265 = vector.load %arg1[%264, %c0_64, %c0_65] : memref<8x8x384xf32, #tpu.memory_space<vmem>>, vector<1x8x384xf32>
    %266 = vector.shape_cast %265 : vector<1x8x384xf32> to vector<8x384xf32>
    %267 = vector.extract_strided_slice %266 {offsets = [0, 0], sizes = [8, 128], strides = [1, 1]} : vector<8x384xf32> to vector<8x128xf32>
    %268 = vector.extract_strided_slice %263 {offsets = [0, 0], sizes = [8, 128], strides = [1, 1]} : vector<8x384xf32> to vector<8x128xf32>
    %269 = arith.addf %267, %268 : vector<8x128xf32>
    %270 = arith.negf %269 : vector<8x128xf32>
    %271 = math.exp %270 : vector<8x128xf32>
    %cst_66 = arith.constant 1.000000e+00 : f32
    %272 = vector.broadcast %cst_66 : f32 to vector<8x128xf32>
    %273 = arith.addf %272, %271 : vector<8x128xf32>
    %274 = arith.divf %272, %273 : vector<8x128xf32>
    %275 = vector.extract_strided_slice %266 {offsets = [0, 128], sizes = [8, 128], strides = [1, 1]} : vector<8x384xf32> to vector<8x128xf32>
    %276 = vector.extract_strided_slice %263 {offsets = [0, 128], sizes = [8, 128], strides = [1, 1]} : vector<8x384xf32> to vector<8x128xf32>
    %277 = arith.addf %275, %276 : vector<8x128xf32>
    %278 = arith.negf %277 : vector<8x128xf32>
    %279 = math.exp %278 : vector<8x128xf32>
    %cst_67 = arith.constant 1.000000e+00 : f32
    %280 = vector.broadcast %cst_67 : f32 to vector<8x128xf32>
    %281 = arith.addf %280, %279 : vector<8x128xf32>
    %282 = arith.divf %280, %281 : vector<8x128xf32>
    %283 = vector.extract_strided_slice %266 {offsets = [0, 256], sizes = [8, 128], strides = [1, 1]} : vector<8x384xf32> to vector<8x128xf32>
    %284 = vector.extract_strided_slice %263 {offsets = [0, 256], sizes = [8, 128], strides = [1, 1]} : vector<8x384xf32> to vector<8x128xf32>
    %285 = arith.addf %284, %6 : vector<8x128xf32>
    %286 = arith.mulf %274, %285 : vector<8x128xf32>
    %287 = arith.addf %283, %286 : vector<8x128xf32>
    %288 = math.tanh %287 : vector<8x128xf32>
    %289 = arith.subf %255, %288 : vector<8x128xf32>
    %290 = arith.mulf %282, %289 : vector<8x128xf32>
    %291 = arith.addf %288, %290 : vector<8x128xf32>
    %292 = arith.index_cast %261 : i32 to index
    %c0_68 = arith.constant 0 : index
    %c0_69 = arith.constant 0 : index
    %293 = vector.load %arg4[%292, %c0_68, %c0_69] : memref<8x8x128xf32, #tpu.memory_space<vmem>>, vector<1x8x128xf32>
    %294 = vector.shape_cast %293 : vector<1x8x128xf32> to vector<8x128xf32>
    %295 = vector.shape_cast %291 : vector<8x128xf32> to vector<1x8x128xf32>
    tpu.vector_store %arg4[%292, %c0_68, %c0_69], %295 {strides = array<i32>} : memref<8x8x128xf32, #tpu.memory_space<vmem>>, vector<1x8x128xf32>,
    %c8_i32_70 = arith.constant 8 : i32
    %c1_i32_71 = arith.constant 1 : i32
    %c0_72 = arith.constant 0 : index
    %c0_73 = arith.constant 0 : index
    %296 = vector.load %arg5[%c0_72, %c0_73] : memref<8x128xf32, #tpu.memory_space<vmem>>, vector<8x128xf32>
    tpu.vector_store %arg5[%c0_72, %c0_73], %291 {strides = array<i32>} : memref<8x128xf32, #tpu.memory_space<vmem>>, vector<8x128xf32>,
    return
  }
  func.func @transform_0(%arg0: i32) -> (i32, i32, i32) {
    %c0_i32 = arith.constant 0 : i32
    %c0_i32_0 = arith.constant 0 : i32
    %c0_i32_1 = arith.constant 0 : i32
    return %arg0, %c0_i32, %c0_i32_0 : i32, i32, i32
  }
  func.func @transform_1(%arg0: i32) -> (i32, i32) {
    %c0_i32 = arith.constant 0 : i32
    %c0_i32_0 = arith.constant 0 : i32
    %c0_i32_1 = arith.constant 0 : i32
    return %c0_i32, %c0_i32_0 : i32, i32
  }
  func.func @transform_2(%arg0: i32) -> (i32, i32) {
    %c0_i32 = arith.constant 0 : i32
    %c0_i32_0 = arith.constant 0 : i32
    %c0_i32_1 = arith.constant 0 : i32
    return %c0_i32, %c0_i32_0 : i32, i32
  }
  func.func @transform_3(%arg0: i32) -> (i32, i32, i32) {
    %c0_i32 = arith.constant 0 : i32
    %c0_i32_0 = arith.constant 0 : i32
    %c0_i32_1 = arith.constant 0 : i32
    return %arg0, %c0_i32, %c0_i32_0 : i32, i32, i32
  }
}

</mosaic_0001>

<llo_original>
// kernel: tatlstm_forward.1
$region0: #{tatlstm_forward.1}
  #allocation0 [shape = 'u32[]', space=smem, size = 0x4, offset = 0x4, fixed_abs, tag = 'smem constant byte address 0x4 - core index']
  #allocation1 [shape = 'u32[144,128]{1,0:T(1,128)}', space=vmem, size = 0x12000, scoped, tag = 'internal scratch']
  #allocation2 [shape = 'f32[8,128]{1,0:T(8,128)}', space=vmem, size = 0x1000, scoped, tag = 'scratch operand']
  %s0 = inlined_call_operand.vmem [shape: f32[8,8,384], index: 0, kind: input, shape index: {}]
  %s1 = inlined_call_operand.vmem [shape: bf16[128,384], index: 1, kind: input, shape index: {}]
  %s2 = inlined_call_operand.vmem [shape: f32[1,128], index: 2, kind: input, shape index: {}]
  %s3 = inlined_call_operand.vmem [shape: bf16[8,8,128], index: 3, kind: output, shape index: {}]
  %s4 = sld [smem:[#allocation0]]
  $region26: #{tatlstm_forward.1} parent=0
    _
  %s6 = ssub.s32 1, %s4
  %s7 = scalar_select 0, %s6, %s4
  // Predicated region
  $region2: #{tatlstm_forward.1} parent=0 // pred_check
    _
  $region3: #{tatlstm_forward.1} parent=0 // pred_check_branch
    %9 = sbr.rel (0) target = $region5
  $region4: #{tatlstm_forward.1} parent=0 // pred_region
    _
  $region5: #{tatlstm_forward.1} parent=0 // pred_fallthru
    _
  // Predicated region
  $region6: #{tatlstm_forward.1} parent=0 // pred_check
    _
  $region7: #{tatlstm_forward.1} parent=0 // pred_check_branch
    %11 = sbr.rel (0) target = $region9
  $region8: #{tatlstm_forward.1} parent=0 // pred_region
    _
  $region9: #{tatlstm_forward.1} parent=0 // pred_fallthru
    _
  // Predicated region
  $region10: #{tatlstm_forward.1} parent=0 // pred_check
    _
  $region11: #{tatlstm_forward.1} parent=0 // pred_check_branch
    %13 = sbr.rel (0) target = $region13
  $region12: #{tatlstm_forward.1} parent=0 // pred_region
    _
  $region13: #{tatlstm_forward.1} parent=0 // pred_fallthru
    _
  %p15 = scmp.eq.s32.totalorder 0, 0
  // Predicated region
  $region14: #{tatlstm_forward.1} parent=0 // pred_check
    %p16 = pneg %p15
  $region15: #{tatlstm_forward.1} parent=0 // pred_check_branch
    %18 = sbr.rel (%p16) target = $region17
  $region16: #{tatlstm_forward.1} parent=0 // pred_region
    %19 = vst [vmem:[#allocation2] sm:$0xff] 0.0
  $region17: #{tatlstm_forward.1} parent=0 // pred_fallthru
    _
  %v20 = vld [vmem:[%s1] sm:$0xff]
  %v21 = vld [vmem:[%s1 + $0x8] sm:$0xf]
  %v22 = vld [vmem:[%s1 + $0xc] sm:$0xff]
  %v23 = vld [vmem:[%s1 + $0x14] sm:$0xf]
  %v24 = vld [vmem:[%s1 + $0x18] sm:$0xff]
  %v25 = vld [vmem:[%s1 + $0x20] sm:$0xf]
  %v26 = vld [vmem:[%s1 + $0x24] sm:$0xff]
  %v27 = vld [vmem:[%s1 + $0x2c] sm:$0xf]
  %v28 = vld [vmem:[%s1 + $0x30] sm:$0xff]
  %v29 = vld [vmem:[%s1 + $0x38] sm:$0xf]
  %v30 = vld [vmem:[%s1 + $0x3c] sm:$0xff]
  %v31 = vld [vmem:[%s1 + $0x44] sm:$0xf]
  %v32 = vld [vmem:[%s1 + $0x48] sm:$0xff]
  %v33 = vld [vmem:[%s1 + $0x50] sm:$0xf]
  %v34 = vld [vmem:[%s1 + $0x54] sm:$0xff]
  %v35 = vld [vmem:[%s1 + $0x5c] sm:$0xf]
  %v36 = vld [vmem:[%s1 + $0x60] sm:$0xff]
  %v37 = vld [vmem:[%s1 + $0x68] sm:$0xf]
  %v38 = vld [vmem:[%s1 + $0x6c] sm:$0xff]
  %v39 = vld [vmem:[%s1 + $0x74] sm:$0xf]
  %v40 = vld [vmem:[%s1 + $0x78] sm:$0xff]
  %v41 = vld [vmem:[%s1 + $0x80] sm:$0xf]
  %v42 = vld [vmem:[%s1 + $0x84] sm:$0xff]
  %v43 = vld [vmem:[%s1 + $0x8c] sm:$0xf]
  %v44 = vld [vmem:[%s1 + $0x90] sm:$0xff]
  %v45 = vld [vmem:[%s1 + $0x98] sm:$0xf]
  %v46 = vld [vmem:[%s1 + $0x9c] sm:$0xff]
  %v47 = vld [vmem:[%s1 + $0xa4] sm:$0xf]
  %v48 = vld [vmem:[%s1 + $0xa8] sm:$0xff]
  %v49 = vld [vmem:[%s1 + $0xb0] sm:$0xf]
  %v50 = vld [vmem:[%s1 + $0xb4] sm:$0xff]
  %v51 = vld [vmem:[%s1 + $0xbc] sm:$0xf]
  %v52 = vld [vmem:[%s2] sm:$0x1]
  %v54 = vlaneseq
  %v55 = vshrl.u32 %v54, 7
  %v56 = vsub.s32 0, %v55
  %v57 = vrot.slane %v52, %v56
  %v59 = vld [vmem:[#allocation2] sm:$0xff]
  %v60 = vpack.c.bf16 %v59, %v59
  %v93 = vunpack.c.l.b16 %v20
  %v94 = vunpack.c.h.b16 %v20
  %v95 = vunpack.c.l.b16 %v21
  %v96 = vunpack.c.l.b16 %v22
  %v97 = vunpack.c.h.b16 %v22
  %v98 = vunpack.c.l.b16 %v23
  %v99 = vunpack.c.l.b16 %v24
  %v100 = vunpack.c.h.b16 %v24
  %v101 = vunpack.c.l.b16 %v25
  %v102 = vunpack.c.l.b16 %v26
  %v103 = vunpack.c.h.b16 %v26
  %v104 = vunpack.c.l.b16 %v27
  %v105 = vunpack.c.l.b16 %v28
  %v106 = vunpack.c.h.b16 %v28
  %v107 = vunpack.c.l.b16 %v29
  %v108 = vunpack.c.l.b16 %v30
  %v109 = vunpack.c.h.b16 %v30
  %v110 = vunpack.c.l.b16 %v31
  %v111 = vunpack.c.l.b16 %v32
  %v112 = vunpack.c.h.b16 %v32
  %v113 = vunpack.c.l.b16 %v33
  %v114 = vunpack.c.l.b16 %v34
  %v115 = vunpack.c.h.b16 %v34
  %v116 = vunpack.c.l.b16 %v35
  %v117 = vunpack.c.l.b16 %v36
  %v118 = vunpack.c.h.b16 %v36
  %v119 = vunpack.c.l.b16 %v37
  %v120 = vunpack.c.l.b16 %v38
  %v121 = vunpack.c.h.b16 %v38
  %v122 = vunpack.c.l.b16 %v39
  %v123 = vunpack.c.l.b16 %v40
  %v124 = vunpack.c.h.b16 %v40
  %v125 = vunpack.c.l.b16 %v41
  %v126 = vunpack.c.l.b16 %v42
  %v127 = vunpack.c.h.b16 %v42
  %v128 = vunpack.c.l.b16 %v43
  %v129 = vunpack.c.l.b16 %v44
  %v130 = vunpack.c.h.b16 %v44
  %v131 = vunpack.c.l.b16 %v45
  %v132 = vunpack.c.l.b16 %v46
  %v133 = vunpack.c.h.b16 %v46
  %v134 = vunpack.c.l.b16 %v47
  %v135 = vunpack.c.l.b16 %v48
  %v136 = vunpack.c.h.b16 %v48
  %v137 = vunpack.c.l.b16 %v49
  %v138 = vunpack.c.l.b16 %v50
  %v139 = vunpack.c.h.b16 %v50
  %v140 = vunpack.c.l.b16 %v51
  %v141 = vpack.c.b16 %v96, %v93
  %v142 = vpack.c.b16 %v97, %v94
  %v143 = vpack.c.b16 %v98, %v95
  %v144 = vpack.c.b16 %v102, %v99
  %v145 = vpack.c.b16 %v103, %v100
  %v146 = vpack.c.b16 %v104, %v101
  %v147 = vpack.c.b16 %v108, %v105
  %v148 = vpack.c.b16 %v109, %v106
  %v149 = vpack.c.b16 %v110, %v107
  %v150 = vpack.c.b16 %v114, %v111
  %v151 = vpack.c.b16 %v115, %v112
  %v152 = vpack.c.b16 %v116, %v113
  %v153 = vpack.c.b16 %v120, %v117
  %v154 = vpack.c.b16 %v121, %v118
  %v155 = vpack.c.b16 %v122, %v119
  %v156 = vpack.c.b16 %v126, %v123
  %v157 = vpack.c.b16 %v127, %v124
  %v158 = vpack.c.b16 %v128, %v125
  %v159 = vpack.c.b16 %v132, %v129
  %v160 = vpack.c.b16 %v133, %v130
  %v161 = vpack.c.b16 %v134, %v131
  %v162 = vpack.c.b16 %v138, %v135
  %v163 = vpack.c.b16 %v139, %v136
  %v164 = vpack.c.b16 %v140, %v137
  %189 = vmatprep.subr.bf16.mxu0 %v163
  %190 = vmatpush1.bf16.msra.mxu0 %v162
  %191 = vmatprep.subr.bf16.mxu0 %v160
  %192 = vmatpush1.bf16.msra.mxu0 %v159
  %193 = vmatprep.subr.bf16.mxu0 %v157
  %194 = vmatpush1.bf16.msra.mxu0 %v156
  %195 = vmatprep.subr.bf16.mxu0 %v154
  %196 = vmatpush1.bf16.msra.mxu0 %v153
  %197 = vmatprep.subr.bf16.mxu0 %v151
  %198 = vmatpush1.bf16.msra.mxu0 %v150
  %199 = vmatprep.subr.bf16.mxu0 %v148
  %200 = vmatpush1.bf16.msra.mxu0 %v147
  %201 = vmatprep.subr.bf16.mxu0 %v145
  %202 = vmatpush1.bf16.msra.mxu0 %v144
  %203 = vmatprep.subr.bf16.mxu0 %v142
  %204 = vmatpush1.bf16.msra.mxu0 %v141
  %205 = vmatprep.subr.bf16.mxu0 0
  %206 = vmatpush2.bf16.msra.mxu0 0
  %207 = vmatprep.subr.bf16.mxu0 0
  %208 = vmatpush2.bf16.msra.mxu0 0
  %209 = vmatprep.subr.bf16.mxu0 0
  %210 = vmatpush2.bf16.msra.mxu0 0
  %211 = vmatprep.subr.bf16.mxu0 0
  %212 = vmatpush2.bf16.msra.mxu0 0
  %213 = vmatprep.subr.bf16.mxu0 0
  %214 = vmatpush2.bf16.msra.mxu0 0
  %215 = vmatprep.subr.bf16.mxu0 0
  %216 = vmatpush2.bf16.msra.mxu0 0
  %217 = vmatprep.subr.bf16.mxu0 0
  %218 = vmatpush2.bf16.msra.mxu0 0
  %219 = vmatprep.subr.bf16.mxu0 0
  %220 = vmatpush2.bf16.msra.mxu0 0
  %221 = vmatprep.mubr.bf16.mxu0 0
  %222 = vmatmul.mubr.bf16.gmra.mxu0 %v60
  %v223 = vpop.f32.mrf.mxu0
  %v224 = vadd.f32 0.0, %v223
  %v225 = vpop.f32.mrf.mxu0
  %v226 = vadd.f32 0.0, %v225
  %v227 = vpop.f32.mrf.mxu0
  %v228 = vpop.f32.mrf.mxu0
  %229 = vdwg.mxu0
  %230 = vmatprep.subr.bf16.mxu0 0
  %231 = vmatpush1.bf16.msra.mxu0 %v164
  %232 = vmatprep.subr.bf16.mxu0 0
  %233 = vmatpush1.bf16.msra.mxu0 %v161
  %234 = vmatprep.subr.bf16.mxu0 0
  %235 = vmatpush1.bf16.msra.mxu0 %v158
  %236 = vmatprep.subr.bf16.mxu0 0
  %237 = vmatpush1.bf16.msra.mxu0 %v155
  %238 = vmatprep.subr.bf16.mxu0 0
  %239 = vmatpush1.bf16.msra.mxu0 %v152
  %240 = vmatprep.subr.bf16.mxu0 0
  %241 = vmatpush1.bf16.msra.mxu0 %v149
  %242 = vmatprep.subr.bf16.mxu0 0
  %243 = vmatpush1.bf16.msra.mxu0 %v146
  %244 = vmatprep.subr.bf16.mxu0 0
  %245 = vmatpush1.bf16.msra.mxu0 %v143
  %246 = vmatprep.subr.bf16.mxu0 0
  %247 = vmatpush2.bf16.msra.mxu0 0
  %248 = vmatprep.subr.bf16.mxu0 0
  %249 = vmatpush2.bf16.msra.mxu0 0
  %250 = vmatprep.subr.bf16.mxu0 0
  %251 = vmatpush2.bf16.msra.mxu0 0
  %252 = vmatprep.subr.bf16.mxu0 0
  %253 = vmatpush2.bf16.msra.mxu0 0
  %254 = vmatprep.subr.bf16.mxu0 0
  %255 = vmatpush2.bf16.msra.mxu0 0
  %256 = vmatprep.subr.bf16.mxu0 0
  %257 = vmatpush2.bf16.msra.mxu0 0
  %258 = vmatprep.subr.bf16.mxu0 0
  %259 = vmatpush2.bf16.msra.mxu0 0
  %260 = vmatprep.subr.bf16.mxu0 0
  %261 = vmatpush2.bf16.msra.mxu0 0
  %262 = vmatprep.mubr.bf16.mxu0 0
  %263 = vmatmul.mubr.bf16.gmra.mxu0 %v60
  %v264 = vpop.f32.mrf.mxu0
  %v265 = vadd.f32 0.0, %v264
  %v266 = vpop.f32.mrf.mxu0
  %v267 = vpop.f32.mrf.mxu0
  %v268 = vpop.f32.mrf.mxu0
  %269 = vdwg.mxu0
  %v270 = vld [vmem:[%s0] sm:$0xff]
  %v271 = vld [vmem:[%s0 + $0x8] sm:$0xff]
  %v272 = vld [vmem:[%s0 + $0x10] sm:$0xff]
  %v273 = vadd.f32 %v270, %v224
  %v274 = vxor.u32 %v273, 2147483648
  %v275 = vmul.f32 %v274, 1.442695
  %v276 = vpow.pop %v275
  %v277 = vadd.f32 %v276, 1.0
  %v278 = vrcp.pop %v277
  %v279 = vmul.f32 1.0, %v278
  %v280 = vadd.f32 %v271, %v226
  %v281 = vxor.u32 %v280, 2147483648
  %v282 = vmul.f32 %v281, 1.442695
  %v283 = vpow.pop %v282
  %v284 = vadd.f32 %v283, 1.0
  %v285 = vrcp.pop %v284
  %v286 = vmul.f32 1.0, %v285
  %v287 = vadd.f32 %v265, %v57
  %v288 = vmul.f32 %v279, %v287
  %v289 = vadd.f32 %v272, %v288
  %v290 = vtanh.pop %v289
  %v291 = vsub.f32 %v59, %v290
  %v292 = vmul.f32 %v286, %v291
  %v293 = vadd.f32 %v290, %v292
  %v294 = vpack.c.bf16 %v293, %v293
  %295 = vst [vmem:[%s3] sm:$0xf] %v294
  %296 = vmatprep.subr.bf16.mxu0 %v163
  %297 = vmatpush1.bf16.msra.mxu0 %v162
  %298 = vmatprep.subr.bf16.mxu0 %v160
  %299 = vmatpush1.bf16.msra.mxu0 %v159
  %300 = vmatprep.subr.bf16.mxu0 %v157
  %301 = vmatpush1.bf16.msra.mxu0 %v156
  %302 = vmatprep.subr.bf16.mxu0 %v154
  %303 = vmatpush1.bf16.msra.mxu0 %v153
  %304 = vmatprep.subr.bf16.mxu0 %v151
  %305 = vmatpush1.bf16.msra.mxu0 %v150
  %306 = vmatprep.subr.bf16.mxu0 %v148
  %307 = vmatpush1.bf16.msra.mxu0 %v147
  %308 = vmatprep.subr.bf16.mxu0 %v145
  %309 = vmatpush1.bf16.msra.mxu0 %v144
  %310 = vmatprep.subr.bf16.mxu0 %v142
  %311 = vmatpush1.bf16.msra.mxu0 %v141
  %312 = vmatprep.subr.bf16.mxu0 0
  %313 = vmatpush2.bf16.msra.mxu0 0
  %314 = vmatprep.subr.bf16.mxu0 0
  %315 = vmatpush2.bf16.msra.mxu0 0
  %316 = vmatprep.subr.bf16.mxu0 0
  %317 = vmatpush2.bf16.msra.mxu0 0
  %318 = vmatprep.subr.bf16.mxu0 0
  %319 = vmatpush2.bf16.msra.mxu0 0
  %320 = vmatprep.subr.bf16.mxu0 0
  %321 = vmatpush2.bf16.msra.mxu0 0
  %322 = vmatprep.subr.bf16.mxu0 0
  %323 = vmatpush2.bf16.msra.mxu0 0
  %324 = vmatprep.subr.bf16.mxu0 0
  %325 = vmatpush2.bf16.msra.mxu0 0
  %326 = vmatprep.subr.bf16.mxu0 0
  %327 = vmatpush2.bf16.msra.mxu0 0
  %328 = vmatprep.mubr.bf16.mxu0 0
  %329 = vmatmul.mubr.bf16.gmra.mxu0 %v294
  %v330 = vpop.f32.mrf.mxu0
  %v331 = vadd.f32 0.0, %v330
  %v332 = vpop.f32.mrf.mxu0
  %v333 = vadd.f32 0.0, %v332
  %v334 = vpop.f32.mrf.mxu0
  %v335 = vpop.f32.mrf.mxu0
  %336 = vdwg.mxu0
  %337 = vmatprep.subr.bf16.mxu0 0
  %338 = vmatpush1.bf16.msra.mxu0 %v164
  %339 = vmatprep.subr.bf16.mxu0 0
  %340 = vmatpush1.bf16.msra.mxu0 %v161
  %341 = vmatprep.subr.bf16.mxu0 0
  %342 = vmatpush1.bf16.msra.mxu0 %v158
  %343 = vmatprep.subr.bf16.mxu0 0
  %344 = vmatpush1.bf16.msra.mxu0 %v155
  %345 = vmatprep.subr.bf16.mxu0 0
  %346 = vmatpush1.bf16.msra.mxu0 %v152
  %347 = vmatprep.subr.bf16.mxu0 0
  %348 = vmatpush1.bf16.msra.mxu0 %v149
  %349 = vmatprep.subr.bf16.mxu0 0
  %350 = vmatpush1.bf16.msra.mxu0 %v146
  %351 = vmatprep.subr.bf16.mxu0 0
  %352 = vmatpush1.bf16.msra.mxu0 %v143
  %353 = vmatprep.subr.bf16.mxu0 0
  %354 = vmatpush2.bf16.msra.mxu0 0
  %355 = vmatprep.subr.bf16.mxu0 0
  %356 = vmatpush2.bf16.msra.mxu0 0
  %357 = vmatprep.subr.bf16.mxu0 0
  %358 = vmatpush2.bf16.msra.mxu0 0
  %359 = vmatprep.subr.bf16.mxu0 0
  %360 = vmatpush2.bf16.msra.mxu0 0
  %361 = vmatprep.subr.bf16.mxu0 0
  %362 = vmatpush2.bf16.msra.mxu0 0
  %363 = vmatprep.subr.bf16.mxu0 0
  %364 = vmatpush2.bf16.msra.mxu0 0
  %365 = vmatprep.subr.bf16.mxu0 0
  %366 = vmatpush2.bf16.msra.mxu0 0
  %367 = vmatprep.subr.bf16.mxu0 0
  %368 = vmatpush2.bf16.msra.mxu0 0
  %369 = vmatprep.mubr.bf16.mxu0 0
  %370 = vmatmul.mubr.bf16.gmra.mxu0 %v294
  %v371 = vpop.f32.mrf.mxu0
  %v372 = vadd.f32 0.0, %v371
  %v373 = vpop.f32.mrf.mxu0
  %v374 = vpop.f32.mrf.mxu0
  %v375 = vpop.f32.mrf.mxu0
  %376 = vdwg.mxu0
  %s377 = scalar_lea.vmem %s0, 24
  %v378 = vld [vmem:[%s377] sm:$0xff]
  %v379 = vld [vmem:[%s377 + $0x8] sm:$0xff]
  %v380 = vld [vmem:[%s377 + $0x10] sm:$0xff]
  %v381 = vadd.f32 %v378, %v331
  %v382 = vxor.u32 %v381, 2147483648
  %v383 = vmul.f32 %v382, 1.442695
  %v384 = vpow.pop %v383
  %v385 = vadd.f32 %v384, 1.0
  %v386 = vrcp.pop %v385
  %v387 = vmul.f32 1.0, %v386
  %v388 = vadd.f32 %v379, %v333
  %v389 = vxor.u32 %v388, 2147483648
  %v390 = vmul.f32 %v389, 1.442695
  %v391 = vpow.pop %v390
  %v392 = vadd.f32 %v391, 1.0
  %v393 = vrcp.pop %v392
  %v394 = vmul.f32 1.0, %v393
  %v395 = vadd.f32 %v372, %v57
  %v396 = vmul.f32 %v387, %v395
  %v397 = vadd.f32 %v380, %v396
  %v398 = vtanh.pop %v397
  %v399 = vsub.f32 %v293, %v398
  %v400 = vmul.f32 %v394, %v399
  %v401 = vadd.f32 %v398, %v400
  %v402 = vpack.c.bf16 %v401, %v401
  %s403 = scalar_lea.vmem %s3, 4
  %404 = vst [vmem:[%s403] sm:$0xf] %v402
  %405 = vmatprep.subr.bf16.mxu0 %v163
  %406 = vmatpush1.bf16.msra.mxu0 %v162
  %407 = vmatprep.subr.bf16.mxu0 %v160
  %408 = vmatpush1.bf16.msra.mxu0 %v159
  %409 = vmatprep.subr.bf16.mxu0 %v157
  %410 = vmatpush1.bf16.msra.mxu0 %v156
  %411 = vmatprep.subr.bf16.mxu0 %v154
  %412 = vmatpush1.bf16.msra.mxu0 %v153
  %413 = vmatprep.subr.bf16.mxu0 %v151
  %414 = vmatpush1.bf16.msra.mxu0 %v150
  %415 = vmatprep.subr.bf16.mxu0 %v148
  %416 = vmatpush1.bf16.msra.mxu0 %v147
  %417 = vmatprep.subr.bf16.mxu0 %v145
  %418 = vmatpush1.bf16.msra.mxu0 %v144
  %419 = vmatprep.subr.bf16.mxu0 %v142
  %420 = vmatpush1.bf16.msra.mxu0 %v141
  %421 = vmatprep.subr.bf16.mxu0 0
  %422 = vmatpush2.bf16.msra.mxu0 0
  %423 = vmatprep.subr.bf16.mxu0 0
  %424 = vmatpush2.bf16.msra.mxu0 0
  %425 = vmatprep.subr.bf16.mxu0 0
  %426 = vmatpush2.bf16.msra.mxu0 0
  %427 = vmatprep.subr.bf16.mxu0 0
  %428 = vmatpush2.bf16.msra.mxu0 0
  %429 = vmatprep.subr.bf16.mxu0 0
  %430 = vmatpush2.bf16.msra.mxu0 0
  %431 = vmatprep.subr.bf16.mxu0 0
  %432 = vmatpush2.bf16.msra.mxu0 0
  %433 = vmatprep.subr.bf16.mxu0 0
  %434 = vmatpush2.bf16.msra.mxu0 0
  %435 = vmatprep.subr.bf16.mxu0 0
  %436 = vmatpush2.bf16.msra.mxu0 0
  %437 = vmatprep.mubr.bf16.mxu0 0
  %438 = vmatmul.mubr.bf16.gmra.mxu0 %v402
  %v439 = vpop.f32.mrf.mxu0
  %v440 = vadd.f32 0.0, %v439
  %v441 = vpop.f32.mrf.mxu0
  %v442 = vadd.f32 0.0, %v441
  %v443 = vpop.f32.mrf.mxu0
  %v444 = vpop.f32.mrf.mxu0
  %445 = vdwg.mxu0
  %446 = vmatprep.subr.bf16.mxu0 0
  %447 = vmatpush1.bf16.msra.mxu0 %v164
  %448 = vmatprep.subr.bf16.mxu0 0
  %449 = vmatpush1.bf16.msra.mxu0 %v161
  %450 = vmatprep.subr.bf16.mxu0 0
  %451 = vmatpush1.bf16.msra.mxu0 %v158
  %452 = vmatprep.subr.bf16.mxu0 0
  %453 = vmatpush1.bf16.msra.mxu0 %v155
  %454 = vmatprep.subr.bf16.mxu0 0
  %455 = vmatpush1.bf16.msra.mxu0 %v152
  %456 = vmatprep.subr.bf16.mxu0 0
  %457 = vmatpush1.bf16.msra.mxu0 %v149
  %458 = vmatprep.subr.bf16.mxu0 0
  %459 = vmatpush1.bf16.msra.mxu0 %v146
  %460 = vmatprep.subr.bf16.mxu0 0
  %461 = vmatpush1.bf16.msra.mxu0 %v143
  %462 = vmatprep.subr.bf16.mxu0 0
  %463 = vmatpush2.bf16.msra.mxu0 0
  %464 = vmatprep.subr.bf16.mxu0 0
  %465 = vmatpush2.bf16.msra.mxu0 0
  %466 = vmatprep.subr.bf16.mxu0 0
  %467 = vmatpush2.bf16.msra.mxu0 0
  %468 = vmatprep.subr.bf16.mxu0 0
  %469 = vmatpush2.bf16.msra.mxu0 0
  %470 = vmatprep.subr.bf16.mxu0 0
  %471 = vmatpush2.bf16.msra.mxu0 0
  %472 = vmatprep.subr.bf16.mxu0 0
  %473 = vmatpush2.bf16.msra.mxu0 0
  %474 = vmatprep.subr.bf16.mxu0 0
  %475 = vmatpush2.bf16.msra.mxu0 0
  %476 = vmatprep.subr.bf16.mxu0 0
  %477 = vmatpush2.bf16.msra.mxu0 0
  %478 = vmatprep.mubr.bf16.mxu0 0
  %479 = vmatmul.mubr.bf16.gmra.mxu0 %v402
  %v480 = vpop.f32.mrf.mxu0
  %v481 = vadd.f32 0.0, %v480
  %v482 = vpop.f32.mrf.mxu0
  %v483 = vpop.f32.mrf.mxu0
  %v484 = vpop.f32.mrf.mxu0
  %485 = vdwg.mxu0
  %s486 = scalar_lea.vmem %s0, 48
  %v487 = vld [vmem:[%s486] sm:$0xff]
  %v488 = vld [vmem:[%s486 + $0x8] sm:$0xff]
  %v489 = vld [vmem:[%s486 + $0x10] sm:$0xff]
  %v490 = vadd.f32 %v487, %v440
  %v491 = vxor.u32 %v490, 2147483648
  %v492 = vmul.f32 %v491, 1.442695
  %v493 = vpow.pop %v492
  %v494 = vadd.f32 %v493, 1.0
  %v495 = vrcp.pop %v494
  %v496 = vmul.f32 1.0, %v495
  %v497 = vadd.f32 %v488, %v442
  %v498 = vxor.u32 %v497, 2147483648
  %v499 = vmul.f32 %v498, 1.442695
  %v500 = vpow.pop %v499
  %v501 = vadd.f32 %v500, 1.0
  %v502 = vrcp.pop %v501
  %v503 = vmul.f32 1.0, %v502
  %v504 = vadd.f32 %v481, %v57
  %v505 = vmul.f32 %v496, %v504
  %v506 = vadd.f32 %v489, %v505
  %v507 = vtanh.pop %v506
  %v508 = vsub.f32 %v401, %v507
  %v509 = vmul.f32 %v503, %v508
  %v510 = vadd.f32 %v507, %v509
  %v511 = vpack.c.bf16 %v510, %v510
  %s512 = scalar_lea.vmem %s3, 8
  %513 = vst [vmem:[%s512] sm:$0xf] %v511
  %514 = vmatprep.subr.bf16.mxu0 %v163
  %515 = vmatpush1.bf16.msra.mxu0 %v162
  %516 = vmatprep.subr.bf16.mxu0 %v160
  %517 = vmatpush1.bf16.msra.mxu0 %v159
  %518 = vmatprep.subr.bf16.mxu0 %v157
  %519 = vmatpush1.bf16.msra.mxu0 %v156
  %520 = vmatprep.subr.bf16.mxu0 %v154
  %521 = vmatpush1.bf16.msra.mxu0 %v153
  %522 = vmatprep.subr.bf16.mxu0 %v151
  %523 = vmatpush1.bf16.msra.mxu0 %v150
  %524 = vmatprep.subr.bf16.mxu0 %v148
  %525 = vmatpush1.bf16.msra.mxu0 %v147
  %526 = vmatprep.subr.bf16.mxu0 %v145
  %527 = vmatpush1.bf16.msra.mxu0 %v144
  %528 = vmatprep.subr.bf16.mxu0 %v142
  %529 = vmatpush1.bf16.msra.mxu0 %v141
  %530 = vmatprep.subr.bf16.mxu0 0
  %531 = vmatpush2.bf16.msra.mxu0 0
  %532 = vmatprep.subr.bf16.mxu0 0
  %533 = vmatpush2.bf16.msra.mxu0 0
  %534 = vmatprep.subr.bf16.mxu0 0
  %535 = vmatpush2.bf16.msra.mxu0 0
  %536 = vmatprep.subr.bf16.mxu0 0
  %537 = vmatpush2.bf16.msra.mxu0 0
  %538 = vmatprep.subr.bf16.mxu0 0
  %539 = vmatpush2.bf16.msra.mxu0 0
  %540 = vmatprep.subr.bf16.mxu0 0
  %541 = vmatpush2.bf16.msra.mxu0 0
  %542 = vmatprep.subr.bf16.mxu0 0
  %543 = vmatpush2.bf16.msra.mxu0 0
  %544 = vmatprep.subr.bf16.mxu0 0
  %545 = vmatpush2.bf16.msra.mxu0 0
  %546 = vmatprep.mubr.bf16.mxu0 0
  %547 = vmatmul.mubr.bf16.gmra.mxu0 %v511
  %v548 = vpop.f32.mrf.mxu0
  %v549 = vadd.f32 0.0, %v548
  %v550 = vpop.f32.mrf.mxu0
  %v551 = vadd.f32 0.0, %v550
  %v552 = vpop.f32.mrf.mxu0
  %v553 = vpop.f32.mrf.mxu0
  %554 = vdwg.mxu0
  %555 = vmatprep.subr.bf16.mxu0 0
  %556 = vmatpush1.bf16.msra.mxu0 %v164
  %557 = vmatprep.subr.bf16.mxu0 0
  %558 = vmatpush1.bf16.msra.mxu0 %v161
  %559 = vmatprep.subr.bf16.mxu0 0
  %560 = vmatpush1.bf16.msra.mxu0 %v158
  %561 = vmatprep.subr.bf16.mxu0 0
  %562 = vmatpush1.bf16.msra.mxu0 %v155
  %563 = vmatprep.subr.bf16.mxu0 0
  %564 = vmatpush1.bf16.msra.mxu0 %v152
  %565 = vmatprep.subr.bf16.mxu0 0
  %566 = vmatpush1.bf16.msra.mxu0 %v149
  %567 = vmatprep.subr.bf16.mxu0 0
  %568 = vmatpush1.bf16.msra.mxu0 %v146
  %569 = vmatprep.subr.bf16.mxu0 0
  %570 = vmatpush1.bf16.msra.mxu0 %v143
  %571 = vmatprep.subr.bf16.mxu0 0
  %572 = vmatpush2.bf16.msra.mxu0 0
  %573 = vmatprep.subr.bf16.mxu0 0
  %574 = vmatpush2.bf16.msra.mxu0 0
  %575 = vmatprep.subr.bf16.mxu0 0
  %576 = vmatpush2.bf16.msra.mxu0 0
  %577 = vmatprep.subr.bf16.mxu0 0
  %578 = vmatpush2.bf16.msra.mxu0 0
  %579 = vmatprep.subr.bf16.mxu0 0
  %580 = vmatpush2.bf16.msra.mxu0 0
  %581 = vmatprep.subr.bf16.mxu0 0
  %582 = vmatpush2.bf16.msra.mxu0 0
  %583 = vmatprep.subr.bf16.mxu0 0
  %584 = vmatpush2.bf16.msra.mxu0 0
  %585 = vmatprep.subr.bf16.mxu0 0
  %586 = vmatpush2.bf16.msra.mxu0 0
  %587 = vmatprep.mubr.bf16.mxu0 0
  %588 = vmatmul.mubr.bf16.gmra.mxu0 %v511
  %v589 = vpop.f32.mrf.mxu0
  %v590 = vadd.f32 0.0, %v589
  %v591 = vpop.f32.mrf.mxu0
  %v592 = vpop.f32.mrf.mxu0
  %v593 = vpop.f32.mrf.mxu0
  %594 = vdwg.mxu0
  %s595 = scalar_lea.vmem %s0, 72
  %v596 = vld [vmem:[%s595] sm:$0xff]
  %v597 = vld [vmem:[%s595 + $0x8] sm:$0xff]
  %v598 = vld [vmem:[%s595 + $0x10] sm:$0xff]
  %v599 = vadd.f32 %v596, %v549
  %v600 = vxor.u32 %v599, 2147483648
  %v601 = vmul.f32 %v600, 1.442695
  %v602 = vpow.pop %v601
  %v603 = vadd.f32 %v602, 1.0
  %v604 = vrcp.pop %v603
  %v605 = vmul.f32 1.0, %v604
  %v606 = vadd.f32 %v597, %v551
  %v607 = vxor.u32 %v606, 2147483648
  %v608 = vmul.f32 %v607, 1.442695
  %v609 = vpow.pop %v608
  %v610 = vadd.f32 %v609, 1.0
  %v611 = vrcp.pop %v610
  %v612 = vmul.f32 1.0, %v611
  %v613 = vadd.f32 %v590, %v57
  %v614 = vmul.f32 %v605, %v613
  %v615 = vadd.f32 %v598, %v614
  %v616 = vtanh.pop %v615
  %v617 = vsub.f32 %v510, %v616
  %v618 = vmul.f32 %v612, %v617
  %v619 = vadd.f32 %v616, %v618
  %v620 = vpack.c.bf16 %v619, %v619
  %s621 = scalar_lea.vmem %s3, 12
  %622 = vst [vmem:[%s621] sm:$0xf] %v620
  %623 = vmatprep.subr.bf16.mxu0 %v163
  %624 = vmatpush1.bf16.msra.mxu0 %v162
  %625 = vmatprep.subr.bf16.mxu0 %v160
  %626 = vmatpush1.bf16.msra.mxu0 %v159
  %627 = vmatprep.subr.bf16.mxu0 %v157
  %628 = vmatpush1.bf16.msra.mxu0 %v156
  %629 = vmatprep.subr.bf16.mxu0 %v154
  %630 = vmatpush1.bf16.msra.mxu0 %v153
  %631 = vmatprep.subr.bf16.mxu0 %v151
  %632 = vmatpush1.bf16.msra.mxu0 %v150
  %633 = vmatprep.subr.bf16.mxu0 %v148
  %634 = vmatpush1.bf16.msra.mxu0 %v147
  %635 = vmatprep.subr.bf16.mxu0 %v145
  %636 = vmatpush1.bf16.msra.mxu0 %v144
  %637 = vmatprep.subr.bf16.mxu0 %v142
  %638 = vmatpush1.bf16.msra.mxu0 %v141
  %639 = vmatprep.subr.bf16.mxu0 0
  %640 = vmatpush2.bf16.msra.mxu0 0
  %641 = vmatprep.subr.bf16.mxu0 0
  %642 = vmatpush2.bf16.msra.mxu0 0
  %643 = vmatprep.subr.bf16.mxu0 0
  %644 = vmatpush2.bf16.msra.mxu0 0
  %645 = vmatprep.subr.bf16.mxu0 0
  %646 = vmatpush2.bf16.msra.mxu0 0
  %647 = vmatprep.subr.bf16.mxu0 0
  %648 = vmatpush2.bf16.msra.mxu0 0
  %649 = vmatprep.subr.bf16.mxu0 0
  %650 = vmatpush2.bf16.msra.mxu0 0
  %651 = vmatprep.subr.bf16.mxu0 0
  %652 = vmatpush2.bf16.msra.mxu0 0
  %653 = vmatprep.subr.bf16.mxu0 0
  %654 = vmatpush2.bf16.msra.mxu0 0
  %655 = vmatprep.mubr.bf16.mxu0 0
  %656 = vmatmul.mubr.bf16.gmra.mxu0 %v620
  %v657 = vpop.f32.mrf.mxu0
  %v658 = vadd.f32 0.0, %v657
  %v659 = vpop.f32.mrf.mxu0
  %v660 = vadd.f32 0.0, %v659
  %v661 = vpop.f32.mrf.mxu0
  %v662 = vpop.f32.mrf.mxu0
  %663 = vdwg.mxu0
  %664 = vmatprep.subr.bf16.mxu0 0
  %665 = vmatpush1.bf16.msra.mxu0 %v164
  %666 = vmatprep.subr.bf16.mxu0 0
  %667 = vmatpush1.bf16.msra.mxu0 %v161
  %668 = vmatprep.subr.bf16.mxu0 0
  %669 = vmatpush1.bf16.msra.mxu0 %v158
  %670 = vmatprep.subr.bf16.mxu0 0
  %671 = vmatpush1.bf16.msra.mxu0 %v155
  %672 = vmatprep.subr.bf16.mxu0 0
  %673 = vmatpush1.bf16.msra.mxu0 %v152
  %674 = vmatprep.subr.bf16.mxu0 0
  %675 = vmatpush1.bf16.msra.mxu0 %v149
  %676 = vmatprep.subr.bf16.mxu0 0
  %677 = vmatpush1.bf16.msra.mxu0 %v146
  %678 = vmatprep.subr.bf16.mxu0 0
  %679 = vmatpush1.bf16.msra.mxu0 %v143
  %680 = vmatprep.subr.bf16.mxu0 0
  %681 = vmatpush2.bf16.msra.mxu0 0
  %682 = vmatprep.subr.bf16.mxu0 0
  %683 = vmatpush2.bf16.msra.mxu0 0
  %684 = vmatprep.subr.bf16.mxu0 0
  %685 = vmatpush2.bf16.msra.mxu0 0
  %686 = vmatprep.subr.bf16.mxu0 0
  %687 = vmatpush2.bf16.msra.mxu0 0
  %688 = vmatprep.subr.bf16.mxu0 0
  %689 = vmatpush2.bf16.msra.mxu0 0
  %690 = vmatprep.subr.bf16.mxu0 0
  %691 = vmatpush2.bf16.msra.mxu0 0
  %692 = vmatprep.subr.bf16.mxu0 0
  %693 = vmatpush2.bf16.msra.mxu0 0
  %694 = vmatprep.subr.bf16.mxu0 0
  %695 = vmatpush2.bf16.msra.mxu0 0
  %696 = vmatprep.mubr.bf16.mxu0 0
  %697 = vmatmul.mubr.bf16.gmra.mxu0 %v620
  %v698 = vpop.f32.mrf.mxu0
  %v699 = vadd.f32 0.0, %v698
  %v700 = vpop.f32.mrf.mxu0
  %v701 = vpop.f32.mrf.mxu0
  %v702 = vpop.f32.mrf.mxu0
  %703 = vdwg.mxu0
  %s704 = scalar_lea.vmem %s0, 96
  %v705 = vld [vmem:[%s704] sm:$0xff]
  %v706 = vld [vmem:[%s704 + $0x8] sm:$0xff]
  %v707 = vld [vmem:[%s704 + $0x10] sm:$0xff]
  %v708 = vadd.f32 %v705, %v658
  %v709 = vxor.u32 %v708, 2147483648
  %v710 = vmul.f32 %v709, 1.442695
  %v711 = vpow.pop %v710
  %v712 = vadd.f32 %v711, 1.0
  %v713 = vrcp.pop %v712
  %v714 = vmul.f32 1.0, %v713
  %v715 = vadd.f32 %v706, %v660
  %v716 = vxor.u32 %v715, 2147483648
  %v717 = vmul.f32 %v716, 1.442695
  %v718 = vpow.pop %v717
  %v719 = vadd.f32 %v718, 1.0
  %v720 = vrcp.pop %v719
  %v721 = vmul.f32 1.0, %v720
  %v722 = vadd.f32 %v699, %v57
  %v723 = vmul.f32 %v714, %v722
  %v724 = vadd.f32 %v707, %v723
  %v725 = vtanh.pop %v724
  %v726 = vsub.f32 %v619, %v725
  %v727 = vmul.f32 %v721, %v726
  %v728 = vadd.f32 %v725, %v727
  %v729 = vpack.c.bf16 %v728, %v728
  %s730 = scalar_lea.vmem %s3, 16
  %731 = vst [vmem:[%s730] sm:$0xf] %v729
  %732 = vmatprep.subr.bf16.mxu0 %v163
  %733 = vmatpush1.bf16.msra.mxu0 %v162
  %734 = vmatprep.subr.bf16.mxu0 %v160
  %735 = vmatpush1.bf16.msra.mxu0 %v159
  %736 = vmatprep.subr.bf16.mxu0 %v157
  %737 = vmatpush1.bf16.msra.mxu0 %v156
  %738 = vmatprep.subr.bf16.mxu0 %v154
  %739 = vmatpush1.bf16.msra.mxu0 %v153
  %740 = vmatprep.subr.bf16.mxu0 %v151
  %741 = vmatpush1.bf16.msra.mxu0 %v150
  %742 = vmatprep.subr.bf16.mxu0 %v148
  %743 = vmatpush1.bf16.msra.mxu0 %v147
  %744 = vmatprep.subr.bf16.mxu0 %v145
  %745 = vmatpush1.bf16.msra.mxu0 %v144
  %746 = vmatprep.subr.bf16.mxu0 %v142
  %747 = vmatpush1.bf16.msra.mxu0 %v141
  %748 = vmatprep.subr.bf16.mxu0 0
  %749 = vmatpush2.bf16.msra.mxu0 0
  %750 = vmatprep.subr.bf16.mxu0 0
  %751 = vmatpush2.bf16.msra.mxu0 0
  %752 = vmatprep.subr.bf16.mxu0 0
  %753 = vmatpush2.bf16.msra.mxu0 0
  %754 = vmatprep.subr.bf16.mxu0 0
  %755 = vmatpush2.bf16.msra.mxu0 0
  %756 = vmatprep.subr.bf16.mxu0 0
  %757 = vmatpush2.bf16.msra.mxu0 0
  %758 = vmatprep.subr.bf16.mxu0 0
  %759 = vmatpush2.bf16.msra.mxu0 0
  %760 = vmatprep.subr.bf16.mxu0 0
  %761 = vmatpush2.bf16.msra.mxu0 0
  %762 = vmatprep.subr.bf16.mxu0 0
  %763 = vmatpush2.bf16.msra.mxu0 0
  %764 = vmatprep.mubr.bf16.mxu0 0
  %765 = vmatmul.mubr.bf16.gmra.mxu0 %v729
  %v766 = vpop.f32.mrf.mxu0
  %v767 = vadd.f32 0.0, %v766
  %v768 = vpop.f32.mrf.mxu0
  %v769 = vadd.f32 0.0, %v768
  %v770 = vpop.f32.mrf.mxu0
  %v771 = vpop.f32.mrf.mxu0
  %772 = vdwg.mxu0
  %773 = vmatprep.subr.bf16.mxu0 0
  %774 = vmatpush1.bf16.msra.mxu0 %v164
  %775 = vmatprep.subr.bf16.mxu0 0
  %776 = vmatpush1.bf16.msra.mxu0 %v161
  %777 = vmatprep.subr.bf16.mxu0 0
  %778 = vmatpush1.bf16.msra.mxu0 %v158
  %779 = vmatprep.subr.bf16.mxu0 0
  %780 = vmatpush1.bf16.msra.mxu0 %v155
  %781 = vmatprep.subr.bf16.mxu0 0
  %782 = vmatpush1.bf16.msra.mxu0 %v152
  %783 = vmatprep.subr.bf16.mxu0 0
  %784 = vmatpush1.bf16.msra.mxu0 %v149
  %785 = vmatprep.subr.bf16.mxu0 0
  %786 = vmatpush1.bf16.msra.mxu0 %v146
  %787 = vmatprep.subr.bf16.mxu0 0
  %788 = vmatpush1.bf16.msra.mxu0 %v143
  %789 = vmatprep.subr.bf16.mxu0 0
  %790 = vmatpush2.bf16.msra.mxu0 0
  %791 = vmatprep.subr.bf16.mxu0 0
  %792 = vmatpush2.bf16.msra.mxu0 0
  %793 = vmatprep.subr.bf16.mxu0 0
  %794 = vmatpush2.bf16.msra.mxu0 0
  %795 = vmatprep.subr.bf16.mxu0 0
  %796 = vmatpush2.bf16.msra.mxu0 0
  %797 = vmatprep.subr.bf16.mxu0 0
  %798 = vmatpush2.bf16.msra.mxu0 0
  %799 = vmatprep.subr.bf16.mxu0 0
  %800 = vmatpush2.bf16.msra.mxu0 0
  %801 = vmatprep.subr.bf16.mxu0 0
  %802 = vmatpush2.bf16.msra.mxu0 0
  %803 = vmatprep.subr.bf16.mxu0 0
  %804 = vmatpush2.bf16.msra.mxu0 0
  %805 = vmatprep.mubr.bf16.mxu0 0
  %806 = vmatmul.mubr.bf16.gmra.mxu0 %v729
  %v807 = vpop.f32.mrf.mxu0
  %v808 = vadd.f32 0.0, %v807
  %v809 = vpop.f32.mrf.mxu0
  %v810 = vpop.f32.mrf.mxu0
  %v811 = vpop.f32.mrf.mxu0
  %812 = vdwg.mxu0
  %s813 = scalar_lea.vmem %s0, 120
  %v814 = vld [vmem:[%s813] sm:$0xff]
  %v815 = vld [vmem:[%s813 + $0x8] sm:$0xff]
  %v816 = vld [vmem:[%s813 + $0x10] sm:$0xff]
  %v817 = vadd.f32 %v814, %v767
  %v818 = vxor.u32 %v817, 2147483648
  %v819 = vmul.f32 %v818, 1.442695
  %v820 = vpow.pop %v819
  %v821 = vadd.f32 %v820, 1.0
  %v822 = vrcp.pop %v821
  %v823 = vmul.f32 1.0, %v822
  %v824 = vadd.f32 %v815, %v769
  %v825 = vxor.u32 %v824, 2147483648
  %v826 = vmul.f32 %v825, 1.442695
  %v827 = vpow.pop %v826
  %v828 = vadd.f32 %v827, 1.0
  %v829 = vrcp.pop %v828
  %v830 = vmul.f32 1.0, %v829
  %v831 = vadd.f32 %v808, %v57
  %v832 = vmul.f32 %v823, %v831
  %v833 = vadd.f32 %v816, %v832
  %v834 = vtanh.pop %v833
  %v835 = vsub.f32 %v728, %v834
  %v836 = vmul.f32 %v830, %v835
  %v837 = vadd.f32 %v834, %v836
  %v838 = vpack.c.bf16 %v837, %v837
  %s839 = scalar_lea.vmem %s3, 20
  %840 = vst [vmem:[%s839] sm:$0xf] %v838
  %841 = vmatprep.subr.bf16.mxu0 %v163
  %842 = vmatpush1.bf16.msra.mxu0 %v162
  %843 = vmatprep.subr.bf16.mxu0 %v160
  %844 = vmatpush1.bf16.msra.mxu0 %v159
  %845 = vmatprep.subr.bf16.mxu0 %v157
  %846 = vmatpush1.bf16.msra.mxu0 %v156
  %847 = vmatprep.subr.bf16.mxu0 %v154
  %848 = vmatpush1.bf16.msra.mxu0 %v153
  %849 = vmatprep.subr.bf16.mxu0 %v151
  %850 = vmatpush1.bf16.msra.mxu0 %v150
  %851 = vmatprep.subr.bf16.mxu0 %v148
  %852 = vmatpush1.bf16.msra.mxu0 %v147
  %853 = vmatprep.subr.bf16.mxu0 %v145
  %854 = vmatpush1.bf16.msra.mxu0 %v144
  %855 = vmatprep.subr.bf16.mxu0 %v142
  %856 = vmatpush1.bf16.msra.mxu0 %v141
  %857 = vmatprep.subr.bf16.mxu0 0
  %858 = vmatpush2.bf16.msra.mxu0 0
  %859 = vmatprep.subr.bf16.mxu0 0
  %860 = vmatpush2.bf16.msra.mxu0 0
  %861 = vmatprep.subr.bf16.mxu0 0
  %862 = vmatpush2.bf16.msra.mxu0 0
  %863 = vmatprep.subr.bf16.mxu0 0
  %864 = vmatpush2.bf16.msra.mxu0 0
  %865 = vmatprep.subr.bf16.mxu0 0
  %866 = vmatpush2.bf16.msra.mxu0 0
  %867 = vmatprep.subr.bf16.mxu0 0
  %868 = vmatpush2.bf16.msra.mxu0 0
  %869 = vmatprep.subr.bf16.mxu0 0
  %870 = vmatpush2.bf16.msra.mxu0 0
  %871 = vmatprep.subr.bf16.mxu0 0
  %872 = vmatpush2.bf16.msra.mxu0 0
  %873 = vmatprep.mubr.bf16.mxu0 0
  %874 = vmatmul.mubr.bf16.gmra.mxu0 %v838
  %v875 = vpop.f32.mrf.mxu0
  %v876 = vadd.f32 0.0, %v875
  %v877 = vpop.f32.mrf.mxu0
  %v878 = vadd.f32 0.0, %v877
  %v879 = vpop.f32.mrf.mxu0
  %v880 = vpop.f32.mrf.mxu0
  %881 = vdwg.mxu0
  %882 = vmatprep.subr.bf16.mxu0 0
  %883 = vmatpush1.bf16.msra.mxu0 %v164
  %884 = vmatprep.subr.bf16.mxu0 0
  %885 = vmatpush1.bf16.msra.mxu0 %v161
  %886 = vmatprep.subr.bf16.mxu0 0
  %887 = vmatpush1.bf16.msra.mxu0 %v158
  %888 = vmatprep.subr.bf16.mxu0 0
  %889 = vmatpush1.bf16.msra.mxu0 %v155
  %890 = vmatprep.subr.bf16.mxu0 0
  %891 = vmatpush1.bf16.msra.mxu0 %v152
  %892 = vmatprep.subr.bf16.mxu0 0
  %893 = vmatpush1.bf16.msra.mxu0 %v149
  %894 = vmatprep.subr.bf16.mxu0 0
  %895 = vmatpush1.bf16.msra.mxu0 %v146
  %896 = vmatprep.subr.bf16.mxu0 0
  %897 = vmatpush1.bf16.msra.mxu0 %v143
  %898 = vmatprep.subr.bf16.mxu0 0
  %899 = vmatpush2.bf16.msra.mxu0 0
  %900 = vmatprep.subr.bf16.mxu0 0
  %901 = vmatpush2.bf16.msra.mxu0 0
  %902 = vmatprep.subr.bf16.mxu0 0
  %903 = vmatpush2.bf16.msra.mxu0 0
  %904 = vmatprep.subr.bf16.mxu0 0
  %905 = vmatpush2.bf16.msra.mxu0 0
  %906 = vmatprep.subr.bf16.mxu0 0
  %907 = vmatpush2.bf16.msra.mxu0 0
  %908 = vmatprep.subr.bf16.mxu0 0
  %909 = vmatpush2.bf16.msra.mxu0 0
  %910 = vmatprep.subr.bf16.mxu0 0
  %911 = vmatpush2.bf16.msra.mxu0 0
  %912 = vmatprep.subr.bf16.mxu0 0
  %913 = vmatpush2.bf16.msra.mxu0 0
  %914 = vmatprep.mubr.bf16.mxu0 0
  %915 = vmatmul.mubr.bf16.gmra.mxu0 %v838
  %v916 = vpop.f32.mrf.mxu0
  %v917 = vadd.f32 0.0, %v916
  %v918 = vpop.f32.mrf.mxu0
  %v919 = vpop.f32.mrf.mxu0
  %v920 = vpop.f32.mrf.mxu0
  %921 = vdwg.mxu0
  %s922 = scalar_lea.vmem %s0, 144
  %v923 = vld [vmem:[%s922] sm:$0xff]
  %v924 = vld [vmem:[%s922 + $0x8] sm:$0xff]
  %v925 = vld [vmem:[%s922 + $0x10] sm:$0xff]
  %v926 = vadd.f32 %v923, %v876
  %v927 = vxor.u32 %v926, 2147483648
  %v928 = vmul.f32 %v927, 1.442695
  %v929 = vpow.pop %v928
  %v930 = vadd.f32 %v929, 1.0
  %v931 = vrcp.pop %v930
  %v932 = vmul.f32 1.0, %v931
  %v933 = vadd.f32 %v924, %v878
  %v934 = vxor.u32 %v933, 2147483648
  %v935 = vmul.f32 %v934, 1.442695
  %v936 = vpow.pop %v935
  %v937 = vadd.f32 %v936, 1.0
  %v938 = vrcp.pop %v937
  %v939 = vmul.f32 1.0, %v938
  %v940 = vadd.f32 %v917, %v57
  %v941 = vmul.f32 %v932, %v940
  %v942 = vadd.f32 %v925, %v941
  %v943 = vtanh.pop %v942
  %v944 = vsub.f32 %v837, %v943
  %v945 = vmul.f32 %v939, %v944
  %v946 = vadd.f32 %v943, %v945
  %v947 = vpack.c.bf16 %v946, %v946
  %s948 = scalar_lea.vmem %s3, 24
  %949 = vst [vmem:[%s948] sm:$0xf] %v947
  %950 = vmatprep.subr.bf16.mxu0 %v163
  %951 = vmatpush1.bf16.msra.mxu0 %v162
  %952 = vmatprep.subr.bf16.mxu0 %v160
  %953 = vmatpush1.bf16.msra.mxu0 %v159
  %954 = vmatprep.subr.bf16.mxu0 %v157
  %955 = vmatpush1.bf16.msra.mxu0 %v156
  %956 = vmatprep.subr.bf16.mxu0 %v154
  %957 = vmatpush1.bf16.msra.mxu0 %v153
  %958 = vmatprep.subr.bf16.mxu0 %v151
  %959 = vmatpush1.bf16.msra.mxu0 %v150
  %960 = vmatprep.subr.bf16.mxu0 %v148
  %961 = vmatpush1.bf16.msra.mxu0 %v147
  %962 = vmatprep.subr.bf16.mxu0 %v145
  %963 = vmatpush1.bf16.msra.mxu0 %v144
  %964 = vmatprep.subr.bf16.mxu0 %v142
  %965 = vmatpush1.bf16.msra.mxu0 %v141
  %966 = vmatprep.subr.bf16.mxu0 0
  %967 = vmatpush2.bf16.msra.mxu0 0
  %968 = vmatprep.subr.bf16.mxu0 0
  %969 = vmatpush2.bf16.msra.mxu0 0
  %970 = vmatprep.subr.bf16.mxu0 0
  %971 = vmatpush2.bf16.msra.mxu0 0
  %972 = vmatprep.subr.bf16.mxu0 0
  %973 = vmatpush2.bf16.msra.mxu0 0
  %974 = vmatprep.subr.bf16.mxu0 0
  %975 = vmatpush2.bf16.msra.mxu0 0
  %976 = vmatprep.subr.bf16.mxu0 0
  %977 = vmatpush2.bf16.msra.mxu0 0
  %978 = vmatprep.subr.bf16.mxu0 0
  %979 = vmatpush2.bf16.msra.mxu0 0
  %980 = vmatprep.subr.bf16.mxu0 0
  %981 = vmatpush2.bf16.msra.mxu0 0
  %982 = vmatprep.mubr.bf16.mxu0 0
  %983 = vmatmul.mubr.bf16.gmra.mxu0 %v947
  %v984 = vpop.f32.mrf.mxu0
  %v985 = vadd.f32 0.0, %v984
  %v986 = vpop.f32.mrf.mxu0
  %v987 = vadd.f32 0.0, %v986
  %v988 = vpop.f32.mrf.mxu0
  %v989 = vpop.f32.mrf.mxu0
  %990 = vdwg.mxu0
  %991 = vmatprep.subr.bf16.mxu0 0
  %992 = vmatpush1.bf16.msra.mxu0 %v164
  %993 = vmatprep.subr.bf16.mxu0 0
  %994 = vmatpush1.bf16.msra.mxu0 %v161
  %995 = vmatprep.subr.bf16.mxu0 0
  %996 = vmatpush1.bf16.msra.mxu0 %v158
  %997 = vmatprep.subr.bf16.mxu0 0
  %998 = vmatpush1.bf16.msra.mxu0 %v155
  %999 = vmatprep.subr.bf16.mxu0 0
  %1000 = vmatpush1.bf16.msra.mxu0 %v152
  %1001 = vmatprep.subr.bf16.mxu0 0
  %1002 = vmatpush1.bf16.msra.mxu0 %v149
  %1003 = vmatprep.subr.bf16.mxu0 0
  %1004 = vmatpush1.bf16.msra.mxu0 %v146
  %1005 = vmatprep.subr.bf16.mxu0 0
  %1006 = vmatpush1.bf16.msra.mxu0 %v143
  %1007 = vmatprep.subr.bf16.mxu0 0
  %1008 = vmatpush2.bf16.msra.mxu0 0
  %1009 = vmatprep.subr.bf16.mxu0 0
  %1010 = vmatpush2.bf16.msra.mxu0 0
  %1011 = vmatprep.subr.bf16.mxu0 0
  %1012 = vmatpush2.bf16.msra.mxu0 0
  %1013 = vmatprep.subr.bf16.mxu0 0
  %1014 = vmatpush2.bf16.msra.mxu0 0
  %1015 = vmatprep.subr.bf16.mxu0 0
  %1016 = vmatpush2.bf16.msra.mxu0 0
  %1017 = vmatprep.subr.bf16.mxu0 0
  %1018 = vmatpush2.bf16.msra.mxu0 0
  %1019 = vmatprep.subr.bf16.mxu0 0
  %1020 = vmatpush2.bf16.msra.mxu0 0
  %1021 = vmatprep.subr.bf16.mxu0 0
  %1022 = vmatpush2.bf16.msra.mxu0 0
  %1023 = vmatprep.mubr.bf16.mxu0 0
  %1024 = vmatmul.mubr.bf16.gmra.mxu0 %v947
  %v1025 = vpop.f32.mrf.mxu0
  %v1026 = vadd.f32 0.0, %v1025
  %v1027 = vpop.f32.mrf.mxu0
  %v1028 = vpop.f32.mrf.mxu0
  %v1029 = vpop.f32.mrf.mxu0
  %1030 = vdwg.mxu0
  %s1031 = scalar_lea.vmem %s0, 168
  %v1032 = vld [vmem:[%s1031] sm:$0xff]
  %v1033 = vld [vmem:[%s1031 + $0x8] sm:$0xff]
  %v1034 = vld [vmem:[%s1031 + $0x10] sm:$0xff]
  %v1035 = vadd.f32 %v1032, %v985
  %v1036 = vxor.u32 %v1035, 2147483648
  %v1037 = vmul.f32 %v1036, 1.442695
  %v1038 = vpow.pop %v1037
  %v1039 = vadd.f32 %v1038, 1.0
  %v1040 = vrcp.pop %v1039
  %v1041 = vmul.f32 1.0, %v1040
  %v1042 = vadd.f32 %v1033, %v987
  %v1043 = vxor.u32 %v1042, 2147483648
  %v1044 = vmul.f32 %v1043, 1.442695
  %v1045 = vpow.pop %v1044
  %v1046 = vadd.f32 %v1045, 1.0
  %v1047 = vrcp.pop %v1046
  %v1048 = vmul.f32 1.0, %v1047
  %v1049 = vadd.f32 %v1026, %v57
  %v1050 = vmul.f32 %v1041, %v1049
  %v1051 = vadd.f32 %v1034, %v1050
  %v1052 = vtanh.pop %v1051
  %v1053 = vsub.f32 %v946, %v1052
  %v1054 = vmul.f32 %v1048, %v1053
  %v1055 = vadd.f32 %v1052, %v1054
  %v1056 = vpack.c.bf16 %v1055, %v1055
  %s1057 = scalar_lea.vmem %s3, 28
  %1058 = vst [vmem:[%s1057] sm:$0xf] %v1056
  %1059 = vst [vmem:[#allocation2] sm:$0xff] %v1055
  // Predicated region
  $region18: #{tatlstm_forward.1} parent=0 // pred_check
    _
  $region19: #{tatlstm_forward.1} parent=0 // pred_check_branch
    %1061 = sbr.rel (0) target = $region21
  $region20: #{tatlstm_forward.1} parent=0 // pred_region
    _
  $region21: #{tatlstm_forward.1} parent=0 // pred_fallthru
    _
  // Predicated region
  $region22: #{tatlstm_forward.1} parent=0 // pred_check
    _
  $region23: #{tatlstm_forward.1} parent=0 // pred_check_branch
    %1063 = sbr.rel (0) target = $region25
  $region24: #{tatlstm_forward.1} parent=0 // pred_region
    _
  $region25: #{tatlstm_forward.1} parent=0 // pred_fallthru
    _

// kernel: tatlstm_forward.1
$region0: #{tatlstm_forward.1}
  #allocation0 [shape = 'u32[]', space=smem, size = 0x4, offset = 0x4, fixed_abs, tag = 'smem constant byte address 0x4 - core index']
  #allocation1 [shape = 'u32[144,128]{1,0:T(1,128)}', space=vmem, size = 0x12000, scoped, tag = 'internal scratch']
  #allocation2 [shape = 'f32[8,128]{1,0:T(8,128)}', space=vmem, size = 0x1000, scoped, tag = 'scratch operand']
  %s0 = inlined_call_operand.vmem [shape: f32[8,8,384], index: 0, kind: input, shape index: {}]
  %s1 = inlined_call_operand.vmem [shape: bf16[128,384], index: 1, kind: input, shape index: {}]
  %s2 = inlined_call_operand.vmem [shape: f32[1,128], index: 2, kind: input, shape index: {}]
  %s3 = inlined_call_operand.vmem [shape: f32[8,8,128], index: 3, kind: output, shape index: {}]
  %s4 = sld [smem:[#allocation0]]
  $region26: #{tatlstm_forward.1} parent=0
    _
  %s6 = ssub.s32 1, %s4
  %s7 = scalar_select 0, %s6, %s4
  // Predicated region
  $region2: #{tatlstm_forward.1} parent=0 // pred_check
    _
  $region3: #{tatlstm_forward.1} parent=0 // pred_check_branch
    %9 = sbr.rel (0) target = $region5
  $region4: #{tatlstm_forward.1} parent=0 // pred_region
    _
  $region5: #{tatlstm_forward.1} parent=0 // pred_fallthru
    _
  // Predicated region
  $region6: #{tatlstm_forward.1} parent=0 // pred_check
    _
  $region7: #{tatlstm_forward.1} parent=0 // pred_check_branch
    %11 = sbr.rel (0) target = $region9
  $region8: #{tatlstm_forward.1} parent=0 // pred_region
    _
  $region9: #{tatlstm_forward.1} parent=0 // pred_fallthru
    _
  // Predicated region
  $region10: #{tatlstm_forward.1} parent=0 // pred_check
    _
  $region11: #{tatlstm_forward.1} parent=0 // pred_check_branch
    %13 = sbr.rel (0) target = $region13
  $region12: #{tatlstm_forward.1} parent=0 // pred_region
    _
  $region13: #{tatlstm_forward.1} parent=0 // pred_fallthru
    _
  %p15 = scmp.eq.s32.totalorder 0, 0
  // Predicated region
  $region14: #{tatlstm_forward.1} parent=0 // pred_check
    %p16 = pneg %p15
  $region15: #{tatlstm_forward.1} parent=0 // pred_check_branch
    %18 = sbr.rel (%p16) target = $region17
  $region16: #{tatlstm_forward.1} parent=0 // pred_region
    %19 = vst [vmem:[#allocation2] sm:$0xff] 0.0
  $region17: #{tatlstm_forward.1} parent=0 // pred_fallthru
    _
  %v20 = vld [vmem:[%s1] sm:$0xff]
  %v21 = vld [vmem:[%s1 + $0x8] sm:$0xf]
  %v22 = vld [vmem:[%s1 + $0xc] sm:$0xff]
  %v23 = vld [vmem:[%s1 + $0x14] sm:$0xf]
  %v24 = vld [vmem:[%s1 + $0x18] sm:$0xff]
  %v25 = vld [vmem:[%s1 + $0x20] sm:$0xf]
  %v26 = vld [vmem:[%s1 + $0x24] sm:$0xff]
  %v27 = vld [vmem:[%s1 + $0x2c] sm:$0xf]
  %v28 = vld [vmem:[%s1 + $0x30] sm:$0xff]
  %v29 = vld [vmem:[%s1 + $0x38] sm:$0xf]
  %v30 = vld [vmem:[%s1 + $0x3c] sm:$0xff]
  %v31 = vld [vmem:[%s1 + $0x44] sm:$0xf]
  %v32 = vld [vmem:[%s1 + $0x48] sm:$0xff]
  %v33 = vld [vmem:[%s1 + $0x50] sm:$0xf]
  %v34 = vld [vmem:[%s1 + $0x54] sm:$0xff]
  %v35 = vld [vmem:[%s1 + $0x5c] sm:$0xf]
  %v36 = vld [vmem:[%s1 + $0x60] sm:$0xff]
  %v37 = vld [vmem:[%s1 + $0x68] sm:$0xf]
  %v38 = vld [vmem:[%s1 + $0x6c] sm:$0xff]
  %v39 = vld [vmem:[%s1 + $0x74] sm:$0xf]
  %v40 = vld [vmem:[%s1 + $0x78] sm:$0xff]
  %v41 = vld [vmem:[%s1 + $0x80] sm:$0xf]
  %v42 = vld [vmem:[%s1 + $0x84] sm:$0xff]
  %v43 = vld [vmem:[%s1 + $0x8c] sm:$0xf]
  %v44 = vld [vmem:[%s1 + $0x90] sm:$0xff]
  %v45 = vld [vmem:[%s1 + $0x98] sm:$0xf]
  %v46 = vld [vmem:[%s1 + $0x9c] sm:$0xff]
  %v47 = vld [vmem:[%s1 + $0xa4] sm:$0xf]
  %v48 = vld [vmem:[%s1 + $0xa8] sm:$0xff]
  %v49 = vld [vmem:[%s1 + $0xb0] sm:$0xf]
  %v50 = vld [vmem:[%s1 + $0xb4] sm:$0xff]
  %v51 = vld [vmem:[%s1 + $0xbc] sm:$0xf]
  %v52 = vld [vmem:[%s2] sm:$0x1]
  %v54 = vlaneseq
  %v55 = vshrl.u32 %v54, 7
  %v56 = vsub.s32 0, %v55
  %v57 = vrot.slane %v52, %v56
  %v59 = vld [vmem:[#allocation2] sm:$0xff]
  %v60 = vpack.c.bf16 %v59, %v59
  %v93 = vunpack.c.l.b16 %v20
  %v94 = vunpack.c.h.b16 %v20
  %v95 = vunpack.c.l.b16 %v21
  %v96 = vunpack.c.l.b16 %v22
  %v97 = vunpack.c.h.b16 %v22
  %v98 = vunpack.c.l.b16 %v23
  %v99 = vunpack.c.l.b16 %v24
  %v100 = vunpack.c.h.b16 %v24
  %v101 = vunpack.c.l.b16 %v25
  %v102 = vunpack.c.l.b16 %v26
  %v103 = vunpack.c.h.b16 %v26
  %v104 = vunpack.c.l.b16 %v27
  %v105 = vunpack.c.l.b16 %v28
  %v106 = vunpack.c.h.b16 %v28
  %v107 = vunpack.c.l.b16 %v29
  %v108 = vunpack.c.l.b16 %v30
  %v109 = vunpack.c.h.b16 %v30
  %v110 = vunpack.c.l.b16 %v31
  %v111 = vunpack.c.l.b16 %v32
  %v112 = vunpack.c.h.b16 %v32
  %v113 = vunpack.c.l.b16 %v33
  %v114 = vunpack.c.l.b16 %v34
  %v115 = vunpack.c.h.b16 %v34
  %v116 = vunpack.c.l.b16 %v35
  %v117 = vunpack.c.l.b16 %v36
  %v118 = vunpack.c.h.b16 %v36
  %v119 = vunpack.c.l.b16 %v37
  %v120 = vunpack.c.l.b16 %v38
  %v121 = vunpack.c.h.b16 %v38
  %v122 = vunpack.c.l.b16 %v39
  %v123 = vunpack.c.l.b16 %v40
  %v124 = vunpack.c.h.b16 %v40
  %v125 = vunpack.c.l.b16 %v41
  %v126 = vunpack.c.l.b16 %v42
  %v127 = vunpack.c.h.b16 %v42
  %v128 = vunpack.c.l.b16 %v43
  %v129 = vunpack.c.l.b16 %v44
  %v130 = vunpack.c.h.b16 %v44
  %v131 = vunpack.c.l.b16 %v45
  %v132 = vunpack.c.l.b16 %v46
  %v133 = vunpack.c.h.b16 %v46
  %v134 = vunpack.c.l.b16 %v47
  %v135 = vunpack.c.l.b16 %v48
  %v136 = vunpack.c.h.b16 %v48
  %v137 = vunpack.c.l.b16 %v49
  %v138 = vunpack.c.l.b16 %v50
  %v139 = vunpack.c.h.b16 %v50
  %v140 = vunpack.c.l.b16 %v51
  %v141 = vpack.c.b16 %v96, %v93
  %v142 = vpack.c.b16 %v97, %v94
  %v143 = vpack.c.b16 %v98, %v95
  %v144 = vpack.c.b16 %v102, %v99
  %v145 = vpack.c.b16 %v103, %v100
  %v146 = vpack.c.b16 %v104, %v101
  %v147 = vpack.c.b16 %v108, %v105
  %v148 = vpack.c.b16 %v109, %v106
  %v149 = vpack.c.b16 %v110, %v107
  %v150 = vpack.c.b16 %v114, %v111
  %v151 = vpack.c.b16 %v115, %v112
  %v152 = vpack.c.b16 %v116, %v113
  %v153 = vpack.c.b16 %v120, %v117
  %v154 = vpack.c.b16 %v121, %v118
  %v155 = vpack.c.b16 %v122, %v119
  %v156 = vpack.c.b16 %v126, %v123
  %v157 = vpack.c.b16 %v127, %v124
  %v158 = vpack.c.b16 %v128, %v125
  %v159 = vpack.c.b16 %v132, %v129
  %v160 = vpack.c.b16 %v133, %v130
  %v161 = vpack.c.b16 %v134, %v131
  %v162 = vpack.c.b16 %v138, %v135
  %v163 = vpack.c.b16 %v139, %v136
  %v164 = vpack.c.b16 %v140, %v137
  %189 = vmatprep.subr.bf16.mxu0 %v163
  %190 = vmatpush1.bf16.msra.mxu0 %v162
  %191 = vmatprep.subr.bf16.mxu0 %v160
  %192 = vmatpush1.bf16.msra.mxu0 %v159
  %193 = vmatprep.subr.bf16.mxu0 %v157
  %194 = vmatpush1.bf16.msra.mxu0 %v156
  %195 = vmatprep.subr.bf16.mxu0 %v154
  %196 = vmatpush1.bf16.msra.mxu0 %v153
  %197 = vmatprep.subr.bf16.mxu0 %v151
  %198 = vmatpush1.bf16.msra.mxu0 %v150
  %199 = vmatprep.subr.bf16.mxu0 %v148
  %200 = vmatpush1.bf16.msra.mxu0 %v147
  %201 = vmatprep.subr.bf16.mxu0 %v145
  %202 = vmatpush1.bf16.msra.mxu0 %v144
  %203 = vmatprep.subr.bf16.mxu0 %v142
  %204 = vmatpush1.bf16.msra.mxu0 %v141
  %205 = vmatprep.subr.bf16.mxu0 0
  %206 = vmatpush2.bf16.msra.mxu0 0
  %207 = vmatprep.subr.bf16.mxu0 0
  %208 = vmatpush2.bf16.msra.mxu0 0
  %209 = vmatprep.subr.bf16.mxu0 0
  %210 = vmatpush2.bf16.msra.mxu0 0
  %211 = vmatprep.subr.bf16.mxu0 0
  %212 = vmatpush2.bf16.msra.mxu0 0
  %213 = vmatprep.subr.bf16.mxu0 0
  %214 = vmatpush2.bf16.msra.mxu0 0
  %215 = vmatprep.subr.bf16.mxu0 0
  %216 = vmatpush2.bf16.msra.mxu0 0
  %217 = vmatprep.subr.bf16.mxu0 0
  %218 = vmatpush2.bf16.msra.mxu0 0
  %219 = vmatprep.subr.bf16.mxu0 0
  %220 = vmatpush2.bf16.msra.mxu0 0
  %221 = vmatprep.mubr.bf16.mxu0 0
  %222 = vmatmul.mubr.bf16.gmra.mxu0 %v60
  %v223 = vpop.f32.mrf.mxu0
  %v224 = vadd.f32 0.0, %v223
  %v225 = vpop.f32.mrf.mxu0
  %v226 = vadd.f32 0.0, %v225
  %v227 = vpop.f32.mrf.mxu0
  %v228 = vpop.f32.mrf.mxu0
  %229 = vdwg.mxu0
  %230 = vmatprep.subr.bf16.mxu0 0
  %231 = vmatpush1.bf16.msra.mxu0 %v164
  %232 = vmatprep.subr.bf16.mxu0 0
  %233 = vmatpush1.bf16.msra.mxu0 %v161
  %234 = vmatprep.subr.bf16.mxu0 0
  %235 = vmatpush1.bf16.msra.mxu0 %v158
  %236 = vmatprep.subr.bf16.mxu0 0
  %237 = vmatpush1.bf16.msra.mxu0 %v155
  %238 = vmatprep.subr.bf16.mxu0 0
  %239 = vmatpush1.bf16.msra.mxu0 %v152
  %240 = vmatprep.subr.bf16.mxu0 0
  %241 = vmatpush1.bf16.msra.mxu0 %v149
  %242 = vmatprep.subr.bf16.mxu0 0
  %243 = vmatpush1.bf16.msra.mxu0 %v146
  %244 = vmatprep.subr.bf16.mxu0 0
  %245 = vmatpush1.bf16.msra.mxu0 %v143
  %246 = vmatprep.subr.bf16.mxu0 0
  %247 = vmatpush2.bf16.msra.mxu0 0
  %248 = vmatprep.subr.bf16.mxu0 0
  %249 = vmatpush2.bf16.msra.mxu0 0
  %250 = vmatprep.subr.bf16.mxu0 0
  %251 = vmatpush2.bf16.msra.mxu0 0
  %252 = vmatprep.subr.bf16.mxu0 0
  %253 = vmatpush2.bf16.msra.mxu0 0
  %254 = vmatprep.subr.bf16.mxu0 0
  %255 = vmatpush2.bf16.msra.mxu0 0
  %256 = vmatprep.subr.bf16.mxu0 0
  %257 = vmatpush2.bf16.msra.mxu0 0
  %258 = vmatprep.subr.bf16.mxu0 0
  %259 = vmatpush2.bf16.msra.mxu0 0
  %260 = vmatprep.subr.bf16.mxu0 0
  %261 = vmatpush2.bf16.msra.mxu0 0
  %262 = vmatprep.mubr.bf16.mxu0 0
  %263 = vmatmul.mubr.bf16.gmra.mxu0 %v60
  %v264 = vpop.f32.mrf.mxu0
  %v265 = vadd.f32 0.0, %v264
  %v266 = vpop.f32.mrf.mxu0
  %v267 = vpop.f32.mrf.mxu0
  %v268 = vpop.f32.mrf.mxu0
  %269 = vdwg.mxu0
  %v270 = vld [vmem:[%s0] sm:$0xff]
  %v271 = vld [vmem:[%s0 + $0x8] sm:$0xff]
  %v272 = vld [vmem:[%s0 + $0x10] sm:$0xff]
  %v273 = vadd.f32 %v270, %v224
  %v274 = vxor.u32 %v273, 2147483648
  %v275 = vmul.f32 %v274, 1.442695
  %v276 = vpow.pop %v275
  %v277 = vadd.f32 %v276, 1.0
  %v278 = vrcp.pop %v277
  %v279 = vmul.f32 1.0, %v278
  %v280 = vadd.f32 %v271, %v226
  %v281 = vxor.u32 %v280, 2147483648
  %v282 = vmul.f32 %v281, 1.442695
  %v283 = vpow.pop %v282
  %v284 = vadd.f32 %v283, 1.0
  %v285 = vrcp.pop %v284
  %v286 = vmul.f32 1.0, %v285
  %v287 = vadd.f32 %v265, %v57
  %v288 = vmul.f32 %v279, %v287
  %v289 = vadd.f32 %v272, %v288
  %v290 = vtanh.pop %v289
  %v291 = vsub.f32 %v59, %v290
  %v292 = vmul.f32 %v286, %v291
  %v293 = vadd.f32 %v290, %v292
  %294 = vst [vmem:[%s3] sm:$0xff] %v293
  %v295 = vpack.c.bf16 %v293, %v293
  %296 = vmatprep.subr.bf16.mxu0 %v163
  %297 = vmatpush1.bf16.msra.mxu0 %v162
  %298 = vmatprep.subr.bf16.mxu0 %v160
  %299 = vmatpush1.bf16.msra.mxu0 %v159
  %300 = vmatprep.subr.bf16.mxu0 %v157
  %301 = vmatpush1.bf16.msra.mxu0 %v156
  %302 = vmatprep.subr.bf16.mxu0 %v154
  %303 = vmatpush1.bf16.msra.mxu0 %v153
  %304 = vmatprep.subr.bf16.mxu0 %v151
  %305 = vmatpush1.bf16.msra.mxu0 %v150
  %306 = vmatprep.subr.bf16.mxu0 %v148
  %307 = vmatpush1.bf16.msra.mxu0 %v147
  %308 = vmatprep.subr.bf16.mxu0 %v145
  %309 = vmatpush1.bf16.msra.mxu0 %v144
  %310 = vmatprep.subr.bf16.mxu0 %v142
  %311 = vmatpush1.bf16.msra.mxu0 %v141
  %312 = vmatprep.subr.bf16.mxu0 0
  %313 = vmatpush2.bf16.msra.mxu0 0
  %314 = vmatprep.subr.bf16.mxu0 0
  %315 = vmatpush2.bf16.msra.mxu0 0
  %316 = vmatprep.subr.bf16.mxu0 0
  %317 = vmatpush2.bf16.msra.mxu0 0
  %318 = vmatprep.subr.bf16.mxu0 0
  %319 = vmatpush2.bf16.msra.mxu0 0
  %320 = vmatprep.subr.bf16.mxu0 0
  %321 = vmatpush2.bf16.msra.mxu0 0
  %322 = vmatprep.subr.bf16.mxu0 0
  %323 = vmatpush2.bf16.msra.mxu0 0
  %324 = vmatprep.subr.bf16.mxu0 0
  %325 = vmatpush2.bf16.msra.mxu0 0
  %326 = vmatprep.subr.bf16.mxu0 0
  %327 = vmatpush2.bf16.msra.mxu0 0
  %328 = vmatprep.mubr.bf16.mxu0 0
  %329 = vmatmul.mubr.bf16.gmra.mxu0 %v295
  %v330 = vpop.f32.mrf.mxu0
  %v331 = vadd.f32 0.0, %v330
  %v332 = vpop.f32.mrf.mxu0
  %v333 = vadd.f32 0.0, %v332
  %v334 = vpop.f32.mrf.mxu0
  %v335 = vpop.f32.mrf.mxu0
  %336 = vdwg.mxu0
  %337 = vmatprep.subr.bf16.mxu0 0
  %338 = vmatpush1.bf16.msra.mxu0 %v164
  %339 = vmatprep.subr.bf16.mxu0 0
  %340 = vmatpush1.bf16.msra.mxu0 %v161
  %341 = vmatprep.subr.bf16.mxu0 0
  %342 = vmatpush1.bf16.msra.mxu0 %v158
  %343 = vmatprep.subr.bf16.mxu0 0
  %344 = vmatpush1.bf16.msra.mxu0 %v155
  %345 = vmatprep.subr.bf16.mxu0 0
  %346 = vmatpush1.bf16.msra.mxu0 %v152
  %347 = vmatprep.subr.bf16.mxu0 0
  %348 = vmatpush1.bf16.msra.mxu0 %v149
  %349 = vmatprep.subr.bf16.mxu0 0
  %350 = vmatpush1.bf16.msra.mxu0 %v146
  %351 = vmatprep.subr.bf16.mxu0 0
  %352 = vmatpush1.bf16.msra.mxu0 %v143
  %353 = vmatprep.subr.bf16.mxu0 0
  %354 = vmatpush2.bf16.msra.mxu0 0
  %355 = vmatprep.subr.bf16.mxu0 0
  %356 = vmatpush2.bf16.msra.mxu0 0
  %357 = vmatprep.subr.bf16.mxu0 0
  %358 = vmatpush2.bf16.msra.mxu0 0
  %359 = vmatprep.subr.bf16.mxu0 0
  %360 = vmatpush2.bf16.msra.mxu0 0
  %361 = vmatprep.subr.bf16.mxu0 0
  %362 = vmatpush2.bf16.msra.mxu0 0
  %363 = vmatprep.subr.bf16.mxu0 0
  %364 = vmatpush2.bf16.msra.mxu0 0
  %365 = vmatprep.subr.bf16.mxu0 0
  %366 = vmatpush2.bf16.msra.mxu0 0
  %367 = vmatprep.subr.bf16.mxu0 0
  %368 = vmatpush2.bf16.msra.mxu0 0
  %369 = vmatprep.mubr.bf16.mxu0 0
  %370 = vmatmul.mubr.bf16.gmra.mxu0 %v295
  %v371 = vpop.f32.mrf.mxu0
  %v372 = vadd.f32 0.0, %v371
  %v373 = vpop.f32.mrf.mxu0
  %v374 = vpop.f32.mrf.mxu0
  %v375 = vpop.f32.mrf.mxu0
  %376 = vdwg.mxu0
  %s377 = scalar_lea.vmem %s0, 24
  %v378 = vld [vmem:[%s377] sm:$0xff]
  %v379 = vld [vmem:[%s377 + $0x8] sm:$0xff]
  %v380 = vld [vmem:[%s377 + $0x10] sm:$0xff]
  %v381 = vadd.f32 %v378, %v331
  %v382 = vxor.u32 %v381, 2147483648
  %v383 = vmul.f32 %v382, 1.442695
  %v384 = vpow.pop %v383
  %v385 = vadd.f32 %v384, 1.0
  %v386 = vrcp.pop %v385
  %v387 = vmul.f32 1.0, %v386
  %v388 = vadd.f32 %v379, %v333
  %v389 = vxor.u32 %v388, 2147483648
  %v390 = vmul.f32 %v389, 1.442695
  %v391 = vpow.pop %v390
  %v392 = vadd.f32 %v391, 1.0
  %v393 = vrcp.pop %v392
  %v394 = vmul.f32 1.0, %v393
  %v395 = vadd.f32 %v372, %v57
  %v396 = vmul.f32 %v387, %v395
  %v397 = vadd.f32 %v380, %v396
  %v398 = vtanh.pop %v397
  %v399 = vsub.f32 %v293, %v398
  %v400 = vmul.f32 %v394, %v399
  %v401 = vadd.f32 %v398, %v400
  %s402 = scalar_lea.vmem %s3, 8
  %403 = vst [vmem:[%s402] sm:$0xff] %v401
  %v404 = vpack.c.bf16 %v401, %v401
  %405 = vmatprep.subr.bf16.mxu0 %v163
  %406 = vmatpush1.bf16.msra.mxu0 %v162
  %407 = vmatprep.subr.bf16.mxu0 %v160
  %408 = vmatpush1.bf16.msra.mxu0 %v159
  %409 = vmatprep.subr.bf16.mxu0 %v157
  %410 = vmatpush1.bf16.msra.mxu0 %v156
  %411 = vmatprep.subr.bf16.mxu0 %v154
  %412 = vmatpush1.bf16.msra.mxu0 %v153
  %413 = vmatprep.subr.bf16.mxu0 %v151
  %414 = vmatpush1.bf16.msra.mxu0 %v150
  %415 = vmatprep.subr.bf16.mxu0 %v148
  %416 = vmatpush1.bf16.msra.mxu0 %v147
  %417 = vmatprep.subr.bf16.mxu0 %v145
  %418 = vmatpush1.bf16.msra.mxu0 %v144
  %419 = vmatprep.subr.bf16.mxu0 %v142
  %420 = vmatpush1.bf16.msra.mxu0 %v141
  %421 = vmatprep.subr.bf16.mxu0 0
  %422 = vmatpush2.bf16.msra.mxu0 0
  %423 = vmatprep.subr.bf16.mxu0 0
  %424 = vmatpush2.bf16.msra.mxu0 0
  %425 = vmatprep.subr.bf16.mxu0 0
  %426 = vmatpush2.bf16.msra.mxu0 0
  %427 = vmatprep.subr.bf16.mxu0 0
  %428 = vmatpush2.bf16.msra.mxu0 0
  %429 = vmatprep.subr.bf16.mxu0 0
  %430 = vmatpush2.bf16.msra.mxu0 0
  %431 = vmatprep.subr.bf16.mxu0 0
  %432 = vmatpush2.bf16.msra.mxu0 0
  %433 = vmatprep.subr.bf16.mxu0 0
  %434 = vmatpush2.bf16.msra.mxu0 0
  %435 = vmatprep.subr.bf16.mxu0 0
  %436 = vmatpush2.bf16.msra.mxu0 0
  %437 = vmatprep.mubr.bf16.mxu0 0
  %438 = vmatmul.mubr.bf16.gmra.mxu0 %v404
  %v439 = vpop.f32.mrf.mxu0
  %v440 = vadd.f32 0.0, %v439
  %v441 = vpop.f32.mrf.mxu0
  %v442 = vadd.f32 0.0, %v441
  %v443 = vpop.f32.mrf.mxu0
  %v444 = vpop.f32.mrf.mxu0
  %445 = vdwg.mxu0
  %446 = vmatprep.subr.bf16.mxu0 0
  %447 = vmatpush1.bf16.msra.mxu0 %v164
  %448 = vmatprep.subr.bf16.mxu0 0
  %449 = vmatpush1.bf16.msra.mxu0 %v161
  %450 = vmatprep.subr.bf16.mxu0 0
  %451 = vmatpush1.bf16.msra.mxu0 %v158
  %452 = vmatprep.subr.bf16.mxu0 0
  %453 = vmatpush1.bf16.msra.mxu0 %v155
  %454 = vmatprep.subr.bf16.mxu0 0
  %455 = vmatpush1.bf16.msra.mxu0 %v152
  %456 = vmatprep.subr.bf16.mxu0 0
  %457 = vmatpush1.bf16.msra.mxu0 %v149
  %458 = vmatprep.subr.bf16.mxu0 0
  %459 = vmatpush1.bf16.msra.mxu0 %v146
  %460 = vmatprep.subr.bf16.mxu0 0
  %461 = vmatpush1.bf16.msra.mxu0 %v143
  %462 = vmatprep.subr.bf16.mxu0 0
  %463 = vmatpush2.bf16.msra.mxu0 0
  %464 = vmatprep.subr.bf16.mxu0 0
  %465 = vmatpush2.bf16.msra.mxu0 0
  %466 = vmatprep.subr.bf16.mxu0 0
  %467 = vmatpush2.bf16.msra.mxu0 0
  %468 = vmatprep.subr.bf16.mxu0 0
  %469 = vmatpush2.bf16.msra.mxu0 0
  %470 = vmatprep.subr.bf16.mxu0 0
  %471 = vmatpush2.bf16.msra.mxu0 0
  %472 = vmatprep.subr.bf16.mxu0 0
  %473 = vmatpush2.bf16.msra.mxu0 0
  %474 = vmatprep.subr.bf16.mxu0 0
  %475 = vmatpush2.bf16.msra.mxu0 0
  %476 = vmatprep.subr.bf16.mxu0 0
  %477 = vmatpush2.bf16.msra.mxu0 0
  %478 = vmatprep.mubr.bf16.mxu0 0
  %479 = vmatmul.mubr.bf16.gmra.mxu0 %v404
  %v480 = vpop.f32.mrf.mxu0
  %v481 = vadd.f32 0.0, %v480
  %v482 = vpop.f32.mrf.mxu0
  %v483 = vpop.f32.mrf.mxu0
  %v484 = vpop.f32.mrf.mxu0
  %485 = vdwg.mxu0
  %s486 = scalar_lea.vmem %s0, 48
  %v487 = vld [vmem:[%s486] sm:$0xff]
  %v488 = vld [vmem:[%s486 + $0x8] sm:$0xff]
  %v489 = vld [vmem:[%s486 + $0x10] sm:$0xff]
  %v490 = vadd.f32 %v487, %v440
  %v491 = vxor.u32 %v490, 2147483648
  %v492 = vmul.f32 %v491, 1.442695
  %v493 = vpow.pop %v492
  %v494 = vadd.f32 %v493, 1.0
  %v495 = vrcp.pop %v494
  %v496 = vmul.f32 1.0, %v495
  %v497 = vadd.f32 %v488, %v442
  %v498 = vxor.u32 %v497, 2147483648
  %v499 = vmul.f32 %v498, 1.442695
  %v500 = vpow.pop %v499
  %v501 = vadd.f32 %v500, 1.0
  %v502 = vrcp.pop %v501
  %v503 = vmul.f32 1.0, %v502
  %v504 = vadd.f32 %v481, %v57
  %v505 = vmul.f32 %v496, %v504
  %v506 = vadd.f32 %v489, %v505
  %v507 = vtanh.pop %v506
  %v508 = vsub.f32 %v401, %v507
  %v509 = vmul.f32 %v503, %v508
  %v510 = vadd.f32 %v507, %v509
  %s511 = scalar_lea.vmem %s3, 16
  %512 = vst [vmem:[%s511] sm:$0xff] %v510
  %v513 = vpack.c.bf16 %v510, %v510
  %514 = vmatprep.subr.bf16.mxu0 %v163
  %515 = vmatpush1.bf16.msra.mxu0 %v162
  %516 = vmatprep.subr.bf16.mxu0 %v160
  %517 = vmatpush1.bf16.msra.mxu0 %v159
  %518 = vmatprep.subr.bf16.mxu0 %v157
  %519 = vmatpush1.bf16.msra.mxu0 %v156
  %520 = vmatprep.subr.bf16.mxu0 %v154
  %521 = vmatpush1.bf16.msra.mxu0 %v153
  %522 = vmatprep.subr.bf16.mxu0 %v151
  %523 = vmatpush1.bf16.msra.mxu0 %v150
  %524 = vmatprep.subr.bf16.mxu0 %v148
  %525 = vmatpush1.bf16.msra.mxu0 %v147
  %526 = vmatprep.subr.bf16.mxu0 %v145
  %527 = vmatpush1.bf16.msra.mxu0 %v144
  %528 = vmatprep.subr.bf16.mxu0 %v142
  %529 = vmatpush1.bf16.msra.mxu0 %v141
  %530 = vmatprep.subr.bf16.mxu0 0
  %531 = vmatpush2.bf16.msra.mxu0 0
  %532 = vmatprep.subr.bf16.mxu0 0
  %533 = vmatpush2.bf16.msra.mxu0 0
  %534 = vmatprep.subr.bf16.mxu0 0
  %535 = vmatpush2.bf16.msra.mxu0 0
  %536 = vmatprep.subr.bf16.mxu0 0
  %537 = vmatpush2.bf16.msra.mxu0 0
  %538 = vmatprep.subr.bf16.mxu0 0
  %539 = vmatpush2.bf16.msra.mxu0 0
  %540 = vmatprep.subr.bf16.mxu0 0
  %541 = vmatpush2.bf16.msra.mxu0 0
  %542 = vmatprep.subr.bf16.mxu0 0
  %543 = vmatpush2.bf16.msra.mxu0 0
  %544 = vmatprep.subr.bf16.mxu0 0
  %545 = vmatpush2.bf16.msra.mxu0 0
  %546 = vmatprep.mubr.bf16.mxu0 0
  %547 = vmatmul.mubr.bf16.gmra.mxu0 %v513
  %v548 = vpop.f32.mrf.mxu0
  %v549 = vadd.f32 0.0, %v548
  %v550 = vpop.f32.mrf.mxu0
  %v551 = vadd.f32 0.0, %v550
  %v552 = vpop.f32.mrf.mxu0
  %v553 = vpop.f32.mrf.mxu0
  %554 = vdwg.mxu0
  %555 = vmatprep.subr.bf16.mxu0 0
  %556 = vmatpush1.bf16.msra.mxu0 %v164
  %557 = vmatprep.subr.bf16.mxu0 0
  %558 = vmatpush1.bf16.msra.mxu0 %v161
  %559 = vmatprep.subr.bf16.mxu0 0
  %560 = vmatpush1.bf16.msra.mxu0 %v158
  %561 = vmatprep.subr.bf16.mxu0 0
  %562 = vmatpush1.bf16.msra.mxu0 %v155
  %563 = vmatprep.subr.bf16.mxu0 0
  %564 = vmatpush1.bf16.msra.mxu0 %v152
  %565 = vmatprep.subr.bf16.mxu0 0
  %566 = vmatpush1.bf16.msra.mxu0 %v149
  %567 = vmatprep.subr.bf16.mxu0 0
  %568 = vmatpush1.bf16.msra.mxu0 %v146
  %569 = vmatprep.subr.bf16.mxu0 0
  %570 = vmatpush1.bf16.msra.mxu0 %v143
  %571 = vmatprep.subr.bf16.mxu0 0
  %572 = vmatpush2.bf16.msra.mxu0 0
  %573 = vmatprep.subr.bf16.mxu0 0
  %574 = vmatpush2.bf16.msra.mxu0 0
  %575 = vmatprep.subr.bf16.mxu0 0
  %576 = vmatpush2.bf16.msra.mxu0 0
  %577 = vmatprep.subr.bf16.mxu0 0
  %578 = vmatpush2.bf16.msra.mxu0 0
  %579 = vmatprep.subr.bf16.mxu0 0
  %580 = vmatpush2.bf16.msra.mxu0 0
  %581 = vmatprep.subr.bf16.mxu0 0
  %582 = vmatpush2.bf16.msra.mxu0 0
  %583 = vmatprep.subr.bf16.mxu0 0
  %584 = vmatpush2.bf16.msra.mxu0 0
  %585 = vmatprep.subr.bf16.mxu0 0
  %586 = vmatpush2.bf16.msra.mxu0 0
  %587 = vmatprep.mubr.bf16.mxu0 0
  %588 = vmatmul.mubr.bf16.gmra.mxu0 %v513
  %v589 = vpop.f32.mrf.mxu0
  %v590 = vadd.f32 0.0, %v589
  %v591 = vpop.f32.mrf.mxu0
  %v592 = vpop.f32.mrf.mxu0
  %v593 = vpop.f32.mrf.mxu0
  %594 = vdwg.mxu0
  %s595 = scalar_lea.vmem %s0, 72
  %v596 = vld [vmem:[%s595] sm:$0xff]
  %v597 = vld [vmem:[%s595 + $0x8] sm:$0xff]
  %v598 = vld [vmem:[%s595 + $0x10] sm:$0xff]
  %v599 = vadd.f32 %v596, %v549
  %v600 = vxor.u32 %v599, 2147483648
  %v601 = vmul.f32 %v600, 1.442695
  %v602 = vpow.pop %v601
  %v603 = vadd.f32 %v602, 1.0
  %v604 = vrcp.pop %v603
  %v605 = vmul.f32 1.0, %v604
  %v606 = vadd.f32 %v597, %v551
  %v607 = vxor.u32 %v606, 2147483648
  %v608 = vmul.f32 %v607, 1.442695
  %v609 = vpow.pop %v608
  %v610 = vadd.f32 %v609, 1.0
  %v611 = vrcp.pop %v610
  %v612 = vmul.f32 1.0, %v611
  %v613 = vadd.f32 %v590, %v57
  %v614 = vmul.f32 %v605, %v613
  %v615 = vadd.f32 %v598, %v614
  %v616 = vtanh.pop %v615
  %v617 = vsub.f32 %v510, %v616
  %v618 = vmul.f32 %v612, %v617
  %v619 = vadd.f32 %v616, %v618
  %s620 = scalar_lea.vmem %s3, 24
  %621 = vst [vmem:[%s620] sm:$0xff] %v619
  %v622 = vpack.c.bf16 %v619, %v619
  %623 = vmatprep.subr.bf16.mxu0 %v163
  %624 = vmatpush1.bf16.msra.mxu0 %v162
  %625 = vmatprep.subr.bf16.mxu0 %v160
  %626 = vmatpush1.bf16.msra.mxu0 %v159
  %627 = vmatprep.subr.bf16.mxu0 %v157
  %628 = vmatpush1.bf16.msra.mxu0 %v156
  %629 = vmatprep.subr.bf16.mxu0 %v154
  %630 = vmatpush1.bf16.msra.mxu0 %v153
  %631 = vmatprep.subr.bf16.mxu0 %v151
  %632 = vmatpush1.bf16.msra.mxu0 %v150
  %633 = vmatprep.subr.bf16.mxu0 %v148
  %634 = vmatpush1.bf16.msra.mxu0 %v147
  %635 = vmatprep.subr.bf16.mxu0 %v145
  %636 = vmatpush1.bf16.msra.mxu0 %v144
  %637 = vmatprep.subr.bf16.mxu0 %v142
  %638 = vmatpush1.bf16.msra.mxu0 %v141
  %639 = vmatprep.subr.bf16.mxu0 0
  %640 = vmatpush2.bf16.msra.mxu0 0
  %641 = vmatprep.subr.bf16.mxu0 0
  %642 = vmatpush2.bf16.msra.mxu0 0
  %643 = vmatprep.subr.bf16.mxu0 0
  %644 = vmatpush2.bf16.msra.mxu0 0
  %645 = vmatprep.subr.bf16.mxu0 0
  %646 = vmatpush2.bf16.msra.mxu0 0
  %647 = vmatprep.subr.bf16.mxu0 0
  %648 = vmatpush2.bf16.msra.mxu0 0
  %649 = vmatprep.subr.bf16.mxu0 0
  %650 = vmatpush2.bf16.msra.mxu0 0
  %651 = vmatprep.subr.bf16.mxu0 0
  %652 = vmatpush2.bf16.msra.mxu0 0
  %653 = vmatprep.subr.bf16.mxu0 0
  %654 = vmatpush2.bf16.msra.mxu0 0
  %655 = vmatprep.mubr.bf16.mxu0 0
  %656 = vmatmul.mubr.bf16.gmra.mxu0 %v622
  %v657 = vpop.f32.mrf.mxu0
  %v658 = vadd.f32 0.0, %v657
  %v659 = vpop.f32.mrf.mxu0
  %v660 = vadd.f32 0.0, %v659
  %v661 = vpop.f32.mrf.mxu0
  %v662 = vpop.f32.mrf.mxu0
  %663 = vdwg.mxu0
  %664 = vmatprep.subr.bf16.mxu0 0
  %665 = vmatpush1.bf16.msra.mxu0 %v164
  %666 = vmatprep.subr.bf16.mxu0 0
  %667 = vmatpush1.bf16.msra.mxu0 %v161
  %668 = vmatprep.subr.bf16.mxu0 0
  %669 = vmatpush1.bf16.msra.mxu0 %v158
  %670 = vmatprep.subr.bf16.mxu0 0
  %671 = vmatpush1.bf16.msra.mxu0 %v155
  %672 = vmatprep.subr.bf16.mxu0 0
  %673 = vmatpush1.bf16.msra.mxu0 %v152
  %674 = vmatprep.subr.bf16.mxu0 0
  %675 = vmatpush1.bf16.msra.mxu0 %v149
  %676 = vmatprep.subr.bf16.mxu0 0
  %677 = vmatpush1.bf16.msra.mxu0 %v146
  %678 = vmatprep.subr.bf16.mxu0 0
  %679 = vmatpush1.bf16.msra.mxu0 %v143
  %680 = vmatprep.subr.bf16.mxu0 0
  %681 = vmatpush2.bf16.msra.mxu0 0
  %682 = vmatprep.subr.bf16.mxu0 0
  %683 = vmatpush2.bf16.msra.mxu0 0
  %684 = vmatprep.subr.bf16.mxu0 0
  %685 = vmatpush2.bf16.msra.mxu0 0
  %686 = vmatprep.subr.bf16.mxu0 0
  %687 = vmatpush2.bf16.msra.mxu0 0
  %688 = vmatprep.subr.bf16.mxu0 0
  %689 = vmatpush2.bf16.msra.mxu0 0
  %690 = vmatprep.subr.bf16.mxu0 0
  %691 = vmatpush2.bf16.msra.mxu0 0
  %692 = vmatprep.subr.bf16.mxu0 0
  %693 = vmatpush2.bf16.msra.mxu0 0
  %694 = vmatprep.subr.bf16.mxu0 0
  %695 = vmatpush2.bf16.msra.mxu0 0
  %696 = vmatprep.mubr.bf16.mxu0 0
  %697 = vmatmul.mubr.bf16.gmra.mxu0 %v622
  %v698 = vpop.f32.mrf.mxu0
  %v699 = vadd.f32 0.0, %v698
  %v700 = vpop.f32.mrf.mxu0
  %v701 = vpop.f32.mrf.mxu0
  %v702 = vpop.f32.mrf.mxu0
  %703 = vdwg.mxu0
  %s704 = scalar_lea.vmem %s0, 96
  %v705 = vld [vmem:[%s704] sm:$0xff]
  %v706 = vld [vmem:[%s704 + $0x8] sm:$0xff]
  %v707 = vld [vmem:[%s704 + $0x10] sm:$0xff]
  %v708 = vadd.f32 %v705, %v658
  %v709 = vxor.u32 %v708, 2147483648
  %v710 = vmul.f32 %v709, 1.442695
  %v711 = vpow.pop %v710
  %v712 = vadd.f32 %v711, 1.0
  %v713 = vrcp.pop %v712
  %v714 = vmul.f32 1.0, %v713
  %v715 = vadd.f32 %v706, %v660
  %v716 = vxor.u32 %v715, 2147483648
  %v717 = vmul.f32 %v716, 1.442695
  %v718 = vpow.pop %v717
  %v719 = vadd.f32 %v718, 1.0
  %v720 = vrcp.pop %v719
  %v721 = vmul.f32 1.0, %v720
  %v722 = vadd.f32 %v699, %v57
  %v723 = vmul.f32 %v714, %v722
  %v724 = vadd.f32 %v707, %v723
  %v725 = vtanh.pop %v724
  %v726 = vsub.f32 %v619, %v725
  %v727 = vmul.f32 %v721, %v726
  %v728 = vadd.f32 %v725, %v727
  %s729 = scalar_lea.vmem %s3, 32
  %730 = vst [vmem:[%s729] sm:$0xff] %v728
  %v731 = vpack.c.bf16 %v728, %v728
  %732 = vmatprep.subr.bf16.mxu0 %v163
  %733 = vmatpush1.bf16.msra.mxu0 %v162
  %734 = vmatprep.subr.bf16.mxu0 %v160
  %735 = vmatpush1.bf16.msra.mxu0 %v159
  %736 = vmatprep.subr.bf16.mxu0 %v157
  %737 = vmatpush1.bf16.msra.mxu0 %v156
  %738 = vmatprep.subr.bf16.mxu0 %v154
  %739 = vmatpush1.bf16.msra.mxu0 %v153
  %740 = vmatprep.subr.bf16.mxu0 %v151
  %741 = vmatpush1.bf16.msra.mxu0 %v150
  %742 = vmatprep.subr.bf16.mxu0 %v148
  %743 = vmatpush1.bf16.msra.mxu0 %v147
  %744 = vmatprep.subr.bf16.mxu0 %v145
  %745 = vmatpush1.bf16.msra.mxu0 %v144
  %746 = vmatprep.subr.bf16.mxu0 %v142
  %747 = vmatpush1.bf16.msra.mxu0 %v141
  %748 = vmatprep.subr.bf16.mxu0 0
  %749 = vmatpush2.bf16.msra.mxu0 0
  %750 = vmatprep.subr.bf16.mxu0 0
  %751 = vmatpush2.bf16.msra.mxu0 0
  %752 = vmatprep.subr.bf16.mxu0 0
  %753 = vmatpush2.bf16.msra.mxu0 0
  %754 = vmatprep.subr.bf16.mxu0 0
  %755 = vmatpush2.bf16.msra.mxu0 0
  %756 = vmatprep.subr.bf16.mxu0 0
  %757 = vmatpush2.bf16.msra.mxu0 0
  %758 = vmatprep.subr.bf16.mxu0 0
  %759 = vmatpush2.bf16.msra.mxu0 0
  %760 = vmatprep.subr.bf16.mxu0 0
  %761 = vmatpush2.bf16.msra.mxu0 0
  %762 = vmatprep.subr.bf16.mxu0 0
  %763 = vmatpush2.bf16.msra.mxu0 0
  %764 = vmatprep.mubr.bf16.mxu0 0
  %765 = vmatmul.mubr.bf16.gmra.mxu0 %v731
  %v766 = vpop.f32.mrf.mxu0
  %v767 = vadd.f32 0.0, %v766
  %v768 = vpop.f32.mrf.mxu0
  %v769 = vadd.f32 0.0, %v768
  %v770 = vpop.f32.mrf.mxu0
  %v771 = vpop.f32.mrf.mxu0
  %772 = vdwg.mxu0
  %773 = vmatprep.subr.bf16.mxu0 0
  %774 = vmatpush1.bf16.msra.mxu0 %v164
  %775 = vmatprep.subr.bf16.mxu0 0
  %776 = vmatpush1.bf16.msra.mxu0 %v161
  %777 = vmatprep.subr.bf16.mxu0 0
  %778 = vmatpush1.bf16.msra.mxu0 %v158
  %779 = vmatprep.subr.bf16.mxu0 0
  %780 = vmatpush1.bf16.msra.mxu0 %v155
  %781 = vmatprep.subr.bf16.mxu0 0
  %782 = vmatpush1.bf16.msra.mxu0 %v152
  %783 = vmatprep.subr.bf16.mxu0 0
  %784 = vmatpush1.bf16.msra.mxu0 %v149
  %785 = vmatprep.subr.bf16.mxu0 0
  %786 = vmatpush1.bf16.msra.mxu0 %v146
  %787 = vmatprep.subr.bf16.mxu0 0
  %788 = vmatpush1.bf16.msra.mxu0 %v143
  %789 = vmatprep.subr.bf16.mxu0 0
  %790 = vmatpush2.bf16.msra.mxu0 0
  %791 = vmatprep.subr.bf16.mxu0 0
  %792 = vmatpush2.bf16.msra.mxu0 0
  %793 = vmatprep.subr.bf16.mxu0 0
  %794 = vmatpush2.bf16.msra.mxu0 0
  %795 = vmatprep.subr.bf16.mxu0 0
  %796 = vmatpush2.bf16.msra.mxu0 0
  %797 = vmatprep.subr.bf16.mxu0 0
  %798 = vmatpush2.bf16.msra.mxu0 0
  %799 = vmatprep.subr.bf16.mxu0 0
  %800 = vmatpush2.bf16.msra.mxu0 0
  %801 = vmatprep.subr.bf16.mxu0 0
  %802 = vmatpush2.bf16.msra.mxu0 0
  %803 = vmatprep.subr.bf16.mxu0 0
  %804 = vmatpush2.bf16.msra.mxu0 0
  %805 = vmatprep.mubr.bf16.mxu0 0
  %806 = vmatmul.mubr.bf16.gmra.mxu0 %v731
  %v807 = vpop.f32.mrf.mxu0
  %v808 = vadd.f32 0.0, %v807
  %v809 = vpop.f32.mrf.mxu0
  %v810 = vpop.f32.mrf.mxu0
  %v811 = vpop.f32.mrf.mxu0
  %812 = vdwg.mxu0
  %s813 = scalar_lea.vmem %s0, 120
  %v814 = vld [vmem:[%s813] sm:$0xff]
  %v815 = vld [vmem:[%s813 + $0x8] sm:$0xff]
  %v816 = vld [vmem:[%s813 + $0x10] sm:$0xff]
  %v817 = vadd.f32 %v814, %v767
  %v818 = vxor.u32 %v817, 2147483648
  %v819 = vmul.f32 %v818, 1.442695
  %v820 = vpow.pop %v819
  %v821 = vadd.f32 %v820, 1.0
  %v822 = vrcp.pop %v821
  %v823 = vmul.f32 1.0, %v822
  %v824 = vadd.f32 %v815, %v769
  %v825 = vxor.u32 %v824, 2147483648
  %v826 = vmul.f32 %v825, 1.442695
  %v827 = vpow.pop %v826
  %v828 = vadd.f32 %v827, 1.0
  %v829 = vrcp.pop %v828
  %v830 = vmul.f32 1.0, %v829
  %v831 = vadd.f32 %v808, %v57
  %v832 = vmul.f32 %v823, %v831
  %v833 = vadd.f32 %v816, %v832
  %v834 = vtanh.pop %v833
  %v835 = vsub.f32 %v728, %v834
  %v836 = vmul.f32 %v830, %v835
  %v837 = vadd.f32 %v834, %v836
  %s838 = scalar_lea.vmem %s3, 40
  %839 = vst [vmem:[%s838] sm:$0xff] %v837
  %v840 = vpack.c.bf16 %v837, %v837
  %841 = vmatprep.subr.bf16.mxu0 %v163
  %842 = vmatpush1.bf16.msra.mxu0 %v162
  %843 = vmatprep.subr.bf16.mxu0 %v160
  %844 = vmatpush1.bf16.msra.mxu0 %v159
  %845 = vmatprep.subr.bf16.mxu0 %v157
  %846 = vmatpush1.bf16.msra.mxu0 %v156
  %847 = vmatprep.subr.bf16.mxu0 %v154
  %848 = vmatpush1.bf16.msra.mxu0 %v153
  %849 = vmatprep.subr.bf16.mxu0 %v151
  %850 = vmatpush1.bf16.msra.mxu0 %v150
  %851 = vmatprep.subr.bf16.mxu0 %v148
  %852 = vmatpush1.bf16.msra.mxu0 %v147
  %853 = vmatprep.subr.bf16.mxu0 %v145
  %854 = vmatpush1.bf16.msra.mxu0 %v144
  %855 = vmatprep.subr.bf16.mxu0 %v142
  %856 = vmatpush1.bf16.msra.mxu0 %v141
  %857 = vmatprep.subr.bf16.mxu0 0
  %858 = vmatpush2.bf16.msra.mxu0 0
  %859 = vmatprep.subr.bf16.mxu0 0
  %860 = vmatpush2.bf16.msra.mxu0 0
  %861 = vmatprep.subr.bf16.mxu0 0
  %862 = vmatpush2.bf16.msra.mxu0 0
  %863 = vmatprep.subr.bf16.mxu0 0
  %864 = vmatpush2.bf16.msra.mxu0 0
  %865 = vmatprep.subr.bf16.mxu0 0
  %866 = vmatpush2.bf16.msra.mxu0 0
  %867 = vmatprep.subr.bf16.mxu0 0
  %868 = vmatpush2.bf16.msra.mxu0 0
  %869 = vmatprep.subr.bf16.mxu0 0
  %870 = vmatpush2.bf16.msra.mxu0 0
  %871 = vmatprep.subr.bf16.mxu0 0
  %872 = vmatpush2.bf16.msra.mxu0 0
  %873 = vmatprep.mubr.bf16.mxu0 0
  %874 = vmatmul.mubr.bf16.gmra.mxu0 %v840
  %v875 = vpop.f32.mrf.mxu0
  %v876 = vadd.f32 0.0, %v875
  %v877 = vpop.f32.mrf.mxu0
  %v878 = vadd.f32 0.0, %v877
  %v879 = vpop.f32.mrf.mxu0
  %v880 = vpop.f32.mrf.mxu0
  %881 = vdwg.mxu0
  %882 = vmatprep.subr.bf16.mxu0 0
  %883 = vmatpush1.bf16.msra.mxu0 %v164
  %884 = vmatprep.subr.bf16.mxu0 0
  %885 = vmatpush1.bf16.msra.mxu0 %v161
  %886 = vmatprep.subr.bf16.mxu0 0
  %887 = vmatpush1.bf16.msra.mxu0 %v158
  %888 = vmatprep.subr.bf16.mxu0 0
  %889 = vmatpush1.bf16.msra.mxu0 %v155
  %890 = vmatprep.subr.bf16.mxu0 0
  %891 = vmatpush1.bf16.msra.mxu0 %v152
  %892 = vmatprep.subr.bf16.mxu0 0
  %893 = vmatpush1.bf16.msra.mxu0 %v149
  %894 = vmatprep.subr.bf16.mxu0 0
  %895 = vmatpush1.bf16.msra.mxu0 %v146
  %896 = vmatprep.subr.bf16.mxu0 0
  %897 = vmatpush1.bf16.msra.mxu0 %v143
  %898 = vmatprep.subr.bf16.mxu0 0
  %899 = vmatpush2.bf16.msra.mxu0 0
  %900 = vmatprep.subr.bf16.mxu0 0
  %901 = vmatpush2.bf16.msra.mxu0 0
  %902 = vmatprep.subr.bf16.mxu0 0
  %903 = vmatpush2.bf16.msra.mxu0 0
  %904 = vmatprep.subr.bf16.mxu0 0
  %905 = vmatpush2.bf16.msra.mxu0 0
  %906 = vmatprep.subr.bf16.mxu0 0
  %907 = vmatpush2.bf16.msra.mxu0 0
  %908 = vmatprep.subr.bf16.mxu0 0
  %909 = vmatpush2.bf16.msra.mxu0 0
  %910 = vmatprep.subr.bf16.mxu0 0
  %911 = vmatpush2.bf16.msra.mxu0 0
  %912 = vmatprep.subr.bf16.mxu0 0
  %913 = vmatpush2.bf16.msra.mxu0 0
  %914 = vmatprep.mubr.bf16.mxu0 0
  %915 = vmatmul.mubr.bf16.gmra.mxu0 %v840
  %v916 = vpop.f32.mrf.mxu0
  %v917 = vadd.f32 0.0, %v916
  %v918 = vpop.f32.mrf.mxu0
  %v919 = vpop.f32.mrf.mxu0
  %v920 = vpop.f32.mrf.mxu0
  %921 = vdwg.mxu0
  %s922 = scalar_lea.vmem %s0, 144
  %v923 = vld [vmem:[%s922] sm:$0xff]
  %v924 = vld [vmem:[%s922 + $0x8] sm:$0xff]
  %v925 = vld [vmem:[%s922 + $0x10] sm:$0xff]
  %v926 = vadd.f32 %v923, %v876
  %v927 = vxor.u32 %v926, 2147483648
  %v928 = vmul.f32 %v927, 1.442695
  %v929 = vpow.pop %v928
  %v930 = vadd.f32 %v929, 1.0
  %v931 = vrcp.pop %v930
  %v932 = vmul.f32 1.0, %v931
  %v933 = vadd.f32 %v924, %v878
  %v934 = vxor.u32 %v933, 2147483648
  %v935 = vmul.f32 %v934, 1.442695
  %v936 = vpow.pop %v935
  %v937 = vadd.f32 %v936, 1.0
  %v938 = vrcp.pop %v937
  %v939 = vmul.f32 1.0, %v938
  %v940 = vadd.f32 %v917, %v57
  %v941 = vmul.f32 %v932, %v940
  %v942 = vadd.f32 %v925, %v941
  %v943 = vtanh.pop %v942
  %v944 = vsub.f32 %v837, %v943
  %v945 = vmul.f32 %v939, %v944
  %v946 = vadd.f32 %v943, %v945
  %s947 = scalar_lea.vmem %s3, 48
  %948 = vst [vmem:[%s947] sm:$0xff] %v946
  %v949 = vpack.c.bf16 %v946, %v946
  %950 = vmatprep.subr.bf16.mxu0 %v163
  %951 = vmatpush1.bf16.msra.mxu0 %v162
  %952 = vmatprep.subr.bf16.mxu0 %v160
  %953 = vmatpush1.bf16.msra.mxu0 %v159
  %954 = vmatprep.subr.bf16.mxu0 %v157
  %955 = vmatpush1.bf16.msra.mxu0 %v156
  %956 = vmatprep.subr.bf16.mxu0 %v154
  %957 = vmatpush1.bf16.msra.mxu0 %v153
  %958 = vmatprep.subr.bf16.mxu0 %v151
  %959 = vmatpush1.bf16.msra.mxu0 %v150
  %960 = vmatprep.subr.bf16.mxu0 %v148
  %961 = vmatpush1.bf16.msra.mxu0 %v147
  %962 = vmatprep.subr.bf16.mxu0 %v145
  %963 = vmatpush1.bf16.msra.mxu0 %v144
  %964 = vmatprep.subr.bf16.mxu0 %v142
  %965 = vmatpush1.bf16.msra.mxu0 %v141
  %966 = vmatprep.subr.bf16.mxu0 0
  %967 = vmatpush2.bf16.msra.mxu0 0
  %968 = vmatprep.subr.bf16.mxu0 0
  %969 = vmatpush2.bf16.msra.mxu0 0
  %970 = vmatprep.subr.bf16.mxu0 0
  %971 = vmatpush2.bf16.msra.mxu0 0
  %972 = vmatprep.subr.bf16.mxu0 0
  %973 = vmatpush2.bf16.msra.mxu0 0
  %974 = vmatprep.subr.bf16.mxu0 0
  %975 = vmatpush2.bf16.msra.mxu0 0
  %976 = vmatprep.subr.bf16.mxu0 0
  %977 = vmatpush2.bf16.msra.mxu0 0
  %978 = vmatprep.subr.bf16.mxu0 0
  %979 = vmatpush2.bf16.msra.mxu0 0
  %980 = vmatprep.subr.bf16.mxu0 0
  %981 = vmatpush2.bf16.msra.mxu0 0
  %982 = vmatprep.mubr.bf16.mxu0 0
  %983 = vmatmul.mubr.bf16.gmra.mxu0 %v949
  %v984 = vpop.f32.mrf.mxu0
  %v985 = vadd.f32 0.0, %v984
  %v986 = vpop.f32.mrf.mxu0
  %v987 = vadd.f32 0.0, %v986
  %v988 = vpop.f32.mrf.mxu0
  %v989 = vpop.f32.mrf.mxu0
  %990 = vdwg.mxu0
  %991 = vmatprep.subr.bf16.mxu0 0
  %992 = vmatpush1.bf16.msra.mxu0 %v164
  %993 = vmatprep.subr.bf16.mxu0 0
  %994 = vmatpush1.bf16.msra.mxu0 %v161
  %995 = vmatprep.subr.bf16.mxu0 0
  %996 = vmatpush1.bf16.msra.mxu0 %v158
  %997 = vmatprep.subr.bf16.mxu0 0
  %998 = vmatpush1.bf16.msra.mxu0 %v155
  %999 = vmatprep.subr.bf16.mxu0 0
  %1000 = vmatpush1.bf16.msra.mxu0 %v152
  %1001 = vmatprep.subr.bf16.mxu0 0
  %1002 = vmatpush1.bf16.msra.mxu0 %v149
  %1003 = vmatprep.subr.bf16.mxu0 0
  %1004 = vmatpush1.bf16.msra.mxu0 %v146
  %1005 = vmatprep.subr.bf16.mxu0 0
  %1006 = vmatpush1.bf16.msra.mxu0 %v143
  %1007 = vmatprep.subr.bf16.mxu0 0
  %1008 = vmatpush2.bf16.msra.mxu0 0
  %1009 = vmatprep.subr.bf16.mxu0 0
  %1010 = vmatpush2.bf16.msra.mxu0 0
  %1011 = vmatprep.subr.bf16.mxu0 0
  %1012 = vmatpush2.bf16.msra.mxu0 0
  %1013 = vmatprep.subr.bf16.mxu0 0
  %1014 = vmatpush2.bf16.msra.mxu0 0
  %1015 = vmatprep.subr.bf16.mxu0 0
  %1016 = vmatpush2.bf16.msra.mxu0 0
  %1017 = vmatprep.subr.bf16.mxu0 0
  %1018 = vmatpush2.bf16.msra.mxu0 0
  %1019 = vmatprep.subr.bf16.mxu0 0
  %1020 = vmatpush2.bf16.msra.mxu0 0
  %1021 = vmatprep.subr.bf16.mxu0 0
  %1022 = vmatpush2.bf16.msra.mxu0 0
  %1023 = vmatprep.mubr.bf16.mxu0 0
  %1024 = vmatmul.mubr.bf16.gmra.mxu0 %v949
  %v1025 = vpop.f32.mrf.mxu0
  %v1026 = vadd.f32 0.0, %v1025
  %v1027 = vpop.f32.mrf.mxu0
  %v1028 = vpop.f32.mrf.mxu0
  %v1029 = vpop.f32.mrf.mxu0
  %1030 = vdwg.mxu0
  %s1031 = scalar_lea.vmem %s0, 168
  %v1032 = vld [vmem:[%s1031] sm:$0xff]
  %v1033 = vld [vmem:[%s1031 + $0x8] sm:$0xff]
  %v1034 = vld [vmem:[%s1031 + $0x10] sm:$0xff]
  %v1035 = vadd.f32 %v1032, %v985
  %v1036 = vxor.u32 %v1035, 2147483648
  %v1037 = vmul.f32 %v1036, 1.442695
  %v1038 = vpow.pop %v1037
  %v1039 = vadd.f32 %v1038, 1.0
  %v1040 = vrcp.pop %v1039
  %v1041 = vmul.f32 1.0, %v1040
  %v1042 = vadd.f32 %v1033, %v987
  %v1043 = vxor.u32 %v1042, 2147483648
  %v1044 = vmul.f32 %v1043, 1.442695
  %v1045 = vpow.pop %v1044
  %v1046 = vadd.f32 %v1045, 1.0
  %v1047 = vrcp.pop %v1046
  %v1048 = vmul.f32 1.0, %v1047
  %v1049 = vadd.f32 %v1026, %v57
  %v1050 = vmul.f32 %v1041, %v1049
  %v1051 = vadd.f32 %v1034, %v1050
  %v1052 = vtanh.pop %v1051
  %v1053 = vsub.f32 %v946, %v1052
  %v1054 = vmul.f32 %v1048, %v1053
  %v1055 = vadd.f32 %v1052, %v1054
  %s1056 = scalar_lea.vmem %s3, 56
  %1057 = vst [vmem:[%s1056] sm:$0xff] %v1055
  %1058 = vst [vmem:[#allocation2] sm:$0xff] %v1055
  // Predicated region
  $region18: #{tatlstm_forward.1} parent=0 // pred_check
    _
  $region19: #{tatlstm_forward.1} parent=0 // pred_check_branch
    %1060 = sbr.rel (0) target = $region21
  $region20: #{tatlstm_forward.1} parent=0 // pred_region
    _
  $region21: #{tatlstm_forward.1} parent=0 // pred_fallthru
    _
  // Predicated region
  $region22: #{tatlstm_forward.1} parent=0 // pred_check
    _
  $region23: #{tatlstm_forward.1} parent=0 // pred_check_branch
    %1062 = sbr.rel (0) target = $region25
  $region24: #{tatlstm_forward.1} parent=0 // pred_region
    _
  $region25: #{tatlstm_forward.1} parent=0 // pred_fallthru
    _

</llo_original>
